<compile_context>
chip_gen: v7x
topology: tpu7x:2x2x1
jax: 0.10.0
libtpu: 0.0.40
codegen_flags: <defaults>
</compile_context>

<pallas_src>
import functools

import jax
import jax.numpy as jnp
from jax import lax
from jax.experimental import pallas as pl
from jax.experimental.pallas import tpu as pltpu


def _lstm_cell(gates, c, H):
    # PyTorch gate order: i, f, g, o
    i = jax.nn.sigmoid(gates[:, 0 * H:1 * H])
    f = jax.nn.sigmoid(gates[:, 1 * H:2 * H])
    g = jnp.tanh(gates[:, 2 * H:3 * H])
    o = jax.nn.sigmoid(gates[:, 3 * H:4 * H])
    c_new = f * c + i * g
    h_new = o * jnp.tanh(c_new)
    return h_new, c_new


def gcnet_kernel(T, Bp, H,
                 x_ref, mask_ref,
                 wi0_ref, b0_ref, whf0_ref, whb0_ref,
                 wif1_ref, bf1_ref, wib1_ref, bb1_ref, whf1_ref,
                 wcf_ref, wcb_ref, bc_ref,
                 out_ref,
                 xg0_ref, out0_ref, xg1_ref):
    f32 = jnp.float32
    G = 4 * H

    whf0 = whf0_ref[...]
    whb0 = whb0_ref[...]
    whf1 = whf1_ref[...]

    # ---- batched layer-0 input projection, both directions at once:
    #      (T*Bp, D) @ (D, 8H) + b.  Off the serial critical path. ----
    xg0_ref[...] = (jnp.dot(x_ref[...], wi0_ref[...],
                            preferred_element_type=f32) + b0_ref[...])

    zeros = jnp.zeros((Bp, H), f32)

    # ---- layer 0: fwd (t = i) and bwd (t = T-1-i) fused in one unrolled loop
    #      so the two independent recurrent matmuls overlap on the MXU. ----
    def body0(i, carry):
        h_f, c_f, h_b, c_b = carry
        rf = pl.multiple_of(i * Bp, Bp)
        rb = pl.multiple_of((T - 1 - i) * Bp, Bp)

        g_f = (jnp.dot(h_f, whf0, preferred_element_type=f32)
               + xg0_ref[pl.ds(rf, Bp), :G])
        g_b = (jnp.dot(h_b, whb0, preferred_element_type=f32)
               + xg0_ref[pl.ds(rb, Bp), G:])
        hf_n, cf_n = _lstm_cell(g_f, c_f, H)
        hb_n, cb_n = _lstm_cell(g_b, c_b, H)

        m_f = jnp.broadcast_to(mask_ref[pl.ds(rf, Bp), :], (Bp, H)) > 0.0
        m_b = jnp.broadcast_to(mask_ref[pl.ds(rb, Bp), :], (Bp, H)) > 0.0
        h_f = jnp.where(m_f, hf_n, h_f)
        c_f = jnp.where(m_f, cf_n, c_f)
        h_b = jnp.where(m_b, hb_n, h_b)
        c_b = jnp.where(m_b, cb_n, c_b)

        out0_ref[pl.ds(rf, Bp), :H] = jnp.where(m_f, h_f, 0.0)
        out0_ref[pl.ds(rb, Bp), H:] = jnp.where(m_b, h_b, 0.0)
        return h_f, c_f, h_b, c_b

    lax.fori_loop(0, T, body0, (zeros, zeros, zeros, zeros), unroll=True)

    # ---- batched layer-1 (forward dir) input projection: (T*Bp, 2H) @ (2H, 4H) ----
    xg1_ref[...] = (jnp.dot(out0_ref[...], wif1_ref[...],
                            preferred_element_type=f32) + bf1_ref[...])

    # ---- layer 1, forward direction: only h @ W_hh stays in the loop ----
    def body1(t, carry):
        h, c = carry
        r = pl.multiple_of(t * Bp, Bp)
        g = (jnp.dot(h, whf1, preferred_element_type=f32)
             + xg1_ref[pl.ds(r, Bp), :])
        h_n, c_n = _lstm_cell(g, c, H)
        m = jnp.broadcast_to(mask_ref[pl.ds(r, Bp), :], (Bp, H)) > 0.0
        return jnp.where(m, h_n, h), jnp.where(m, c_n, c)

    h2f, _ = lax.fori_loop(0, T, body1, (zeros, zeros), unroll=True)

    # ---- layer 1, backward direction: packed-sequence semantics mean the
    #      t = T-1 output is a single LSTM step from the zero state. ----
    r_last = (T - 1) * Bp
    g_b = (jnp.dot(out0_ref[pl.ds(r_last, Bp), :], wib1_ref[...],
                   preferred_element_type=f32) + bb1_ref[...])
    h2b, _ = _lstm_cell(g_b, zeros, H)

    # out[:, -1, :] is nonzero only for rows with lens[b] == T
    m_last = jnp.broadcast_to(mask_ref[pl.ds(r_last, Bp), :], (Bp, H)) > 0.0
    h2f = jnp.where(m_last, h2f, 0.0)
    h2b = jnp.where(m_last, h2b, 0.0)

    logits = (jnp.dot(h2f, wcf_ref[...], preferred_element_type=f32)
              + jnp.dot(h2b, wcb_ref[...], preferred_element_type=f32)
              + bc_ref[...])
    out_ref[...] = jax.nn.sigmoid(logits)


def init_params(key, in_dim, hidden, n_class):
    """Deterministic init mirroring PyTorch's U(-1/sqrt(H), 1/sqrt(H))."""
    k = 1.0 / float(hidden) ** 0.5
    layer_dirs = [('0', 'f', in_dim), ('0', 'b', in_dim),
                  ('1', 'f', 2 * hidden), ('1', 'b', 2 * hidden)]
    keys = jax.random.split(key, 4 * 4 + 2)
    p = {}
    ki = 0
    for layer, d, insz in layer_dirs:
        w_ih = jax.random.uniform(keys[ki], (4 * hidden, insz), jnp.float32, -k, k); ki += 1
        w_hh = jax.random.uniform(keys[ki], (4 * hidden, hidden), jnp.float32, -k, k); ki += 1
        b_ih = jax.random.uniform(keys[ki], (4 * hidden,), jnp.float32, -k, k); ki += 1
        b_hh = jax.random.uniform(keys[ki], (4 * hidden,), jnp.float32, -k, k); ki += 1
        p[f'wi{d}{layer}'] = w_ih.T                         # (insz, 4H)
        p[f'wh{d}{layer}'] = w_hh.T                         # (H, 4H)
        p[f'b{d}{layer}'] = (b_ih + b_hh).reshape(1, 4 * hidden)
    kc = 1.0 / float(2 * hidden) ** 0.5
    w_c = jax.random.uniform(keys[ki], (n_class, 2 * hidden), jnp.float32, -kc, kc); ki += 1
    b_c = jax.random.uniform(keys[ki], (n_class,), jnp.float32, -kc, kc)
    p['wc'] = w_c.T                                         # (2H, n_class)
    p['bc'] = b_c.reshape(1, n_class)
    return p


def gcnet_forward(x, lens, params):
    """x: (B, T, D) batch-first float32, lens: python list of ints."""
    lens = [int(l) for l in lens]
    T = max(lens)                          # pad_packed_sequence pads to max(lens)
    B = x.shape[0]
    D = x.shape[2]
    H = params['whf0'].shape[0]
    C = params['wc'].shape[1]
    Bp = max(8, -(-B // 8) * 8)            # pad batch to a multiple of 8 sublanes

    # time-major, batch-padded input, flattened to (T*Bp, D) so the kernel can
    # run the input projections as one big matmul.
    x_tm = jnp.transpose(x[:, :T, :], (1, 0, 2)).astype(jnp.float32)   # (T, B, D)
    x_tm = jnp.pad(x_tm, ((0, 0), (0, Bp - B), (0, 0)))
    x2d = x_tm.reshape(T * Bp, D)

    lens_a = jnp.asarray(lens, jnp.int32)
    mask = (jnp.arange(T)[:, None] < lens_a[None, :]).astype(jnp.float32)  # (T, B)
    mask = jnp.pad(mask, ((0, 0), (0, Bp - B))).reshape(T * Bp, 1)

    # weight packing: both layer-0 directions share one input-projection matmul
    wi0 = jnp.concatenate([params['wif0'], params['wib0']], axis=1)    # (D, 8H)
    b0 = jnp.concatenate([params['bf0'], params['bb0']], axis=1)       # (1, 8H)
    wc = params['wc']
    flat = [wi0, b0, params['whf0'], params['whb0'],
            params['wif1'], params['bf1'], params['wib1'], params['bb1'],
            params['whf1'],
            wc[:H, :], wc[H:, :], params['bc']]

    kernel = functools.partial(gcnet_kernel, T, Bp, H)
    out = pl.pallas_call(
        kernel,
        out_shape=jax.ShapeDtypeStruct((Bp, C), jnp.float32),
        in_specs=[pl.BlockSpec(memory_space=pltpu.MemorySpace.VMEM)] * (2 + len(flat)),
        out_specs=pl.BlockSpec(memory_space=pltpu.MemorySpace.VMEM),
        scratch_shapes=[pltpu.VMEM((T * Bp, 8 * H), jnp.float32),   # layer-0 input gates
                        pltpu.VMEM((T * Bp, 2 * H), jnp.float32),   # layer-0 outputs (fwd|bwd)
                        pltpu.VMEM((T * Bp, 4 * H), jnp.float32)],  # layer-1 fwd input gates
    )(x2d, mask, *flat)
    return out[:B]


# ----------------------- pure-JAX reference (for checking) -----------------------
def _run_dir_ref(x_seq, mask, w_ih, w_hh, b, H, reverse):
    T = x_seq.shape[0]
    B = x_seq.shape[1]
    h = jnp.zeros((B, H), jnp.float32)
    c = jnp.zeros((B, H), jnp.float32)
    outs = [None] * T
    ts = range(T - 1, -1, -1) if reverse else range(T)
    for t in ts:
        gates = x_seq[t] @ w_ih + h @ w_hh + b
        h_new, c_new = _lstm_cell(gates, c, H)
        m = mask[t]
        h = m * h_new + (1.0 - m) * h
        c = m * c_new + (1.0 - m) * c
        outs[t] = m * h
    return jnp.stack(outs, axis=0)


def gcnet_ref(x, lens, p):
    lens = [int(l) for l in lens]
    T_eff = max(lens)
    lens_a = jnp.asarray(lens, jnp.int32)
    H = p['whf0'].shape[0]
    xs = jnp.transpose(x[:, :T_eff, :], (1, 0, 2)).astype(jnp.float32)
    mask = (jnp.arange(T_eff)[:, None] < lens_a[None, :]).astype(jnp.float32)[:, :, None]
    o0f = _run_dir_ref(xs, mask, p['wif0'], p['whf0'], p['bf0'], H, False)
    o0b = _run_dir_ref(xs, mask, p['wib0'], p['whb0'], p['bb0'], H, True)
    x1 = jnp.concatenate([o0f, o0b], axis=-1)
    o1f = _run_dir_ref(x1, mask, p['wif1'], p['whf1'], p['bf1'], H, False)
    o1b = _run_dir_ref(x1, mask, p['wib1'], p['whb1'], p['bb1'], H, True)
    last = jnp.concatenate([o1f[-1], o1b[-1]], axis=-1)     # out[:, -1, :]
    return jax.nn.sigmoid(last @ p['wc'] + p['bc'])


if __name__ == "__main__":
    B, T, D, H, C = 4, 8, 32, 64, 1
    key = jax.random.PRNGKey(0)
    kx, kp = jax.random.split(key)
    x = jax.random.normal(kx, (B, T, D), jnp.float32)
    lens = [8, 5, 8, 3]

    params = init_params(kp, D, H, C)

    out = gcnet_forward(x, lens, params)
    out = jax.block_until_ready(out)

    ref = gcnet_ref(x, lens, params)
    assert out.shape == (B, C), out.shape
    assert jnp.allclose(out, ref, rtol=0.0, atol=5e-3), (out, ref)

    print("KERNEL_OK")
</pallas_src>

<mosaic_0001>
module attributes {stable_mosaic.version = 11 : i64} {
  func.func @gcnet_kernel(%arg0: memref<64x32xf32, #tpu.memory_space<vmem>>, %arg1: memref<64x1xf32, #tpu.memory_space<vmem>>, %arg2: memref<32x512xf32, #tpu.memory_space<vmem>>, %arg3: memref<1x512xf32, #tpu.memory_space<vmem>>, %arg4: memref<64x256xf32, #tpu.memory_space<vmem>>, %arg5: memref<64x256xf32, #tpu.memory_space<vmem>>, %arg6: memref<128x256xf32, #tpu.memory_space<vmem>>, %arg7: memref<1x256xf32, #tpu.memory_space<vmem>>, %arg8: memref<128x256xf32, #tpu.memory_space<vmem>>, %arg9: memref<1x256xf32, #tpu.memory_space<vmem>>, %arg10: memref<64x256xf32, #tpu.memory_space<vmem>>, %arg11: memref<64x1xf32, #tpu.memory_space<vmem>>, %arg12: memref<64x1xf32, #tpu.memory_space<vmem>>, %arg13: memref<1x1xf32, #tpu.memory_space<vmem>>, %arg14: memref<8x1xf32, #tpu.memory_space<vmem>>, %arg15: memref<64x512xf32, #tpu.memory_space<vmem>>, %arg16: memref<64x128xf32, #tpu.memory_space<vmem>>, %arg17: memref<64x256xf32, #tpu.memory_space<vmem>>) attributes {dimension_semantics = [], scalar_prefetch = 0 : i64, scratch_operands = 3 : i64, tpu.core_type = #tpu.core_type<tc>} {
    %c0 = arith.constant 0 : index
    %c0_0 = arith.constant 0 : index
    %0 = vector.load %arg4[%c0, %c0_0] : memref<64x256xf32, #tpu.memory_space<vmem>>, vector<64x256xf32>
    %c0_1 = arith.constant 0 : index
    %c0_2 = arith.constant 0 : index
    %1 = vector.load %arg5[%c0_1, %c0_2] : memref<64x256xf32, #tpu.memory_space<vmem>>, vector<64x256xf32>
    %c0_3 = arith.constant 0 : index
    %c0_4 = arith.constant 0 : index
    %2 = vector.load %arg10[%c0_3, %c0_4] : memref<64x256xf32, #tpu.memory_space<vmem>>, vector<64x256xf32>
    %c0_5 = arith.constant 0 : index
    %c0_6 = arith.constant 0 : index
    %3 = vector.load %arg0[%c0_5, %c0_6] : memref<64x32xf32, #tpu.memory_space<vmem>>, vector<64x32xf32>
    %c0_7 = arith.constant 0 : index
    %c0_8 = arith.constant 0 : index
    %4 = vector.load %arg2[%c0_7, %c0_8] : memref<32x512xf32, #tpu.memory_space<vmem>>, vector<32x512xf32>
    %cst = arith.constant dense<0.000000e+00> : vector<64x512xf32>
    %5 = tpu.matmul %3, %4, %cst {dimension_numbers = #tpu.dot_dimension_numbers<[1], [0], [0], [1], [0, 0, 1, 1], [], []>} : vector<64x32xf32>, vector<32x512xf32>, vector<64x512xf32> -> vector<64x512xf32>
    %c0_9 = arith.constant 0 : index
    %c0_10 = arith.constant 0 : index
    %6 = vector.load %arg3[%c0_9, %c0_10] : memref<1x512xf32, #tpu.memory_space<vmem>>, vector<1x512xf32>
    %7 = vector.broadcast %6 : vector<1x512xf32> to vector<64x512xf32>
    %8 = arith.addf %5, %7 : vector<64x512xf32>
    %c0_11 = arith.constant 0 : index
    %c0_12 = arith.constant 0 : index
    %9 = vector.load %arg15[%c0_11, %c0_12] : memref<64x512xf32, #tpu.memory_space<vmem>>, vector<64x512xf32>
    tpu.vector_store %arg15[%c0_11, %c0_12], %8 {strides = array<i32>} : memref<64x512xf32, #tpu.memory_space<vmem>>, vector<64x512xf32>,
    %cst_13 = arith.constant 0.000000e+00 : f32
    %10 = vector.broadcast %cst_13 : f32 to vector<8x64xf32>
    %c0_i32 = arith.constant 0 : i32
    %c8_i32 = arith.constant 8 : i32
    %11 = arith.muli %c0_i32, %c8_i32 : i32
    %12 = tpu.assume_multiple %11, 8 : i32
    %c7_i32 = arith.constant 7 : i32
    %13 = arith.subi %c7_i32, %c0_i32 : i32
    %c8_i32_14 = arith.constant 8 : i32
    %14 = arith.muli %13, %c8_i32_14 : i32
    %15 = tpu.assume_multiple %14, 8 : i32
    %cst_15 = arith.constant dense<0.000000e+00> : vector<8x256xf32>
    %16 = tpu.matmul %10, %0, %cst_15 {dimension_numbers = #tpu.dot_dimension_numbers<[1], [0], [0], [1], [0, 0, 1, 1], [], []>} : vector<8x64xf32>, vector<64x256xf32>, vector<8x256xf32> -> vector<8x256xf32>
    %17 = arith.index_cast %12 : i32 to index
    %c0_16 = arith.constant 0 : index
    %18 = vector.load %arg15[%17, %c0_16] : memref<64x512xf32, #tpu.memory_space<vmem>>, vector<8x256xf32>
    %19 = arith.addf %16, %18 : vector<8x256xf32>
    %cst_17 = arith.constant dense<0.000000e+00> : vector<8x256xf32>
    %20 = tpu.matmul %10, %1, %cst_17 {dimension_numbers = #tpu.dot_dimension_numbers<[1], [0], [0], [1], [0, 0, 1, 1], [], []>} : vector<8x64xf32>, vector<64x256xf32>, vector<8x256xf32> -> vector<8x256xf32>
    %21 = arith.index_cast %15 : i32 to index
    %c256 = arith.constant 256 : index
    %22 = vector.load %arg15[%21, %c256] : memref<64x512xf32, #tpu.memory_space<vmem>>, vector<8x256xf32>
    %23 = arith.addf %20, %22 : vector<8x256xf32>
    %24 = vector.extract_strided_slice %19 {offsets = [0, 0], sizes = [8, 64], strides = [1, 1]} : vector<8x256xf32> to vector<8x64xf32>
    %25 = arith.negf %24 : vector<8x64xf32>
    %26 = math.exp %25 : vector<8x64xf32>
    %cst_18 = arith.constant 1.000000e+00 : f32
    %27 = vector.broadcast %cst_18 : f32 to vector<8x64xf32>
    %28 = arith.addf %27, %26 : vector<8x64xf32>
    %29 = arith.divf %27, %28 : vector<8x64xf32>
    %30 = vector.extract_strided_slice %19 {offsets = [0, 64], sizes = [8, 64], strides = [1, 1]} : vector<8x256xf32> to vector<8x64xf32>
    %31 = arith.negf %30 : vector<8x64xf32>
    %32 = math.exp %31 : vector<8x64xf32>
    %cst_19 = arith.constant 1.000000e+00 : f32
    %33 = vector.broadcast %cst_19 : f32 to vector<8x64xf32>
    %34 = arith.addf %33, %32 : vector<8x64xf32>
    %35 = arith.divf %33, %34 : vector<8x64xf32>
    %36 = vector.extract_strided_slice %19 {offsets = [0, 128], sizes = [8, 64], strides = [1, 1]} : vector<8x256xf32> to vector<8x64xf32>
    %37 = math.tanh %36 : vector<8x64xf32>
    %38 = vector.extract_strided_slice %19 {offsets = [0, 192], sizes = [8, 64], strides = [1, 1]} : vector<8x256xf32> to vector<8x64xf32>
    %39 = arith.negf %38 : vector<8x64xf32>
    %40 = math.exp %39 : vector<8x64xf32>
    %cst_20 = arith.constant 1.000000e+00 : f32
    %41 = vector.broadcast %cst_20 : f32 to vector<8x64xf32>
    %42 = arith.addf %41, %40 : vector<8x64xf32>
    %43 = arith.divf %41, %42 : vector<8x64xf32>
    %44 = arith.mulf %35, %10 : vector<8x64xf32>
    %45 = arith.mulf %29, %37 : vector<8x64xf32>
    %46 = arith.addf %44, %45 : vector<8x64xf32>
    %47 = math.tanh %46 : vector<8x64xf32>
    %48 = arith.mulf %43, %47 : vector<8x64xf32>
    %49 = vector.extract_strided_slice %23 {offsets = [0, 0], sizes = [8, 64], strides = [1, 1]} : vector<8x256xf32> to vector<8x64xf32>
    %50 = arith.negf %49 : vector<8x64xf32>
    %51 = math.exp %50 : vector<8x64xf32>
    %cst_21 = arith.constant 1.000000e+00 : f32
    %52 = vector.broadcast %cst_21 : f32 to vector<8x64xf32>
    %53 = arith.addf %52, %51 : vector<8x64xf32>
    %54 = arith.divf %52, %53 : vector<8x64xf32>
    %55 = vector.extract_strided_slice %23 {offsets = [0, 64], sizes = [8, 64], strides = [1, 1]} : vector<8x256xf32> to vector<8x64xf32>
    %56 = arith.negf %55 : vector<8x64xf32>
    %57 = math.exp %56 : vector<8x64xf32>
    %cst_22 = arith.constant 1.000000e+00 : f32
    %58 = vector.broadcast %cst_22 : f32 to vector<8x64xf32>
    %59 = arith.addf %58, %57 : vector<8x64xf32>
    %60 = arith.divf %58, %59 : vector<8x64xf32>
    %61 = vector.extract_strided_slice %23 {offsets = [0, 128], sizes = [8, 64], strides = [1, 1]} : vector<8x256xf32> to vector<8x64xf32>
    %62 = math.tanh %61 : vector<8x64xf32>
    %63 = vector.extract_strided_slice %23 {offsets = [0, 192], sizes = [8, 64], strides = [1, 1]} : vector<8x256xf32> to vector<8x64xf32>
    %64 = arith.negf %63 : vector<8x64xf32>
    %65 = math.exp %64 : vector<8x64xf32>
    %cst_23 = arith.constant 1.000000e+00 : f32
    %66 = vector.broadcast %cst_23 : f32 to vector<8x64xf32>
    %67 = arith.addf %66, %65 : vector<8x64xf32>
    %68 = arith.divf %66, %67 : vector<8x64xf32>
    %69 = arith.mulf %60, %10 : vector<8x64xf32>
    %70 = arith.mulf %54, %62 : vector<8x64xf32>
    %71 = arith.addf %69, %70 : vector<8x64xf32>
    %72 = math.tanh %71 : vector<8x64xf32>
    %73 = arith.mulf %68, %72 : vector<8x64xf32>
    %74 = arith.index_cast %12 : i32 to index
    %c0_24 = arith.constant 0 : index
    %75 = vector.load %arg1[%74, %c0_24] : memref<64x1xf32, #tpu.memory_space<vmem>>, vector<8x1xf32>
    %76 = vector.shape_cast %75 : vector<8x1xf32> to vector<8x1xf32>
    %77 = vector.broadcast %76 : vector<8x1xf32> to vector<8x64xf32>
    %cst_25 = arith.constant 0.000000e+00 : f32
    %78 = vector.broadcast %cst_25 : f32 to vector<8x64xf32>
    %79 = arith.cmpf ogt, %77, %78 : vector<8x64xf32>
    %80 = arith.index_cast %15 : i32 to index
    %c0_26 = arith.constant 0 : index
    %81 = vector.load %arg1[%80, %c0_26] : memref<64x1xf32, #tpu.memory_space<vmem>>, vector<8x1xf32>
    %82 = vector.shape_cast %81 : vector<8x1xf32> to vector<8x1xf32>
    %83 = vector.broadcast %82 : vector<8x1xf32> to vector<8x64xf32>
    %cst_27 = arith.constant 0.000000e+00 : f32
    %84 = vector.broadcast %cst_27 : f32 to vector<8x64xf32>
    %85 = arith.cmpf ogt, %83, %84 : vector<8x64xf32>
    %86 = arith.select %79, %48, %10 : vector<8x64xi1>, vector<8x64xf32>
    %87 = arith.select %79, %46, %10 : vector<8x64xi1>, vector<8x64xf32>
    %88 = arith.select %85, %73, %10 : vector<8x64xi1>, vector<8x64xf32>
    %89 = arith.select %85, %71, %10 : vector<8x64xi1>, vector<8x64xf32>
    %cst_28 = arith.constant 0.000000e+00 : f32
    %90 = vector.broadcast %cst_28 : f32 to vector<8x64xf32>
    %91 = arith.select %79, %86, %90 : vector<8x64xi1>, vector<8x64xf32>
    %92 = arith.index_cast %12 : i32 to index
    %c0_29 = arith.constant 0 : index
    %93 = vector.load %arg16[%92, %c0_29] : memref<64x128xf32, #tpu.memory_space<vmem>>, vector<8x64xf32>
    tpu.vector_store %arg16[%92, %c0_29], %91 {strides = array<i32>} : memref<64x128xf32, #tpu.memory_space<vmem>>, vector<8x64xf32>,
    %cst_30 = arith.constant 0.000000e+00 : f32
    %94 = vector.broadcast %cst_30 : f32 to vector<8x64xf32>
    %95 = arith.select %85, %88, %94 : vector<8x64xi1>, vector<8x64xf32>
    %96 = arith.index_cast %15 : i32 to index
    %c64 = arith.constant 64 : index
    %97 = vector.load %arg16[%96, %c64] : memref<64x128xf32, #tpu.memory_space<vmem>>, vector<8x64xf32>
    tpu.vector_store %arg16[%96, %c64], %95 {strides = array<i32>} : memref<64x128xf32, #tpu.memory_space<vmem>>, vector<8x64xf32>,
    %c1_i32 = arith.constant 1 : i32
    %c8_i32_31 = arith.constant 8 : i32
    %98 = arith.muli %c1_i32, %c8_i32_31 : i32
    %99 = tpu.assume_multiple %98, 8 : i32
    %c7_i32_32 = arith.constant 7 : i32
    %100 = arith.subi %c7_i32_32, %c1_i32 : i32
    %c8_i32_33 = arith.constant 8 : i32
    %101 = arith.muli %100, %c8_i32_33 : i32
    %102 = tpu.assume_multiple %101, 8 : i32
    %cst_34 = arith.constant dense<0.000000e+00> : vector<8x256xf32>
    %103 = tpu.matmul %86, %0, %cst_34 {dimension_numbers = #tpu.dot_dimension_numbers<[1], [0], [0], [1], [0, 0, 1, 1], [], []>} : vector<8x64xf32>, vector<64x256xf32>, vector<8x256xf32> -> vector<8x256xf32>
    %104 = arith.index_cast %99 : i32 to index
    %c0_35 = arith.constant 0 : index
    %105 = vector.load %arg15[%104, %c0_35] : memref<64x512xf32, #tpu.memory_space<vmem>>, vector<8x256xf32>
    %106 = arith.addf %103, %105 : vector<8x256xf32>
    %cst_36 = arith.constant dense<0.000000e+00> : vector<8x256xf32>
    %107 = tpu.matmul %88, %1, %cst_36 {dimension_numbers = #tpu.dot_dimension_numbers<[1], [0], [0], [1], [0, 0, 1, 1], [], []>} : vector<8x64xf32>, vector<64x256xf32>, vector<8x256xf32> -> vector<8x256xf32>
    %108 = arith.index_cast %102 : i32 to index
    %c256_37 = arith.constant 256 : index
    %109 = vector.load %arg15[%108, %c256_37] : memref<64x512xf32, #tpu.memory_space<vmem>>, vector<8x256xf32>
    %110 = arith.addf %107, %109 : vector<8x256xf32>
    %111 = vector.extract_strided_slice %106 {offsets = [0, 0], sizes = [8, 64], strides = [1, 1]} : vector<8x256xf32> to vector<8x64xf32>
    %112 = arith.negf %111 : vector<8x64xf32>
    %113 = math.exp %112 : vector<8x64xf32>
    %cst_38 = arith.constant 1.000000e+00 : f32
    %114 = vector.broadcast %cst_38 : f32 to vector<8x64xf32>
    %115 = arith.addf %114, %113 : vector<8x64xf32>
    %116 = arith.divf %114, %115 : vector<8x64xf32>
    %117 = vector.extract_strided_slice %106 {offsets = [0, 64], sizes = [8, 64], strides = [1, 1]} : vector<8x256xf32> to vector<8x64xf32>
    %118 = arith.negf %117 : vector<8x64xf32>
    %119 = math.exp %118 : vector<8x64xf32>
    %cst_39 = arith.constant 1.000000e+00 : f32
    %120 = vector.broadcast %cst_39 : f32 to vector<8x64xf32>
    %121 = arith.addf %120, %119 : vector<8x64xf32>
    %122 = arith.divf %120, %121 : vector<8x64xf32>
    %123 = vector.extract_strided_slice %106 {offsets = [0, 128], sizes = [8, 64], strides = [1, 1]} : vector<8x256xf32> to vector<8x64xf32>
    %124 = math.tanh %123 : vector<8x64xf32>
    %125 = vector.extract_strided_slice %106 {offsets = [0, 192], sizes = [8, 64], strides = [1, 1]} : vector<8x256xf32> to vector<8x64xf32>
    %126 = arith.negf %125 : vector<8x64xf32>
    %127 = math.exp %126 : vector<8x64xf32>
    %cst_40 = arith.constant 1.000000e+00 : f32
    %128 = vector.broadcast %cst_40 : f32 to vector<8x64xf32>
    %129 = arith.addf %128, %127 : vector<8x64xf32>
    %130 = arith.divf %128, %129 : vector<8x64xf32>
    %131 = arith.mulf %122, %87 : vector<8x64xf32>
    %132 = arith.mulf %116, %124 : vector<8x64xf32>
    %133 = arith.addf %131, %132 : vector<8x64xf32>
    %134 = math.tanh %133 : vector<8x64xf32>
    %135 = arith.mulf %130, %134 : vector<8x64xf32>
    %136 = vector.extract_strided_slice %110 {offsets = [0, 0], sizes = [8, 64], strides = [1, 1]} : vector<8x256xf32> to vector<8x64xf32>
    %137 = arith.negf %136 : vector<8x64xf32>
    %138 = math.exp %137 : vector<8x64xf32>
    %cst_41 = arith.constant 1.000000e+00 : f32
    %139 = vector.broadcast %cst_41 : f32 to vector<8x64xf32>
    %140 = arith.addf %139, %138 : vector<8x64xf32>
    %141 = arith.divf %139, %140 : vector<8x64xf32>
    %142 = vector.extract_strided_slice %110 {offsets = [0, 64], sizes = [8, 64], strides = [1, 1]} : vector<8x256xf32> to vector<8x64xf32>
    %143 = arith.negf %142 : vector<8x64xf32>
    %144 = math.exp %143 : vector<8x64xf32>
    %cst_42 = arith.constant 1.000000e+00 : f32
    %145 = vector.broadcast %cst_42 : f32 to vector<8x64xf32>
    %146 = arith.addf %145, %144 : vector<8x64xf32>
    %147 = arith.divf %145, %146 : vector<8x64xf32>
    %148 = vector.extract_strided_slice %110 {offsets = [0, 128], sizes = [8, 64], strides = [1, 1]} : vector<8x256xf32> to vector<8x64xf32>
    %149 = math.tanh %148 : vector<8x64xf32>
    %150 = vector.extract_strided_slice %110 {offsets = [0, 192], sizes = [8, 64], strides = [1, 1]} : vector<8x256xf32> to vector<8x64xf32>
    %151 = arith.negf %150 : vector<8x64xf32>
    %152 = math.exp %151 : vector<8x64xf32>
    %cst_43 = arith.constant 1.000000e+00 : f32
    %153 = vector.broadcast %cst_43 : f32 to vector<8x64xf32>
    %154 = arith.addf %153, %152 : vector<8x64xf32>
    %155 = arith.divf %153, %154 : vector<8x64xf32>
    %156 = arith.mulf %147, %89 : vector<8x64xf32>
    %157 = arith.mulf %141, %149 : vector<8x64xf32>
    %158 = arith.addf %156, %157 : vector<8x64xf32>
    %159 = math.tanh %158 : vector<8x64xf32>
    %160 = arith.mulf %155, %159 : vector<8x64xf32>
    %161 = arith.index_cast %99 : i32 to index
    %c0_44 = arith.constant 0 : index
    %162 = vector.load %arg1[%161, %c0_44] : memref<64x1xf32, #tpu.memory_space<vmem>>, vector<8x1xf32>
    %163 = vector.shape_cast %162 : vector<8x1xf32> to vector<8x1xf32>
    %164 = vector.broadcast %163 : vector<8x1xf32> to vector<8x64xf32>
    %cst_45 = arith.constant 0.000000e+00 : f32
    %165 = vector.broadcast %cst_45 : f32 to vector<8x64xf32>
    %166 = arith.cmpf ogt, %164, %165 : vector<8x64xf32>
    %167 = arith.index_cast %102 : i32 to index
    %c0_46 = arith.constant 0 : index
    %168 = vector.load %arg1[%167, %c0_46] : memref<64x1xf32, #tpu.memory_space<vmem>>, vector<8x1xf32>
    %169 = vector.shape_cast %168 : vector<8x1xf32> to vector<8x1xf32>
    %170 = vector.broadcast %169 : vector<8x1xf32> to vector<8x64xf32>
    %cst_47 = arith.constant 0.000000e+00 : f32
    %171 = vector.broadcast %cst_47 : f32 to vector<8x64xf32>
    %172 = arith.cmpf ogt, %170, %171 : vector<8x64xf32>
    %173 = arith.select %166, %135, %86 : vector<8x64xi1>, vector<8x64xf32>
    %174 = arith.select %166, %133, %87 : vector<8x64xi1>, vector<8x64xf32>
    %175 = arith.select %172, %160, %88 : vector<8x64xi1>, vector<8x64xf32>
    %176 = arith.select %172, %158, %89 : vector<8x64xi1>, vector<8x64xf32>
    %cst_48 = arith.constant 0.000000e+00 : f32
    %177 = vector.broadcast %cst_48 : f32 to vector<8x64xf32>
    %178 = arith.select %166, %173, %177 : vector<8x64xi1>, vector<8x64xf32>
    %179 = arith.index_cast %99 : i32 to index
    %c0_49 = arith.constant 0 : index
    %180 = vector.load %arg16[%179, %c0_49] : memref<64x128xf32, #tpu.memory_space<vmem>>, vector<8x64xf32>
    tpu.vector_store %arg16[%179, %c0_49], %178 {strides = array<i32>} : memref<64x128xf32, #tpu.memory_space<vmem>>, vector<8x64xf32>,
    %cst_50 = arith.constant 0.000000e+00 : f32
    %181 = vector.broadcast %cst_50 : f32 to vector<8x64xf32>
    %182 = arith.select %172, %175, %181 : vector<8x64xi1>, vector<8x64xf32>
    %183 = arith.index_cast %102 : i32 to index
    %c64_51 = arith.constant 64 : index
    %184 = vector.load %arg16[%183, %c64_51] : memref<64x128xf32, #tpu.memory_space<vmem>>, vector<8x64xf32>
    tpu.vector_store %arg16[%183, %c64_51], %182 {strides = array<i32>} : memref<64x128xf32, #tpu.memory_space<vmem>>, vector<8x64xf32>,
    %c2_i32 = arith.constant 2 : i32
    %c8_i32_52 = arith.constant 8 : i32
    %185 = arith.muli %c2_i32, %c8_i32_52 : i32
    %186 = tpu.assume_multiple %185, 8 : i32
    %c7_i32_53 = arith.constant 7 : i32
    %187 = arith.subi %c7_i32_53, %c2_i32 : i32
    %c8_i32_54 = arith.constant 8 : i32
    %188 = arith.muli %187, %c8_i32_54 : i32
    %189 = tpu.assume_multiple %188, 8 : i32
    %cst_55 = arith.constant dense<0.000000e+00> : vector<8x256xf32>
    %190 = tpu.matmul %173, %0, %cst_55 {dimension_numbers = #tpu.dot_dimension_numbers<[1], [0], [0], [1], [0, 0, 1, 1], [], []>} : vector<8x64xf32>, vector<64x256xf32>, vector<8x256xf32> -> vector<8x256xf32>
    %191 = arith.index_cast %186 : i32 to index
    %c0_56 = arith.constant 0 : index
    %192 = vector.load %arg15[%191, %c0_56] : memref<64x512xf32, #tpu.memory_space<vmem>>, vector<8x256xf32>
    %193 = arith.addf %190, %192 : vector<8x256xf32>
    %cst_57 = arith.constant dense<0.000000e+00> : vector<8x256xf32>
    %194 = tpu.matmul %175, %1, %cst_57 {dimension_numbers = #tpu.dot_dimension_numbers<[1], [0], [0], [1], [0, 0, 1, 1], [], []>} : vector<8x64xf32>, vector<64x256xf32>, vector<8x256xf32> -> vector<8x256xf32>
    %195 = arith.index_cast %189 : i32 to index
    %c256_58 = arith.constant 256 : index
    %196 = vector.load %arg15[%195, %c256_58] : memref<64x512xf32, #tpu.memory_space<vmem>>, vector<8x256xf32>
    %197 = arith.addf %194, %196 : vector<8x256xf32>
    %198 = vector.extract_strided_slice %193 {offsets = [0, 0], sizes = [8, 64], strides = [1, 1]} : vector<8x256xf32> to vector<8x64xf32>
    %199 = arith.negf %198 : vector<8x64xf32>
    %200 = math.exp %199 : vector<8x64xf32>
    %cst_59 = arith.constant 1.000000e+00 : f32
    %201 = vector.broadcast %cst_59 : f32 to vector<8x64xf32>
    %202 = arith.addf %201, %200 : vector<8x64xf32>
    %203 = arith.divf %201, %202 : vector<8x64xf32>
    %204 = vector.extract_strided_slice %193 {offsets = [0, 64], sizes = [8, 64], strides = [1, 1]} : vector<8x256xf32> to vector<8x64xf32>
    %205 = arith.negf %204 : vector<8x64xf32>
    %206 = math.exp %205 : vector<8x64xf32>
    %cst_60 = arith.constant 1.000000e+00 : f32
    %207 = vector.broadcast %cst_60 : f32 to vector<8x64xf32>
    %208 = arith.addf %207, %206 : vector<8x64xf32>
    %209 = arith.divf %207, %208 : vector<8x64xf32>
    %210 = vector.extract_strided_slice %193 {offsets = [0, 128], sizes = [8, 64], strides = [1, 1]} : vector<8x256xf32> to vector<8x64xf32>
    %211 = math.tanh %210 : vector<8x64xf32>
    %212 = vector.extract_strided_slice %193 {offsets = [0, 192], sizes = [8, 64], strides = [1, 1]} : vector<8x256xf32> to vector<8x64xf32>
    %213 = arith.negf %212 : vector<8x64xf32>
    %214 = math.exp %213 : vector<8x64xf32>
    %cst_61 = arith.constant 1.000000e+00 : f32
    %215 = vector.broadcast %cst_61 : f32 to vector<8x64xf32>
    %216 = arith.addf %215, %214 : vector<8x64xf32>
    %217 = arith.divf %215, %216 : vector<8x64xf32>
    %218 = arith.mulf %209, %174 : vector<8x64xf32>
    %219 = arith.mulf %203, %211 : vector<8x64xf32>
    %220 = arith.addf %218, %219 : vector<8x64xf32>
    %221 = math.tanh %220 : vector<8x64xf32>
    %222 = arith.mulf %217, %221 : vector<8x64xf32>
    %223 = vector.extract_strided_slice %197 {offsets = [0, 0], sizes = [8, 64], strides = [1, 1]} : vector<8x256xf32> to vector<8x64xf32>
    %224 = arith.negf %223 : vector<8x64xf32>
    %225 = math.exp %224 : vector<8x64xf32>
    %cst_62 = arith.constant 1.000000e+00 : f32
    %226 = vector.broadcast %cst_62 : f32 to vector<8x64xf32>
    %227 = arith.addf %226, %225 : vector<8x64xf32>
    %228 = arith.divf %226, %227 : vector<8x64xf32>
    %229 = vector.extract_strided_slice %197 {offsets = [0, 64], sizes = [8, 64], strides = [1, 1]} : vector<8x256xf32> to vector<8x64xf32>
    %230 = arith.negf %229 : vector<8x64xf32>
    %231 = math.exp %230 : vector<8x64xf32>
    %cst_63 = arith.constant 1.000000e+00 : f32
    %232 = vector.broadcast %cst_63 : f32 to vector<8x64xf32>
    %233 = arith.addf %232, %231 : vector<8x64xf32>
    %234 = arith.divf %232, %233 : vector<8x64xf32>
    %235 = vector.extract_strided_slice %197 {offsets = [0, 128], sizes = [8, 64], strides = [1, 1]} : vector<8x256xf32> to vector<8x64xf32>
    %236 = math.tanh %235 : vector<8x64xf32>
    %237 = vector.extract_strided_slice %197 {offsets = [0, 192], sizes = [8, 64], strides = [1, 1]} : vector<8x256xf32> to vector<8x64xf32>
    %238 = arith.negf %237 : vector<8x64xf32>
    %239 = math.exp %238 : vector<8x64xf32>
    %cst_64 = arith.constant 1.000000e+00 : f32
    %240 = vector.broadcast %cst_64 : f32 to vector<8x64xf32>
    %241 = arith.addf %240, %239 : vector<8x64xf32>
    %242 = arith.divf %240, %241 : vector<8x64xf32>
    %243 = arith.mulf %234, %176 : vector<8x64xf32>
    %244 = arith.mulf %228, %236 : vector<8x64xf32>
    %245 = arith.addf %243, %244 : vector<8x64xf32>
    %246 = math.tanh %245 : vector<8x64xf32>
    %247 = arith.mulf %242, %246 : vector<8x64xf32>
    %248 = arith.index_cast %186 : i32 to index
    %c0_65 = arith.constant 0 : index
    %249 = vector.load %arg1[%248, %c0_65] : memref<64x1xf32, #tpu.memory_space<vmem>>, vector<8x1xf32>
    %250 = vector.shape_cast %249 : vector<8x1xf32> to vector<8x1xf32>
    %251 = vector.broadcast %250 : vector<8x1xf32> to vector<8x64xf32>
    %cst_66 = arith.constant 0.000000e+00 : f32
    %252 = vector.broadcast %cst_66 : f32 to vector<8x64xf32>
    %253 = arith.cmpf ogt, %251, %252 : vector<8x64xf32>
    %254 = arith.index_cast %189 : i32 to index
    %c0_67 = arith.constant 0 : index
    %255 = vector.load %arg1[%254, %c0_67] : memref<64x1xf32, #tpu.memory_space<vmem>>, vector<8x1xf32>
    %256 = vector.shape_cast %255 : vector<8x1xf32> to vector<8x1xf32>
    %257 = vector.broadcast %256 : vector<8x1xf32> to vector<8x64xf32>
    %cst_68 = arith.constant 0.000000e+00 : f32
    %258 = vector.broadcast %cst_68 : f32 to vector<8x64xf32>
    %259 = arith.cmpf ogt, %257, %258 : vector<8x64xf32>
    %260 = arith.select %253, %222, %173 : vector<8x64xi1>, vector<8x64xf32>
    %261 = arith.select %253, %220, %174 : vector<8x64xi1>, vector<8x64xf32>
    %262 = arith.select %259, %247, %175 : vector<8x64xi1>, vector<8x64xf32>
    %263 = arith.select %259, %245, %176 : vector<8x64xi1>, vector<8x64xf32>
    %cst_69 = arith.constant 0.000000e+00 : f32
    %264 = vector.broadcast %cst_69 : f32 to vector<8x64xf32>
    %265 = arith.select %253, %260, %264 : vector<8x64xi1>, vector<8x64xf32>
    %266 = arith.index_cast %186 : i32 to index
    %c0_70 = arith.constant 0 : index
    %267 = vector.load %arg16[%266, %c0_70] : memref<64x128xf32, #tpu.memory_space<vmem>>, vector<8x64xf32>
    tpu.vector_store %arg16[%266, %c0_70], %265 {strides = array<i32>} : memref<64x128xf32, #tpu.memory_space<vmem>>, vector<8x64xf32>,
    %cst_71 = arith.constant 0.000000e+00 : f32
    %268 = vector.broadcast %cst_71 : f32 to vector<8x64xf32>
    %269 = arith.select %259, %262, %268 : vector<8x64xi1>, vector<8x64xf32>
    %270 = arith.index_cast %189 : i32 to index
    %c64_72 = arith.constant 64 : index
    %271 = vector.load %arg16[%270, %c64_72] : memref<64x128xf32, #tpu.memory_space<vmem>>, vector<8x64xf32>
    tpu.vector_store %arg16[%270, %c64_72], %269 {strides = array<i32>} : memref<64x128xf32, #tpu.memory_space<vmem>>, vector<8x64xf32>,
    %c3_i32 = arith.constant 3 : i32
    %c8_i32_73 = arith.constant 8 : i32
    %272 = arith.muli %c3_i32, %c8_i32_73 : i32
    %273 = tpu.assume_multiple %272, 8 : i32
    %c7_i32_74 = arith.constant 7 : i32
    %274 = arith.subi %c7_i32_74, %c3_i32 : i32
    %c8_i32_75 = arith.constant 8 : i32
    %275 = arith.muli %274, %c8_i32_75 : i32
    %276 = tpu.assume_multiple %275, 8 : i32
    %cst_76 = arith.constant dense<0.000000e+00> : vector<8x256xf32>
    %277 = tpu.matmul %260, %0, %cst_76 {dimension_numbers = #tpu.dot_dimension_numbers<[1], [0], [0], [1], [0, 0, 1, 1], [], []>} : vector<8x64xf32>, vector<64x256xf32>, vector<8x256xf32> -> vector<8x256xf32>
    %278 = arith.index_cast %273 : i32 to index
    %c0_77 = arith.constant 0 : index
    %279 = vector.load %arg15[%278, %c0_77] : memref<64x512xf32, #tpu.memory_space<vmem>>, vector<8x256xf32>
    %280 = arith.addf %277, %279 : vector<8x256xf32>
    %cst_78 = arith.constant dense<0.000000e+00> : vector<8x256xf32>
    %281 = tpu.matmul %262, %1, %cst_78 {dimension_numbers = #tpu.dot_dimension_numbers<[1], [0], [0], [1], [0, 0, 1, 1], [], []>} : vector<8x64xf32>, vector<64x256xf32>, vector<8x256xf32> -> vector<8x256xf32>
    %282 = arith.index_cast %276 : i32 to index
    %c256_79 = arith.constant 256 : index
    %283 = vector.load %arg15[%282, %c256_79] : memref<64x512xf32, #tpu.memory_space<vmem>>, vector<8x256xf32>
    %284 = arith.addf %281, %283 : vector<8x256xf32>
    %285 = vector.extract_strided_slice %280 {offsets = [0, 0], sizes = [8, 64], strides = [1, 1]} : vector<8x256xf32> to vector<8x64xf32>
    %286 = arith.negf %285 : vector<8x64xf32>
    %287 = math.exp %286 : vector<8x64xf32>
    %cst_80 = arith.constant 1.000000e+00 : f32
    %288 = vector.broadcast %cst_80 : f32 to vector<8x64xf32>
    %289 = arith.addf %288, %287 : vector<8x64xf32>
    %290 = arith.divf %288, %289 : vector<8x64xf32>
    %291 = vector.extract_strided_slice %280 {offsets = [0, 64], sizes = [8, 64], strides = [1, 1]} : vector<8x256xf32> to vector<8x64xf32>
    %292 = arith.negf %291 : vector<8x64xf32>
    %293 = math.exp %292 : vector<8x64xf32>
    %cst_81 = arith.constant 1.000000e+00 : f32
    %294 = vector.broadcast %cst_81 : f32 to vector<8x64xf32>
    %295 = arith.addf %294, %293 : vector<8x64xf32>
    %296 = arith.divf %294, %295 : vector<8x64xf32>
    %297 = vector.extract_strided_slice %280 {offsets = [0, 128], sizes = [8, 64], strides = [1, 1]} : vector<8x256xf32> to vector<8x64xf32>
    %298 = math.tanh %297 : vector<8x64xf32>
    %299 = vector.extract_strided_slice %280 {offsets = [0, 192], sizes = [8, 64], strides = [1, 1]} : vector<8x256xf32> to vector<8x64xf32>
    %300 = arith.negf %299 : vector<8x64xf32>
    %301 = math.exp %300 : vector<8x64xf32>
    %cst_82 = arith.constant 1.000000e+00 : f32
    %302 = vector.broadcast %cst_82 : f32 to vector<8x64xf32>
    %303 = arith.addf %302, %301 : vector<8x64xf32>
    %304 = arith.divf %302, %303 : vector<8x64xf32>
    %305 = arith.mulf %296, %261 : vector<8x64xf32>
    %306 = arith.mulf %290, %298 : vector<8x64xf32>
    %307 = arith.addf %305, %306 : vector<8x64xf32>
    %308 = math.tanh %307 : vector<8x64xf32>
    %309 = arith.mulf %304, %308 : vector<8x64xf32>
    %310 = vector.extract_strided_slice %284 {offsets = [0, 0], sizes = [8, 64], strides = [1, 1]} : vector<8x256xf32> to vector<8x64xf32>
    %311 = arith.negf %310 : vector<8x64xf32>
    %312 = math.exp %311 : vector<8x64xf32>
    %cst_83 = arith.constant 1.000000e+00 : f32
    %313 = vector.broadcast %cst_83 : f32 to vector<8x64xf32>
    %314 = arith.addf %313, %312 : vector<8x64xf32>
    %315 = arith.divf %313, %314 : vector<8x64xf32>
    %316 = vector.extract_strided_slice %284 {offsets = [0, 64], sizes = [8, 64], strides = [1, 1]} : vector<8x256xf32> to vector<8x64xf32>
    %317 = arith.negf %316 : vector<8x64xf32>
    %318 = math.exp %317 : vector<8x64xf32>
    %cst_84 = arith.constant 1.000000e+00 : f32
    %319 = vector.broadcast %cst_84 : f32 to vector<8x64xf32>
    %320 = arith.addf %319, %318 : vector<8x64xf32>
    %321 = arith.divf %319, %320 : vector<8x64xf32>
    %322 = vector.extract_strided_slice %284 {offsets = [0, 128], sizes = [8, 64], strides = [1, 1]} : vector<8x256xf32> to vector<8x64xf32>
    %323 = math.tanh %322 : vector<8x64xf32>
    %324 = vector.extract_strided_slice %284 {offsets = [0, 192], sizes = [8, 64], strides = [1, 1]} : vector<8x256xf32> to vector<8x64xf32>
    %325 = arith.negf %324 : vector<8x64xf32>
    %326 = math.exp %325 : vector<8x64xf32>
    %cst_85 = arith.constant 1.000000e+00 : f32
    %327 = vector.broadcast %cst_85 : f32 to vector<8x64xf32>
    %328 = arith.addf %327, %326 : vector<8x64xf32>
    %329 = arith.divf %327, %328 : vector<8x64xf32>
    %330 = arith.mulf %321, %263 : vector<8x64xf32>
    %331 = arith.mulf %315, %323 : vector<8x64xf32>
    %332 = arith.addf %330, %331 : vector<8x64xf32>
    %333 = math.tanh %332 : vector<8x64xf32>
    %334 = arith.mulf %329, %333 : vector<8x64xf32>
    %335 = arith.index_cast %273 : i32 to index
    %c0_86 = arith.constant 0 : index
    %336 = vector.load %arg1[%335, %c0_86] : memref<64x1xf32, #tpu.memory_space<vmem>>, vector<8x1xf32>
    %337 = vector.shape_cast %336 : vector<8x1xf32> to vector<8x1xf32>
    %338 = vector.broadcast %337 : vector<8x1xf32> to vector<8x64xf32>
    %cst_87 = arith.constant 0.000000e+00 : f32
    %339 = vector.broadcast %cst_87 : f32 to vector<8x64xf32>
    %340 = arith.cmpf ogt, %338, %339 : vector<8x64xf32>
    %341 = arith.index_cast %276 : i32 to index
    %c0_88 = arith.constant 0 : index
    %342 = vector.load %arg1[%341, %c0_88] : memref<64x1xf32, #tpu.memory_space<vmem>>, vector<8x1xf32>
    %343 = vector.shape_cast %342 : vector<8x1xf32> to vector<8x1xf32>
    %344 = vector.broadcast %343 : vector<8x1xf32> to vector<8x64xf32>
    %cst_89 = arith.constant 0.000000e+00 : f32
    %345 = vector.broadcast %cst_89 : f32 to vector<8x64xf32>
    %346 = arith.cmpf ogt, %344, %345 : vector<8x64xf32>
    %347 = arith.select %340, %309, %260 : vector<8x64xi1>, vector<8x64xf32>
    %348 = arith.select %340, %307, %261 : vector<8x64xi1>, vector<8x64xf32>
    %349 = arith.select %346, %334, %262 : vector<8x64xi1>, vector<8x64xf32>
    %350 = arith.select %346, %332, %263 : vector<8x64xi1>, vector<8x64xf32>
    %cst_90 = arith.constant 0.000000e+00 : f32
    %351 = vector.broadcast %cst_90 : f32 to vector<8x64xf32>
    %352 = arith.select %340, %347, %351 : vector<8x64xi1>, vector<8x64xf32>
    %353 = arith.index_cast %273 : i32 to index
    %c0_91 = arith.constant 0 : index
    %354 = vector.load %arg16[%353, %c0_91] : memref<64x128xf32, #tpu.memory_space<vmem>>, vector<8x64xf32>
    tpu.vector_store %arg16[%353, %c0_91], %352 {strides = array<i32>} : memref<64x128xf32, #tpu.memory_space<vmem>>, vector<8x64xf32>,
    %cst_92 = arith.constant 0.000000e+00 : f32
    %355 = vector.broadcast %cst_92 : f32 to vector<8x64xf32>
    %356 = arith.select %346, %349, %355 : vector<8x64xi1>, vector<8x64xf32>
    %357 = arith.index_cast %276 : i32 to index
    %c64_93 = arith.constant 64 : index
    %358 = vector.load %arg16[%357, %c64_93] : memref<64x128xf32, #tpu.memory_space<vmem>>, vector<8x64xf32>
    tpu.vector_store %arg16[%357, %c64_93], %356 {strides = array<i32>} : memref<64x128xf32, #tpu.memory_space<vmem>>, vector<8x64xf32>,
    %c4_i32 = arith.constant 4 : i32
    %c8_i32_94 = arith.constant 8 : i32
    %359 = arith.muli %c4_i32, %c8_i32_94 : i32
    %360 = tpu.assume_multiple %359, 8 : i32
    %c7_i32_95 = arith.constant 7 : i32
    %361 = arith.subi %c7_i32_95, %c4_i32 : i32
    %c8_i32_96 = arith.constant 8 : i32
    %362 = arith.muli %361, %c8_i32_96 : i32
    %363 = tpu.assume_multiple %362, 8 : i32
    %cst_97 = arith.constant dense<0.000000e+00> : vector<8x256xf32>
    %364 = tpu.matmul %347, %0, %cst_97 {dimension_numbers = #tpu.dot_dimension_numbers<[1], [0], [0], [1], [0, 0, 1, 1], [], []>} : vector<8x64xf32>, vector<64x256xf32>, vector<8x256xf32> -> vector<8x256xf32>
    %365 = arith.index_cast %360 : i32 to index
    %c0_98 = arith.constant 0 : index
    %366 = vector.load %arg15[%365, %c0_98] : memref<64x512xf32, #tpu.memory_space<vmem>>, vector<8x256xf32>
    %367 = arith.addf %364, %366 : vector<8x256xf32>
    %cst_99 = arith.constant dense<0.000000e+00> : vector<8x256xf32>
    %368 = tpu.matmul %349, %1, %cst_99 {dimension_numbers = #tpu.dot_dimension_numbers<[1], [0], [0], [1], [0, 0, 1, 1], [], []>} : vector<8x64xf32>, vector<64x256xf32>, vector<8x256xf32> -> vector<8x256xf32>
    %369 = arith.index_cast %363 : i32 to index
    %c256_100 = arith.constant 256 : index
    %370 = vector.load %arg15[%369, %c256_100] : memref<64x512xf32, #tpu.memory_space<vmem>>, vector<8x256xf32>
    %371 = arith.addf %368, %370 : vector<8x256xf32>
    %372 = vector.extract_strided_slice %367 {offsets = [0, 0], sizes = [8, 64], strides = [1, 1]} : vector<8x256xf32> to vector<8x64xf32>
    %373 = arith.negf %372 : vector<8x64xf32>
    %374 = math.exp %373 : vector<8x64xf32>
    %cst_101 = arith.constant 1.000000e+00 : f32
    %375 = vector.broadcast %cst_101 : f32 to vector<8x64xf32>
    %376 = arith.addf %375, %374 : vector<8x64xf32>
    %377 = arith.divf %375, %376 : vector<8x64xf32>
    %378 = vector.extract_strided_slice %367 {offsets = [0, 64], sizes = [8, 64], strides = [1, 1]} : vector<8x256xf32> to vector<8x64xf32>
    %379 = arith.negf %378 : vector<8x64xf32>
    %380 = math.exp %379 : vector<8x64xf32>
    %cst_102 = arith.constant 1.000000e+00 : f32
    %381 = vector.broadcast %cst_102 : f32 to vector<8x64xf32>
    %382 = arith.addf %381, %380 : vector<8x64xf32>
    %383 = arith.divf %381, %382 : vector<8x64xf32>
    %384 = vector.extract_strided_slice %367 {offsets = [0, 128], sizes = [8, 64], strides = [1, 1]} : vector<8x256xf32> to vector<8x64xf32>
    %385 = math.tanh %384 : vector<8x64xf32>
    %386 = vector.extract_strided_slice %367 {offsets = [0, 192], sizes = [8, 64], strides = [1, 1]} : vector<8x256xf32> to vector<8x64xf32>
    %387 = arith.negf %386 : vector<8x64xf32>
    %388 = math.exp %387 : vector<8x64xf32>
    %cst_103 = arith.constant 1.000000e+00 : f32
    %389 = vector.broadcast %cst_103 : f32 to vector<8x64xf32>
    %390 = arith.addf %389, %388 : vector<8x64xf32>
    %391 = arith.divf %389, %390 : vector<8x64xf32>
    %392 = arith.mulf %383, %348 : vector<8x64xf32>
    %393 = arith.mulf %377, %385 : vector<8x64xf32>
    %394 = arith.addf %392, %393 : vector<8x64xf32>
    %395 = math.tanh %394 : vector<8x64xf32>
    %396 = arith.mulf %391, %395 : vector<8x64xf32>
    %397 = vector.extract_strided_slice %371 {offsets = [0, 0], sizes = [8, 64], strides = [1, 1]} : vector<8x256xf32> to vector<8x64xf32>
    %398 = arith.negf %397 : vector<8x64xf32>
    %399 = math.exp %398 : vector<8x64xf32>
    %cst_104 = arith.constant 1.000000e+00 : f32
    %400 = vector.broadcast %cst_104 : f32 to vector<8x64xf32>
    %401 = arith.addf %400, %399 : vector<8x64xf32>
    %402 = arith.divf %400, %401 : vector<8x64xf32>
    %403 = vector.extract_strided_slice %371 {offsets = [0, 64], sizes = [8, 64], strides = [1, 1]} : vector<8x256xf32> to vector<8x64xf32>
    %404 = arith.negf %403 : vector<8x64xf32>
    %405 = math.exp %404 : vector<8x64xf32>
    %cst_105 = arith.constant 1.000000e+00 : f32
    %406 = vector.broadcast %cst_105 : f32 to vector<8x64xf32>
    %407 = arith.addf %406, %405 : vector<8x64xf32>
    %408 = arith.divf %406, %407 : vector<8x64xf32>
    %409 = vector.extract_strided_slice %371 {offsets = [0, 128], sizes = [8, 64], strides = [1, 1]} : vector<8x256xf32> to vector<8x64xf32>
    %410 = math.tanh %409 : vector<8x64xf32>
    %411 = vector.extract_strided_slice %371 {offsets = [0, 192], sizes = [8, 64], strides = [1, 1]} : vector<8x256xf32> to vector<8x64xf32>
    %412 = arith.negf %411 : vector<8x64xf32>
    %413 = math.exp %412 : vector<8x64xf32>
    %cst_106 = arith.constant 1.000000e+00 : f32
    %414 = vector.broadcast %cst_106 : f32 to vector<8x64xf32>
    %415 = arith.addf %414, %413 : vector<8x64xf32>
    %416 = arith.divf %414, %415 : vector<8x64xf32>
    %417 = arith.mulf %408, %350 : vector<8x64xf32>
    %418 = arith.mulf %402, %410 : vector<8x64xf32>
    %419 = arith.addf %417, %418 : vector<8x64xf32>
    %420 = math.tanh %419 : vector<8x64xf32>
    %421 = arith.mulf %416, %420 : vector<8x64xf32>
    %422 = arith.index_cast %360 : i32 to index
    %c0_107 = arith.constant 0 : index
    %423 = vector.load %arg1[%422, %c0_107] : memref<64x1xf32, #tpu.memory_space<vmem>>, vector<8x1xf32>
    %424 = vector.shape_cast %423 : vector<8x1xf32> to vector<8x1xf32>
    %425 = vector.broadcast %424 : vector<8x1xf32> to vector<8x64xf32>
    %cst_108 = arith.constant 0.000000e+00 : f32
    %426 = vector.broadcast %cst_108 : f32 to vector<8x64xf32>
    %427 = arith.cmpf ogt, %425, %426 : vector<8x64xf32>
    %428 = arith.index_cast %363 : i32 to index
    %c0_109 = arith.constant 0 : index
    %429 = vector.load %arg1[%428, %c0_109] : memref<64x1xf32, #tpu.memory_space<vmem>>, vector<8x1xf32>
    %430 = vector.shape_cast %429 : vector<8x1xf32> to vector<8x1xf32>
    %431 = vector.broadcast %430 : vector<8x1xf32> to vector<8x64xf32>
    %cst_110 = arith.constant 0.000000e+00 : f32
    %432 = vector.broadcast %cst_110 : f32 to vector<8x64xf32>
    %433 = arith.cmpf ogt, %431, %432 : vector<8x64xf32>
    %434 = arith.select %427, %396, %347 : vector<8x64xi1>, vector<8x64xf32>
    %435 = arith.select %427, %394, %348 : vector<8x64xi1>, vector<8x64xf32>
    %436 = arith.select %433, %421, %349 : vector<8x64xi1>, vector<8x64xf32>
    %437 = arith.select %433, %419, %350 : vector<8x64xi1>, vector<8x64xf32>
    %cst_111 = arith.constant 0.000000e+00 : f32
    %438 = vector.broadcast %cst_111 : f32 to vector<8x64xf32>
    %439 = arith.select %427, %434, %438 : vector<8x64xi1>, vector<8x64xf32>
    %440 = arith.index_cast %360 : i32 to index
    %c0_112 = arith.constant 0 : index
    %441 = vector.load %arg16[%440, %c0_112] : memref<64x128xf32, #tpu.memory_space<vmem>>, vector<8x64xf32>
    tpu.vector_store %arg16[%440, %c0_112], %439 {strides = array<i32>} : memref<64x128xf32, #tpu.memory_space<vmem>>, vector<8x64xf32>,
    %cst_113 = arith.constant 0.000000e+00 : f32
    %442 = vector.broadcast %cst_113 : f32 to vector<8x64xf32>
    %443 = arith.select %433, %436, %442 : vector<8x64xi1>, vector<8x64xf32>
    %444 = arith.index_cast %363 : i32 to index
    %c64_114 = arith.constant 64 : index
    %445 = vector.load %arg16[%444, %c64_114] : memref<64x128xf32, #tpu.memory_space<vmem>>, vector<8x64xf32>
    tpu.vector_store %arg16[%444, %c64_114], %443 {strides = array<i32>} : memref<64x128xf32, #tpu.memory_space<vmem>>, vector<8x64xf32>,
    %c5_i32 = arith.constant 5 : i32
    %c8_i32_115 = arith.constant 8 : i32
    %446 = arith.muli %c5_i32, %c8_i32_115 : i32
    %447 = tpu.assume_multiple %446, 8 : i32
    %c7_i32_116 = arith.constant 7 : i32
    %448 = arith.subi %c7_i32_116, %c5_i32 : i32
    %c8_i32_117 = arith.constant 8 : i32
    %449 = arith.muli %448, %c8_i32_117 : i32
    %450 = tpu.assume_multiple %449, 8 : i32
    %cst_118 = arith.constant dense<0.000000e+00> : vector<8x256xf32>
    %451 = tpu.matmul %434, %0, %cst_118 {dimension_numbers = #tpu.dot_dimension_numbers<[1], [0], [0], [1], [0, 0, 1, 1], [], []>} : vector<8x64xf32>, vector<64x256xf32>, vector<8x256xf32> -> vector<8x256xf32>
    %452 = arith.index_cast %447 : i32 to index
    %c0_119 = arith.constant 0 : index
    %453 = vector.load %arg15[%452, %c0_119] : memref<64x512xf32, #tpu.memory_space<vmem>>, vector<8x256xf32>
    %454 = arith.addf %451, %453 : vector<8x256xf32>
    %cst_120 = arith.constant dense<0.000000e+00> : vector<8x256xf32>
    %455 = tpu.matmul %436, %1, %cst_120 {dimension_numbers = #tpu.dot_dimension_numbers<[1], [0], [0], [1], [0, 0, 1, 1], [], []>} : vector<8x64xf32>, vector<64x256xf32>, vector<8x256xf32> -> vector<8x256xf32>
    %456 = arith.index_cast %450 : i32 to index
    %c256_121 = arith.constant 256 : index
    %457 = vector.load %arg15[%456, %c256_121] : memref<64x512xf32, #tpu.memory_space<vmem>>, vector<8x256xf32>
    %458 = arith.addf %455, %457 : vector<8x256xf32>
    %459 = vector.extract_strided_slice %454 {offsets = [0, 0], sizes = [8, 64], strides = [1, 1]} : vector<8x256xf32> to vector<8x64xf32>
    %460 = arith.negf %459 : vector<8x64xf32>
    %461 = math.exp %460 : vector<8x64xf32>
    %cst_122 = arith.constant 1.000000e+00 : f32
    %462 = vector.broadcast %cst_122 : f32 to vector<8x64xf32>
    %463 = arith.addf %462, %461 : vector<8x64xf32>
    %464 = arith.divf %462, %463 : vector<8x64xf32>
    %465 = vector.extract_strided_slice %454 {offsets = [0, 64], sizes = [8, 64], strides = [1, 1]} : vector<8x256xf32> to vector<8x64xf32>
    %466 = arith.negf %465 : vector<8x64xf32>
    %467 = math.exp %466 : vector<8x64xf32>
    %cst_123 = arith.constant 1.000000e+00 : f32
    %468 = vector.broadcast %cst_123 : f32 to vector<8x64xf32>
    %469 = arith.addf %468, %467 : vector<8x64xf32>
    %470 = arith.divf %468, %469 : vector<8x64xf32>
    %471 = vector.extract_strided_slice %454 {offsets = [0, 128], sizes = [8, 64], strides = [1, 1]} : vector<8x256xf32> to vector<8x64xf32>
    %472 = math.tanh %471 : vector<8x64xf32>
    %473 = vector.extract_strided_slice %454 {offsets = [0, 192], sizes = [8, 64], strides = [1, 1]} : vector<8x256xf32> to vector<8x64xf32>
    %474 = arith.negf %473 : vector<8x64xf32>
    %475 = math.exp %474 : vector<8x64xf32>
    %cst_124 = arith.constant 1.000000e+00 : f32
    %476 = vector.broadcast %cst_124 : f32 to vector<8x64xf32>
    %477 = arith.addf %476, %475 : vector<8x64xf32>
    %478 = arith.divf %476, %477 : vector<8x64xf32>
    %479 = arith.mulf %470, %435 : vector<8x64xf32>
    %480 = arith.mulf %464, %472 : vector<8x64xf32>
    %481 = arith.addf %479, %480 : vector<8x64xf32>
    %482 = math.tanh %481 : vector<8x64xf32>
    %483 = arith.mulf %478, %482 : vector<8x64xf32>
    %484 = vector.extract_strided_slice %458 {offsets = [0, 0], sizes = [8, 64], strides = [1, 1]} : vector<8x256xf32> to vector<8x64xf32>
    %485 = arith.negf %484 : vector<8x64xf32>
    %486 = math.exp %485 : vector<8x64xf32>
    %cst_125 = arith.constant 1.000000e+00 : f32
    %487 = vector.broadcast %cst_125 : f32 to vector<8x64xf32>
    %488 = arith.addf %487, %486 : vector<8x64xf32>
    %489 = arith.divf %487, %488 : vector<8x64xf32>
    %490 = vector.extract_strided_slice %458 {offsets = [0, 64], sizes = [8, 64], strides = [1, 1]} : vector<8x256xf32> to vector<8x64xf32>
    %491 = arith.negf %490 : vector<8x64xf32>
    %492 = math.exp %491 : vector<8x64xf32>
    %cst_126 = arith.constant 1.000000e+00 : f32
    %493 = vector.broadcast %cst_126 : f32 to vector<8x64xf32>
    %494 = arith.addf %493, %492 : vector<8x64xf32>
    %495 = arith.divf %493, %494 : vector<8x64xf32>
    %496 = vector.extract_strided_slice %458 {offsets = [0, 128], sizes = [8, 64], strides = [1, 1]} : vector<8x256xf32> to vector<8x64xf32>
    %497 = math.tanh %496 : vector<8x64xf32>
    %498 = vector.extract_strided_slice %458 {offsets = [0, 192], sizes = [8, 64], strides = [1, 1]} : vector<8x256xf32> to vector<8x64xf32>
    %499 = arith.negf %498 : vector<8x64xf32>
    %500 = math.exp %499 : vector<8x64xf32>
    %cst_127 = arith.constant 1.000000e+00 : f32
    %501 = vector.broadcast %cst_127 : f32 to vector<8x64xf32>
    %502 = arith.addf %501, %500 : vector<8x64xf32>
    %503 = arith.divf %501, %502 : vector<8x64xf32>
    %504 = arith.mulf %495, %437 : vector<8x64xf32>
    %505 = arith.mulf %489, %497 : vector<8x64xf32>
    %506 = arith.addf %504, %505 : vector<8x64xf32>
    %507 = math.tanh %506 : vector<8x64xf32>
    %508 = arith.mulf %503, %507 : vector<8x64xf32>
    %509 = arith.index_cast %447 : i32 to index
    %c0_128 = arith.constant 0 : index
    %510 = vector.load %arg1[%509, %c0_128] : memref<64x1xf32, #tpu.memory_space<vmem>>, vector<8x1xf32>
    %511 = vector.shape_cast %510 : vector<8x1xf32> to vector<8x1xf32>
    %512 = vector.broadcast %511 : vector<8x1xf32> to vector<8x64xf32>
    %cst_129 = arith.constant 0.000000e+00 : f32
    %513 = vector.broadcast %cst_129 : f32 to vector<8x64xf32>
    %514 = arith.cmpf ogt, %512, %513 : vector<8x64xf32>
    %515 = arith.index_cast %450 : i32 to index
    %c0_130 = arith.constant 0 : index
    %516 = vector.load %arg1[%515, %c0_130] : memref<64x1xf32, #tpu.memory_space<vmem>>, vector<8x1xf32>
    %517 = vector.shape_cast %516 : vector<8x1xf32> to vector<8x1xf32>
    %518 = vector.broadcast %517 : vector<8x1xf32> to vector<8x64xf32>
    %cst_131 = arith.constant 0.000000e+00 : f32
    %519 = vector.broadcast %cst_131 : f32 to vector<8x64xf32>
    %520 = arith.cmpf ogt, %518, %519 : vector<8x64xf32>
    %521 = arith.select %514, %483, %434 : vector<8x64xi1>, vector<8x64xf32>
    %522 = arith.select %514, %481, %435 : vector<8x64xi1>, vector<8x64xf32>
    %523 = arith.select %520, %508, %436 : vector<8x64xi1>, vector<8x64xf32>
    %524 = arith.select %520, %506, %437 : vector<8x64xi1>, vector<8x64xf32>
    %cst_132 = arith.constant 0.000000e+00 : f32
    %525 = vector.broadcast %cst_132 : f32 to vector<8x64xf32>
    %526 = arith.select %514, %521, %525 : vector<8x64xi1>, vector<8x64xf32>
    %527 = arith.index_cast %447 : i32 to index
    %c0_133 = arith.constant 0 : index
    %528 = vector.load %arg16[%527, %c0_133] : memref<64x128xf32, #tpu.memory_space<vmem>>, vector<8x64xf32>
    tpu.vector_store %arg16[%527, %c0_133], %526 {strides = array<i32>} : memref<64x128xf32, #tpu.memory_space<vmem>>, vector<8x64xf32>,
    %cst_134 = arith.constant 0.000000e+00 : f32
    %529 = vector.broadcast %cst_134 : f32 to vector<8x64xf32>
    %530 = arith.select %520, %523, %529 : vector<8x64xi1>, vector<8x64xf32>
    %531 = arith.index_cast %450 : i32 to index
    %c64_135 = arith.constant 64 : index
    %532 = vector.load %arg16[%531, %c64_135] : memref<64x128xf32, #tpu.memory_space<vmem>>, vector<8x64xf32>
    tpu.vector_store %arg16[%531, %c64_135], %530 {strides = array<i32>} : memref<64x128xf32, #tpu.memory_space<vmem>>, vector<8x64xf32>,
    %c6_i32 = arith.constant 6 : i32
    %c8_i32_136 = arith.constant 8 : i32
    %533 = arith.muli %c6_i32, %c8_i32_136 : i32
    %534 = tpu.assume_multiple %533, 8 : i32
    %c7_i32_137 = arith.constant 7 : i32
    %535 = arith.subi %c7_i32_137, %c6_i32 : i32
    %c8_i32_138 = arith.constant 8 : i32
    %536 = arith.muli %535, %c8_i32_138 : i32
    %537 = tpu.assume_multiple %536, 8 : i32
    %cst_139 = arith.constant dense<0.000000e+00> : vector<8x256xf32>
    %538 = tpu.matmul %521, %0, %cst_139 {dimension_numbers = #tpu.dot_dimension_numbers<[1], [0], [0], [1], [0, 0, 1, 1], [], []>} : vector<8x64xf32>, vector<64x256xf32>, vector<8x256xf32> -> vector<8x256xf32>
    %539 = arith.index_cast %534 : i32 to index
    %c0_140 = arith.constant 0 : index
    %540 = vector.load %arg15[%539, %c0_140] : memref<64x512xf32, #tpu.memory_space<vmem>>, vector<8x256xf32>
    %541 = arith.addf %538, %540 : vector<8x256xf32>
    %cst_141 = arith.constant dense<0.000000e+00> : vector<8x256xf32>
    %542 = tpu.matmul %523, %1, %cst_141 {dimension_numbers = #tpu.dot_dimension_numbers<[1], [0], [0], [1], [0, 0, 1, 1], [], []>} : vector<8x64xf32>, vector<64x256xf32>, vector<8x256xf32> -> vector<8x256xf32>
    %543 = arith.index_cast %537 : i32 to index
    %c256_142 = arith.constant 256 : index
    %544 = vector.load %arg15[%543, %c256_142] : memref<64x512xf32, #tpu.memory_space<vmem>>, vector<8x256xf32>
    %545 = arith.addf %542, %544 : vector<8x256xf32>
    %546 = vector.extract_strided_slice %541 {offsets = [0, 0], sizes = [8, 64], strides = [1, 1]} : vector<8x256xf32> to vector<8x64xf32>
    %547 = arith.negf %546 : vector<8x64xf32>
    %548 = math.exp %547 : vector<8x64xf32>
    %cst_143 = arith.constant 1.000000e+00 : f32
    %549 = vector.broadcast %cst_143 : f32 to vector<8x64xf32>
    %550 = arith.addf %549, %548 : vector<8x64xf32>
    %551 = arith.divf %549, %550 : vector<8x64xf32>
    %552 = vector.extract_strided_slice %541 {offsets = [0, 64], sizes = [8, 64], strides = [1, 1]} : vector<8x256xf32> to vector<8x64xf32>
    %553 = arith.negf %552 : vector<8x64xf32>
    %554 = math.exp %553 : vector<8x64xf32>
    %cst_144 = arith.constant 1.000000e+00 : f32
    %555 = vector.broadcast %cst_144 : f32 to vector<8x64xf32>
    %556 = arith.addf %555, %554 : vector<8x64xf32>
    %557 = arith.divf %555, %556 : vector<8x64xf32>
    %558 = vector.extract_strided_slice %541 {offsets = [0, 128], sizes = [8, 64], strides = [1, 1]} : vector<8x256xf32> to vector<8x64xf32>
    %559 = math.tanh %558 : vector<8x64xf32>
    %560 = vector.extract_strided_slice %541 {offsets = [0, 192], sizes = [8, 64], strides = [1, 1]} : vector<8x256xf32> to vector<8x64xf32>
    %561 = arith.negf %560 : vector<8x64xf32>
    %562 = math.exp %561 : vector<8x64xf32>
    %cst_145 = arith.constant 1.000000e+00 : f32
    %563 = vector.broadcast %cst_145 : f32 to vector<8x64xf32>
    %564 = arith.addf %563, %562 : vector<8x64xf32>
    %565 = arith.divf %563, %564 : vector<8x64xf32>
    %566 = arith.mulf %557, %522 : vector<8x64xf32>
    %567 = arith.mulf %551, %559 : vector<8x64xf32>
    %568 = arith.addf %566, %567 : vector<8x64xf32>
    %569 = math.tanh %568 : vector<8x64xf32>
    %570 = arith.mulf %565, %569 : vector<8x64xf32>
    %571 = vector.extract_strided_slice %545 {offsets = [0, 0], sizes = [8, 64], strides = [1, 1]} : vector<8x256xf32> to vector<8x64xf32>
    %572 = arith.negf %571 : vector<8x64xf32>
    %573 = math.exp %572 : vector<8x64xf32>
    %cst_146 = arith.constant 1.000000e+00 : f32
    %574 = vector.broadcast %cst_146 : f32 to vector<8x64xf32>
    %575 = arith.addf %574, %573 : vector<8x64xf32>
    %576 = arith.divf %574, %575 : vector<8x64xf32>
    %577 = vector.extract_strided_slice %545 {offsets = [0, 64], sizes = [8, 64], strides = [1, 1]} : vector<8x256xf32> to vector<8x64xf32>
    %578 = arith.negf %577 : vector<8x64xf32>
    %579 = math.exp %578 : vector<8x64xf32>
    %cst_147 = arith.constant 1.000000e+00 : f32
    %580 = vector.broadcast %cst_147 : f32 to vector<8x64xf32>
    %581 = arith.addf %580, %579 : vector<8x64xf32>
    %582 = arith.divf %580, %581 : vector<8x64xf32>
    %583 = vector.extract_strided_slice %545 {offsets = [0, 128], sizes = [8, 64], strides = [1, 1]} : vector<8x256xf32> to vector<8x64xf32>
    %584 = math.tanh %583 : vector<8x64xf32>
    %585 = vector.extract_strided_slice %545 {offsets = [0, 192], sizes = [8, 64], strides = [1, 1]} : vector<8x256xf32> to vector<8x64xf32>
    %586 = arith.negf %585 : vector<8x64xf32>
    %587 = math.exp %586 : vector<8x64xf32>
    %cst_148 = arith.constant 1.000000e+00 : f32
    %588 = vector.broadcast %cst_148 : f32 to vector<8x64xf32>
    %589 = arith.addf %588, %587 : vector<8x64xf32>
    %590 = arith.divf %588, %589 : vector<8x64xf32>
    %591 = arith.mulf %582, %524 : vector<8x64xf32>
    %592 = arith.mulf %576, %584 : vector<8x64xf32>
    %593 = arith.addf %591, %592 : vector<8x64xf32>
    %594 = math.tanh %593 : vector<8x64xf32>
    %595 = arith.mulf %590, %594 : vector<8x64xf32>
    %596 = arith.index_cast %534 : i32 to index
    %c0_149 = arith.constant 0 : index
    %597 = vector.load %arg1[%596, %c0_149] : memref<64x1xf32, #tpu.memory_space<vmem>>, vector<8x1xf32>
    %598 = vector.shape_cast %597 : vector<8x1xf32> to vector<8x1xf32>
    %599 = vector.broadcast %598 : vector<8x1xf32> to vector<8x64xf32>
    %cst_150 = arith.constant 0.000000e+00 : f32
    %600 = vector.broadcast %cst_150 : f32 to vector<8x64xf32>
    %601 = arith.cmpf ogt, %599, %600 : vector<8x64xf32>
    %602 = arith.index_cast %537 : i32 to index
    %c0_151 = arith.constant 0 : index
    %603 = vector.load %arg1[%602, %c0_151] : memref<64x1xf32, #tpu.memory_space<vmem>>, vector<8x1xf32>
    %604 = vector.shape_cast %603 : vector<8x1xf32> to vector<8x1xf32>
    %605 = vector.broadcast %604 : vector<8x1xf32> to vector<8x64xf32>
    %cst_152 = arith.constant 0.000000e+00 : f32
    %606 = vector.broadcast %cst_152 : f32 to vector<8x64xf32>
    %607 = arith.cmpf ogt, %605, %606 : vector<8x64xf32>
    %608 = arith.select %601, %570, %521 : vector<8x64xi1>, vector<8x64xf32>
    %609 = arith.select %601, %568, %522 : vector<8x64xi1>, vector<8x64xf32>
    %610 = arith.select %607, %595, %523 : vector<8x64xi1>, vector<8x64xf32>
    %611 = arith.select %607, %593, %524 : vector<8x64xi1>, vector<8x64xf32>
    %cst_153 = arith.constant 0.000000e+00 : f32
    %612 = vector.broadcast %cst_153 : f32 to vector<8x64xf32>
    %613 = arith.select %601, %608, %612 : vector<8x64xi1>, vector<8x64xf32>
    %614 = arith.index_cast %534 : i32 to index
    %c0_154 = arith.constant 0 : index
    %615 = vector.load %arg16[%614, %c0_154] : memref<64x128xf32, #tpu.memory_space<vmem>>, vector<8x64xf32>
    tpu.vector_store %arg16[%614, %c0_154], %613 {strides = array<i32>} : memref<64x128xf32, #tpu.memory_space<vmem>>, vector<8x64xf32>,
    %cst_155 = arith.constant 0.000000e+00 : f32
    %616 = vector.broadcast %cst_155 : f32 to vector<8x64xf32>
    %617 = arith.select %607, %610, %616 : vector<8x64xi1>, vector<8x64xf32>
    %618 = arith.index_cast %537 : i32 to index
    %c64_156 = arith.constant 64 : index
    %619 = vector.load %arg16[%618, %c64_156] : memref<64x128xf32, #tpu.memory_space<vmem>>, vector<8x64xf32>
    tpu.vector_store %arg16[%618, %c64_156], %617 {strides = array<i32>} : memref<64x128xf32, #tpu.memory_space<vmem>>, vector<8x64xf32>,
    %c7_i32_157 = arith.constant 7 : i32
    %c8_i32_158 = arith.constant 8 : i32
    %620 = arith.muli %c7_i32_157, %c8_i32_158 : i32
    %621 = tpu.assume_multiple %620, 8 : i32
    %c7_i32_159 = arith.constant 7 : i32
    %622 = arith.subi %c7_i32_159, %c7_i32_157 : i32
    %c8_i32_160 = arith.constant 8 : i32
    %623 = arith.muli %622, %c8_i32_160 : i32
    %624 = tpu.assume_multiple %623, 8 : i32
    %cst_161 = arith.constant dense<0.000000e+00> : vector<8x256xf32>
    %625 = tpu.matmul %608, %0, %cst_161 {dimension_numbers = #tpu.dot_dimension_numbers<[1], [0], [0], [1], [0, 0, 1, 1], [], []>} : vector<8x64xf32>, vector<64x256xf32>, vector<8x256xf32> -> vector<8x256xf32>
    %626 = arith.index_cast %621 : i32 to index
    %c0_162 = arith.constant 0 : index
    %627 = vector.load %arg15[%626, %c0_162] : memref<64x512xf32, #tpu.memory_space<vmem>>, vector<8x256xf32>
    %628 = arith.addf %625, %627 : vector<8x256xf32>
    %cst_163 = arith.constant dense<0.000000e+00> : vector<8x256xf32>
    %629 = tpu.matmul %610, %1, %cst_163 {dimension_numbers = #tpu.dot_dimension_numbers<[1], [0], [0], [1], [0, 0, 1, 1], [], []>} : vector<8x64xf32>, vector<64x256xf32>, vector<8x256xf32> -> vector<8x256xf32>
    %630 = arith.index_cast %624 : i32 to index
    %c256_164 = arith.constant 256 : index
    %631 = vector.load %arg15[%630, %c256_164] : memref<64x512xf32, #tpu.memory_space<vmem>>, vector<8x256xf32>
    %632 = arith.addf %629, %631 : vector<8x256xf32>
    %633 = vector.extract_strided_slice %628 {offsets = [0, 0], sizes = [8, 64], strides = [1, 1]} : vector<8x256xf32> to vector<8x64xf32>
    %634 = arith.negf %633 : vector<8x64xf32>
    %635 = math.exp %634 : vector<8x64xf32>
    %cst_165 = arith.constant 1.000000e+00 : f32
    %636 = vector.broadcast %cst_165 : f32 to vector<8x64xf32>
    %637 = arith.addf %636, %635 : vector<8x64xf32>
    %638 = arith.divf %636, %637 : vector<8x64xf32>
    %639 = vector.extract_strided_slice %628 {offsets = [0, 64], sizes = [8, 64], strides = [1, 1]} : vector<8x256xf32> to vector<8x64xf32>
    %640 = arith.negf %639 : vector<8x64xf32>
    %641 = math.exp %640 : vector<8x64xf32>
    %cst_166 = arith.constant 1.000000e+00 : f32
    %642 = vector.broadcast %cst_166 : f32 to vector<8x64xf32>
    %643 = arith.addf %642, %641 : vector<8x64xf32>
    %644 = arith.divf %642, %643 : vector<8x64xf32>
    %645 = vector.extract_strided_slice %628 {offsets = [0, 128], sizes = [8, 64], strides = [1, 1]} : vector<8x256xf32> to vector<8x64xf32>
    %646 = math.tanh %645 : vector<8x64xf32>
    %647 = vector.extract_strided_slice %628 {offsets = [0, 192], sizes = [8, 64], strides = [1, 1]} : vector<8x256xf32> to vector<8x64xf32>
    %648 = arith.negf %647 : vector<8x64xf32>
    %649 = math.exp %648 : vector<8x64xf32>
    %cst_167 = arith.constant 1.000000e+00 : f32
    %650 = vector.broadcast %cst_167 : f32 to vector<8x64xf32>
    %651 = arith.addf %650, %649 : vector<8x64xf32>
    %652 = arith.divf %650, %651 : vector<8x64xf32>
    %653 = arith.mulf %644, %609 : vector<8x64xf32>
    %654 = arith.mulf %638, %646 : vector<8x64xf32>
    %655 = arith.addf %653, %654 : vector<8x64xf32>
    %656 = math.tanh %655 : vector<8x64xf32>
    %657 = arith.mulf %652, %656 : vector<8x64xf32>
    %658 = vector.extract_strided_slice %632 {offsets = [0, 0], sizes = [8, 64], strides = [1, 1]} : vector<8x256xf32> to vector<8x64xf32>
    %659 = arith.negf %658 : vector<8x64xf32>
    %660 = math.exp %659 : vector<8x64xf32>
    %cst_168 = arith.constant 1.000000e+00 : f32
    %661 = vector.broadcast %cst_168 : f32 to vector<8x64xf32>
    %662 = arith.addf %661, %660 : vector<8x64xf32>
    %663 = arith.divf %661, %662 : vector<8x64xf32>
    %664 = vector.extract_strided_slice %632 {offsets = [0, 64], sizes = [8, 64], strides = [1, 1]} : vector<8x256xf32> to vector<8x64xf32>
    %665 = arith.negf %664 : vector<8x64xf32>
    %666 = math.exp %665 : vector<8x64xf32>
    %cst_169 = arith.constant 1.000000e+00 : f32
    %667 = vector.broadcast %cst_169 : f32 to vector<8x64xf32>
    %668 = arith.addf %667, %666 : vector<8x64xf32>
    %669 = arith.divf %667, %668 : vector<8x64xf32>
    %670 = vector.extract_strided_slice %632 {offsets = [0, 128], sizes = [8, 64], strides = [1, 1]} : vector<8x256xf32> to vector<8x64xf32>
    %671 = math.tanh %670 : vector<8x64xf32>
    %672 = vector.extract_strided_slice %632 {offsets = [0, 192], sizes = [8, 64], strides = [1, 1]} : vector<8x256xf32> to vector<8x64xf32>
    %673 = arith.negf %672 : vector<8x64xf32>
    %674 = math.exp %673 : vector<8x64xf32>
    %cst_170 = arith.constant 1.000000e+00 : f32
    %675 = vector.broadcast %cst_170 : f32 to vector<8x64xf32>
    %676 = arith.addf %675, %674 : vector<8x64xf32>
    %677 = arith.divf %675, %676 : vector<8x64xf32>
    %678 = arith.mulf %669, %611 : vector<8x64xf32>
    %679 = arith.mulf %663, %671 : vector<8x64xf32>
    %680 = arith.addf %678, %679 : vector<8x64xf32>
    %681 = math.tanh %680 : vector<8x64xf32>
    %682 = arith.mulf %677, %681 : vector<8x64xf32>
    %683 = arith.index_cast %621 : i32 to index
    %c0_171 = arith.constant 0 : index
    %684 = vector.load %arg1[%683, %c0_171] : memref<64x1xf32, #tpu.memory_space<vmem>>, vector<8x1xf32>
    %685 = vector.shape_cast %684 : vector<8x1xf32> to vector<8x1xf32>
    %686 = vector.broadcast %685 : vector<8x1xf32> to vector<8x64xf32>
    %cst_172 = arith.constant 0.000000e+00 : f32
    %687 = vector.broadcast %cst_172 : f32 to vector<8x64xf32>
    %688 = arith.cmpf ogt, %686, %687 : vector<8x64xf32>
    %689 = arith.index_cast %624 : i32 to index
    %c0_173 = arith.constant 0 : index
    %690 = vector.load %arg1[%689, %c0_173] : memref<64x1xf32, #tpu.memory_space<vmem>>, vector<8x1xf32>
    %691 = vector.shape_cast %690 : vector<8x1xf32> to vector<8x1xf32>
    %692 = vector.broadcast %691 : vector<8x1xf32> to vector<8x64xf32>
    %cst_174 = arith.constant 0.000000e+00 : f32
    %693 = vector.broadcast %cst_174 : f32 to vector<8x64xf32>
    %694 = arith.cmpf ogt, %692, %693 : vector<8x64xf32>
    %695 = arith.select %688, %657, %608 : vector<8x64xi1>, vector<8x64xf32>
    %696 = arith.select %688, %655, %609 : vector<8x64xi1>, vector<8x64xf32>
    %697 = arith.select %694, %682, %610 : vector<8x64xi1>, vector<8x64xf32>
    %698 = arith.select %694, %680, %611 : vector<8x64xi1>, vector<8x64xf32>
    %cst_175 = arith.constant 0.000000e+00 : f32
    %699 = vector.broadcast %cst_175 : f32 to vector<8x64xf32>
    %700 = arith.select %688, %695, %699 : vector<8x64xi1>, vector<8x64xf32>
    %701 = arith.index_cast %621 : i32 to index
    %c0_176 = arith.constant 0 : index
    %702 = vector.load %arg16[%701, %c0_176] : memref<64x128xf32, #tpu.memory_space<vmem>>, vector<8x64xf32>
    tpu.vector_store %arg16[%701, %c0_176], %700 {strides = array<i32>} : memref<64x128xf32, #tpu.memory_space<vmem>>, vector<8x64xf32>,
    %cst_177 = arith.constant 0.000000e+00 : f32
    %703 = vector.broadcast %cst_177 : f32 to vector<8x64xf32>
    %704 = arith.select %694, %697, %703 : vector<8x64xi1>, vector<8x64xf32>
    %705 = arith.index_cast %624 : i32 to index
    %c64_178 = arith.constant 64 : index
    %706 = vector.load %arg16[%705, %c64_178] : memref<64x128xf32, #tpu.memory_space<vmem>>, vector<8x64xf32>
    tpu.vector_store %arg16[%705, %c64_178], %704 {strides = array<i32>} : memref<64x128xf32, #tpu.memory_space<vmem>>, vector<8x64xf32>,
    %c8_i32_179 = arith.constant 8 : i32
    %c0_180 = arith.constant 0 : index
    %c0_181 = arith.constant 0 : index
    %707 = vector.load %arg16[%c0_180, %c0_181] : memref<64x128xf32, #tpu.memory_space<vmem>>, vector<64x128xf32>
    %c0_182 = arith.constant 0 : index
    %c0_183 = arith.constant 0 : index
    %708 = vector.load %arg6[%c0_182, %c0_183] : memref<128x256xf32, #tpu.memory_space<vmem>>, vector<128x256xf32>
    %cst_184 = arith.constant dense<0.000000e+00> : vector<64x256xf32>
    %709 = tpu.matmul %707, %708, %cst_184 {dimension_numbers = #tpu.dot_dimension_numbers<[1], [0], [0], [1], [0, 0, 1, 1], [], []>} : vector<64x128xf32>, vector<128x256xf32>, vector<64x256xf32> -> vector<64x256xf32>
    %c0_185 = arith.constant 0 : index
    %c0_186 = arith.constant 0 : index
    %710 = vector.load %arg7[%c0_185, %c0_186] : memref<1x256xf32, #tpu.memory_space<vmem>>, vector<1x256xf32>
    %711 = vector.broadcast %710 : vector<1x256xf32> to vector<64x256xf32>
    %712 = arith.addf %709, %711 : vector<64x256xf32>
    %c0_187 = arith.constant 0 : index
    %c0_188 = arith.constant 0 : index
    %713 = vector.load %arg17[%c0_187, %c0_188] : memref<64x256xf32, #tpu.memory_space<vmem>>, vector<64x256xf32>
    tpu.vector_store %arg17[%c0_187, %c0_188], %712 {strides = array<i32>} : memref<64x256xf32, #tpu.memory_space<vmem>>, vector<64x256xf32>,
    %c0_i32_189 = arith.constant 0 : i32
    %c8_i32_190 = arith.constant 8 : i32
    %714 = arith.muli %c0_i32_189, %c8_i32_190 : i32
    %715 = tpu.assume_multiple %714, 8 : i32
    %cst_191 = arith.constant dense<0.000000e+00> : vector<8x256xf32>
    %716 = tpu.matmul %10, %2, %cst_191 {dimension_numbers = #tpu.dot_dimension_numbers<[1], [0], [0], [1], [0, 0, 1, 1], [], []>} : vector<8x64xf32>, vector<64x256xf32>, vector<8x256xf32> -> vector<8x256xf32>
    %717 = arith.index_cast %715 : i32 to index
    %c0_192 = arith.constant 0 : index
    %718 = vector.load %arg17[%717, %c0_192] : memref<64x256xf32, #tpu.memory_space<vmem>>, vector<8x256xf32>
    %719 = arith.addf %716, %718 : vector<8x256xf32>
    %720 = vector.extract_strided_slice %719 {offsets = [0, 0], sizes = [8, 64], strides = [1, 1]} : vector<8x256xf32> to vector<8x64xf32>
    %721 = arith.negf %720 : vector<8x64xf32>
    %722 = math.exp %721 : vector<8x64xf32>
    %cst_193 = arith.constant 1.000000e+00 : f32
    %723 = vector.broadcast %cst_193 : f32 to vector<8x64xf32>
    %724 = arith.addf %723, %722 : vector<8x64xf32>
    %725 = arith.divf %723, %724 : vector<8x64xf32>
    %726 = vector.extract_strided_slice %719 {offsets = [0, 64], sizes = [8, 64], strides = [1, 1]} : vector<8x256xf32> to vector<8x64xf32>
    %727 = arith.negf %726 : vector<8x64xf32>
    %728 = math.exp %727 : vector<8x64xf32>
    %cst_194 = arith.constant 1.000000e+00 : f32
    %729 = vector.broadcast %cst_194 : f32 to vector<8x64xf32>
    %730 = arith.addf %729, %728 : vector<8x64xf32>
    %731 = arith.divf %729, %730 : vector<8x64xf32>
    %732 = vector.extract_strided_slice %719 {offsets = [0, 128], sizes = [8, 64], strides = [1, 1]} : vector<8x256xf32> to vector<8x64xf32>
    %733 = math.tanh %732 : vector<8x64xf32>
    %734 = vector.extract_strided_slice %719 {offsets = [0, 192], sizes = [8, 64], strides = [1, 1]} : vector<8x256xf32> to vector<8x64xf32>
    %735 = arith.negf %734 : vector<8x64xf32>
    %736 = math.exp %735 : vector<8x64xf32>
    %cst_195 = arith.constant 1.000000e+00 : f32
    %737 = vector.broadcast %cst_195 : f32 to vector<8x64xf32>
    %738 = arith.addf %737, %736 : vector<8x64xf32>
    %739 = arith.divf %737, %738 : vector<8x64xf32>
    %740 = arith.mulf %731, %10 : vector<8x64xf32>
    %741 = arith.mulf %725, %733 : vector<8x64xf32>
    %742 = arith.addf %740, %741 : vector<8x64xf32>
    %743 = math.tanh %742 : vector<8x64xf32>
    %744 = arith.mulf %739, %743 : vector<8x64xf32>
    %745 = arith.index_cast %715 : i32 to index
    %c0_196 = arith.constant 0 : index
    %746 = vector.load %arg1[%745, %c0_196] : memref<64x1xf32, #tpu.memory_space<vmem>>, vector<8x1xf32>
    %747 = vector.shape_cast %746 : vector<8x1xf32> to vector<8x1xf32>
    %748 = vector.broadcast %747 : vector<8x1xf32> to vector<8x64xf32>
    %cst_197 = arith.constant 0.000000e+00 : f32
    %749 = vector.broadcast %cst_197 : f32 to vector<8x64xf32>
    %750 = arith.cmpf ogt, %748, %749 : vector<8x64xf32>
    %751 = arith.select %750, %744, %10 : vector<8x64xi1>, vector<8x64xf32>
    %752 = arith.select %750, %742, %10 : vector<8x64xi1>, vector<8x64xf32>
    %c1_i32_198 = arith.constant 1 : i32
    %c8_i32_199 = arith.constant 8 : i32
    %753 = arith.muli %c1_i32_198, %c8_i32_199 : i32
    %754 = tpu.assume_multiple %753, 8 : i32
    %cst_200 = arith.constant dense<0.000000e+00> : vector<8x256xf32>
    %755 = tpu.matmul %751, %2, %cst_200 {dimension_numbers = #tpu.dot_dimension_numbers<[1], [0], [0], [1], [0, 0, 1, 1], [], []>} : vector<8x64xf32>, vector<64x256xf32>, vector<8x256xf32> -> vector<8x256xf32>
    %756 = arith.index_cast %754 : i32 to index
    %c0_201 = arith.constant 0 : index
    %757 = vector.load %arg17[%756, %c0_201] : memref<64x256xf32, #tpu.memory_space<vmem>>, vector<8x256xf32>
    %758 = arith.addf %755, %757 : vector<8x256xf32>
    %759 = vector.extract_strided_slice %758 {offsets = [0, 0], sizes = [8, 64], strides = [1, 1]} : vector<8x256xf32> to vector<8x64xf32>
    %760 = arith.negf %759 : vector<8x64xf32>
    %761 = math.exp %760 : vector<8x64xf32>
    %cst_202 = arith.constant 1.000000e+00 : f32
    %762 = vector.broadcast %cst_202 : f32 to vector<8x64xf32>
    %763 = arith.addf %762, %761 : vector<8x64xf32>
    %764 = arith.divf %762, %763 : vector<8x64xf32>
    %765 = vector.extract_strided_slice %758 {offsets = [0, 64], sizes = [8, 64], strides = [1, 1]} : vector<8x256xf32> to vector<8x64xf32>
    %766 = arith.negf %765 : vector<8x64xf32>
    %767 = math.exp %766 : vector<8x64xf32>
    %cst_203 = arith.constant 1.000000e+00 : f32
    %768 = vector.broadcast %cst_203 : f32 to vector<8x64xf32>
    %769 = arith.addf %768, %767 : vector<8x64xf32>
    %770 = arith.divf %768, %769 : vector<8x64xf32>
    %771 = vector.extract_strided_slice %758 {offsets = [0, 128], sizes = [8, 64], strides = [1, 1]} : vector<8x256xf32> to vector<8x64xf32>
    %772 = math.tanh %771 : vector<8x64xf32>
    %773 = vector.extract_strided_slice %758 {offsets = [0, 192], sizes = [8, 64], strides = [1, 1]} : vector<8x256xf32> to vector<8x64xf32>
    %774 = arith.negf %773 : vector<8x64xf32>
    %775 = math.exp %774 : vector<8x64xf32>
    %cst_204 = arith.constant 1.000000e+00 : f32
    %776 = vector.broadcast %cst_204 : f32 to vector<8x64xf32>
    %777 = arith.addf %776, %775 : vector<8x64xf32>
    %778 = arith.divf %776, %777 : vector<8x64xf32>
    %779 = arith.mulf %770, %752 : vector<8x64xf32>
    %780 = arith.mulf %764, %772 : vector<8x64xf32>
    %781 = arith.addf %779, %780 : vector<8x64xf32>
    %782 = math.tanh %781 : vector<8x64xf32>
    %783 = arith.mulf %778, %782 : vector<8x64xf32>
    %784 = arith.index_cast %754 : i32 to index
    %c0_205 = arith.constant 0 : index
    %785 = vector.load %arg1[%784, %c0_205] : memref<64x1xf32, #tpu.memory_space<vmem>>, vector<8x1xf32>
    %786 = vector.shape_cast %785 : vector<8x1xf32> to vector<8x1xf32>
    %787 = vector.broadcast %786 : vector<8x1xf32> to vector<8x64xf32>
    %cst_206 = arith.constant 0.000000e+00 : f32
    %788 = vector.broadcast %cst_206 : f32 to vector<8x64xf32>
    %789 = arith.cmpf ogt, %787, %788 : vector<8x64xf32>
    %790 = arith.select %789, %783, %751 : vector<8x64xi1>, vector<8x64xf32>
    %791 = arith.select %789, %781, %752 : vector<8x64xi1>, vector<8x64xf32>
    %c2_i32_207 = arith.constant 2 : i32
    %c8_i32_208 = arith.constant 8 : i32
    %792 = arith.muli %c2_i32_207, %c8_i32_208 : i32
    %793 = tpu.assume_multiple %792, 8 : i32
    %cst_209 = arith.constant dense<0.000000e+00> : vector<8x256xf32>
    %794 = tpu.matmul %790, %2, %cst_209 {dimension_numbers = #tpu.dot_dimension_numbers<[1], [0], [0], [1], [0, 0, 1, 1], [], []>} : vector<8x64xf32>, vector<64x256xf32>, vector<8x256xf32> -> vector<8x256xf32>
    %795 = arith.index_cast %793 : i32 to index
    %c0_210 = arith.constant 0 : index
    %796 = vector.load %arg17[%795, %c0_210] : memref<64x256xf32, #tpu.memory_space<vmem>>, vector<8x256xf32>
    %797 = arith.addf %794, %796 : vector<8x256xf32>
    %798 = vector.extract_strided_slice %797 {offsets = [0, 0], sizes = [8, 64], strides = [1, 1]} : vector<8x256xf32> to vector<8x64xf32>
    %799 = arith.negf %798 : vector<8x64xf32>
    %800 = math.exp %799 : vector<8x64xf32>
    %cst_211 = arith.constant 1.000000e+00 : f32
    %801 = vector.broadcast %cst_211 : f32 to vector<8x64xf32>
    %802 = arith.addf %801, %800 : vector<8x64xf32>
    %803 = arith.divf %801, %802 : vector<8x64xf32>
    %804 = vector.extract_strided_slice %797 {offsets = [0, 64], sizes = [8, 64], strides = [1, 1]} : vector<8x256xf32> to vector<8x64xf32>
    %805 = arith.negf %804 : vector<8x64xf32>
    %806 = math.exp %805 : vector<8x64xf32>
    %cst_212 = arith.constant 1.000000e+00 : f32
    %807 = vector.broadcast %cst_212 : f32 to vector<8x64xf32>
    %808 = arith.addf %807, %806 : vector<8x64xf32>
    %809 = arith.divf %807, %808 : vector<8x64xf32>
    %810 = vector.extract_strided_slice %797 {offsets = [0, 128], sizes = [8, 64], strides = [1, 1]} : vector<8x256xf32> to vector<8x64xf32>
    %811 = math.tanh %810 : vector<8x64xf32>
    %812 = vector.extract_strided_slice %797 {offsets = [0, 192], sizes = [8, 64], strides = [1, 1]} : vector<8x256xf32> to vector<8x64xf32>
    %813 = arith.negf %812 : vector<8x64xf32>
    %814 = math.exp %813 : vector<8x64xf32>
    %cst_213 = arith.constant 1.000000e+00 : f32
    %815 = vector.broadcast %cst_213 : f32 to vector<8x64xf32>
    %816 = arith.addf %815, %814 : vector<8x64xf32>
    %817 = arith.divf %815, %816 : vector<8x64xf32>
    %818 = arith.mulf %809, %791 : vector<8x64xf32>
    %819 = arith.mulf %803, %811 : vector<8x64xf32>
    %820 = arith.addf %818, %819 : vector<8x64xf32>
    %821 = math.tanh %820 : vector<8x64xf32>
    %822 = arith.mulf %817, %821 : vector<8x64xf32>
    %823 = arith.index_cast %793 : i32 to index
    %c0_214 = arith.constant 0 : index
    %824 = vector.load %arg1[%823, %c0_214] : memref<64x1xf32, #tpu.memory_space<vmem>>, vector<8x1xf32>
    %825 = vector.shape_cast %824 : vector<8x1xf32> to vector<8x1xf32>
    %826 = vector.broadcast %825 : vector<8x1xf32> to vector<8x64xf32>
    %cst_215 = arith.constant 0.000000e+00 : f32
    %827 = vector.broadcast %cst_215 : f32 to vector<8x64xf32>
    %828 = arith.cmpf ogt, %826, %827 : vector<8x64xf32>
    %829 = arith.select %828, %822, %790 : vector<8x64xi1>, vector<8x64xf32>
    %830 = arith.select %828, %820, %791 : vector<8x64xi1>, vector<8x64xf32>
    %c3_i32_216 = arith.constant 3 : i32
    %c8_i32_217 = arith.constant 8 : i32
    %831 = arith.muli %c3_i32_216, %c8_i32_217 : i32
    %832 = tpu.assume_multiple %831, 8 : i32
    %cst_218 = arith.constant dense<0.000000e+00> : vector<8x256xf32>
    %833 = tpu.matmul %829, %2, %cst_218 {dimension_numbers = #tpu.dot_dimension_numbers<[1], [0], [0], [1], [0, 0, 1, 1], [], []>} : vector<8x64xf32>, vector<64x256xf32>, vector<8x256xf32> -> vector<8x256xf32>
    %834 = arith.index_cast %832 : i32 to index
    %c0_219 = arith.constant 0 : index
    %835 = vector.load %arg17[%834, %c0_219] : memref<64x256xf32, #tpu.memory_space<vmem>>, vector<8x256xf32>
    %836 = arith.addf %833, %835 : vector<8x256xf32>
    %837 = vector.extract_strided_slice %836 {offsets = [0, 0], sizes = [8, 64], strides = [1, 1]} : vector<8x256xf32> to vector<8x64xf32>
    %838 = arith.negf %837 : vector<8x64xf32>
    %839 = math.exp %838 : vector<8x64xf32>
    %cst_220 = arith.constant 1.000000e+00 : f32
    %840 = vector.broadcast %cst_220 : f32 to vector<8x64xf32>
    %841 = arith.addf %840, %839 : vector<8x64xf32>
    %842 = arith.divf %840, %841 : vector<8x64xf32>
    %843 = vector.extract_strided_slice %836 {offsets = [0, 64], sizes = [8, 64], strides = [1, 1]} : vector<8x256xf32> to vector<8x64xf32>
    %844 = arith.negf %843 : vector<8x64xf32>
    %845 = math.exp %844 : vector<8x64xf32>
    %cst_221 = arith.constant 1.000000e+00 : f32
    %846 = vector.broadcast %cst_221 : f32 to vector<8x64xf32>
    %847 = arith.addf %846, %845 : vector<8x64xf32>
    %848 = arith.divf %846, %847 : vector<8x64xf32>
    %849 = vector.extract_strided_slice %836 {offsets = [0, 128], sizes = [8, 64], strides = [1, 1]} : vector<8x256xf32> to vector<8x64xf32>
    %850 = math.tanh %849 : vector<8x64xf32>
    %851 = vector.extract_strided_slice %836 {offsets = [0, 192], sizes = [8, 64], strides = [1, 1]} : vector<8x256xf32> to vector<8x64xf32>
    %852 = arith.negf %851 : vector<8x64xf32>
    %853 = math.exp %852 : vector<8x64xf32>
    %cst_222 = arith.constant 1.000000e+00 : f32
    %854 = vector.broadcast %cst_222 : f32 to vector<8x64xf32>
    %855 = arith.addf %854, %853 : vector<8x64xf32>
    %856 = arith.divf %854, %855 : vector<8x64xf32>
    %857 = arith.mulf %848, %830 : vector<8x64xf32>
    %858 = arith.mulf %842, %850 : vector<8x64xf32>
    %859 = arith.addf %857, %858 : vector<8x64xf32>
    %860 = math.tanh %859 : vector<8x64xf32>
    %861 = arith.mulf %856, %860 : vector<8x64xf32>
    %862 = arith.index_cast %832 : i32 to index
    %c0_223 = arith.constant 0 : index
    %863 = vector.load %arg1[%862, %c0_223] : memref<64x1xf32, #tpu.memory_space<vmem>>, vector<8x1xf32>
    %864 = vector.shape_cast %863 : vector<8x1xf32> to vector<8x1xf32>
    %865 = vector.broadcast %864 : vector<8x1xf32> to vector<8x64xf32>
    %cst_224 = arith.constant 0.000000e+00 : f32
    %866 = vector.broadcast %cst_224 : f32 to vector<8x64xf32>
    %867 = arith.cmpf ogt, %865, %866 : vector<8x64xf32>
    %868 = arith.select %867, %861, %829 : vector<8x64xi1>, vector<8x64xf32>
    %869 = arith.select %867, %859, %830 : vector<8x64xi1>, vector<8x64xf32>
    %c4_i32_225 = arith.constant 4 : i32
    %c8_i32_226 = arith.constant 8 : i32
    %870 = arith.muli %c4_i32_225, %c8_i32_226 : i32
    %871 = tpu.assume_multiple %870, 8 : i32
    %cst_227 = arith.constant dense<0.000000e+00> : vector<8x256xf32>
    %872 = tpu.matmul %868, %2, %cst_227 {dimension_numbers = #tpu.dot_dimension_numbers<[1], [0], [0], [1], [0, 0, 1, 1], [], []>} : vector<8x64xf32>, vector<64x256xf32>, vector<8x256xf32> -> vector<8x256xf32>
    %873 = arith.index_cast %871 : i32 to index
    %c0_228 = arith.constant 0 : index
    %874 = vector.load %arg17[%873, %c0_228] : memref<64x256xf32, #tpu.memory_space<vmem>>, vector<8x256xf32>
    %875 = arith.addf %872, %874 : vector<8x256xf32>
    %876 = vector.extract_strided_slice %875 {offsets = [0, 0], sizes = [8, 64], strides = [1, 1]} : vector<8x256xf32> to vector<8x64xf32>
    %877 = arith.negf %876 : vector<8x64xf32>
    %878 = math.exp %877 : vector<8x64xf32>
    %cst_229 = arith.constant 1.000000e+00 : f32
    %879 = vector.broadcast %cst_229 : f32 to vector<8x64xf32>
    %880 = arith.addf %879, %878 : vector<8x64xf32>
    %881 = arith.divf %879, %880 : vector<8x64xf32>
    %882 = vector.extract_strided_slice %875 {offsets = [0, 64], sizes = [8, 64], strides = [1, 1]} : vector<8x256xf32> to vector<8x64xf32>
    %883 = arith.negf %882 : vector<8x64xf32>
    %884 = math.exp %883 : vector<8x64xf32>
    %cst_230 = arith.constant 1.000000e+00 : f32
    %885 = vector.broadcast %cst_230 : f32 to vector<8x64xf32>
    %886 = arith.addf %885, %884 : vector<8x64xf32>
    %887 = arith.divf %885, %886 : vector<8x64xf32>
    %888 = vector.extract_strided_slice %875 {offsets = [0, 128], sizes = [8, 64], strides = [1, 1]} : vector<8x256xf32> to vector<8x64xf32>
    %889 = math.tanh %888 : vector<8x64xf32>
    %890 = vector.extract_strided_slice %875 {offsets = [0, 192], sizes = [8, 64], strides = [1, 1]} : vector<8x256xf32> to vector<8x64xf32>
    %891 = arith.negf %890 : vector<8x64xf32>
    %892 = math.exp %891 : vector<8x64xf32>
    %cst_231 = arith.constant 1.000000e+00 : f32
    %893 = vector.broadcast %cst_231 : f32 to vector<8x64xf32>
    %894 = arith.addf %893, %892 : vector<8x64xf32>
    %895 = arith.divf %893, %894 : vector<8x64xf32>
    %896 = arith.mulf %887, %869 : vector<8x64xf32>
    %897 = arith.mulf %881, %889 : vector<8x64xf32>
    %898 = arith.addf %896, %897 : vector<8x64xf32>
    %899 = math.tanh %898 : vector<8x64xf32>
    %900 = arith.mulf %895, %899 : vector<8x64xf32>
    %901 = arith.index_cast %871 : i32 to index
    %c0_232 = arith.constant 0 : index
    %902 = vector.load %arg1[%901, %c0_232] : memref<64x1xf32, #tpu.memory_space<vmem>>, vector<8x1xf32>
    %903 = vector.shape_cast %902 : vector<8x1xf32> to vector<8x1xf32>
    %904 = vector.broadcast %903 : vector<8x1xf32> to vector<8x64xf32>
    %cst_233 = arith.constant 0.000000e+00 : f32
    %905 = vector.broadcast %cst_233 : f32 to vector<8x64xf32>
    %906 = arith.cmpf ogt, %904, %905 : vector<8x64xf32>
    %907 = arith.select %906, %900, %868 : vector<8x64xi1>, vector<8x64xf32>
    %908 = arith.select %906, %898, %869 : vector<8x64xi1>, vector<8x64xf32>
    %c5_i32_234 = arith.constant 5 : i32
    %c8_i32_235 = arith.constant 8 : i32
    %909 = arith.muli %c5_i32_234, %c8_i32_235 : i32
    %910 = tpu.assume_multiple %909, 8 : i32
    %cst_236 = arith.constant dense<0.000000e+00> : vector<8x256xf32>
    %911 = tpu.matmul %907, %2, %cst_236 {dimension_numbers = #tpu.dot_dimension_numbers<[1], [0], [0], [1], [0, 0, 1, 1], [], []>} : vector<8x64xf32>, vector<64x256xf32>, vector<8x256xf32> -> vector<8x256xf32>
    %912 = arith.index_cast %910 : i32 to index
    %c0_237 = arith.constant 0 : index
    %913 = vector.load %arg17[%912, %c0_237] : memref<64x256xf32, #tpu.memory_space<vmem>>, vector<8x256xf32>
    %914 = arith.addf %911, %913 : vector<8x256xf32>
    %915 = vector.extract_strided_slice %914 {offsets = [0, 0], sizes = [8, 64], strides = [1, 1]} : vector<8x256xf32> to vector<8x64xf32>
    %916 = arith.negf %915 : vector<8x64xf32>
    %917 = math.exp %916 : vector<8x64xf32>
    %cst_238 = arith.constant 1.000000e+00 : f32
    %918 = vector.broadcast %cst_238 : f32 to vector<8x64xf32>
    %919 = arith.addf %918, %917 : vector<8x64xf32>
    %920 = arith.divf %918, %919 : vector<8x64xf32>
    %921 = vector.extract_strided_slice %914 {offsets = [0, 64], sizes = [8, 64], strides = [1, 1]} : vector<8x256xf32> to vector<8x64xf32>
    %922 = arith.negf %921 : vector<8x64xf32>
    %923 = math.exp %922 : vector<8x64xf32>
    %cst_239 = arith.constant 1.000000e+00 : f32
    %924 = vector.broadcast %cst_239 : f32 to vector<8x64xf32>
    %925 = arith.addf %924, %923 : vector<8x64xf32>
    %926 = arith.divf %924, %925 : vector<8x64xf32>
    %927 = vector.extract_strided_slice %914 {offsets = [0, 128], sizes = [8, 64], strides = [1, 1]} : vector<8x256xf32> to vector<8x64xf32>
    %928 = math.tanh %927 : vector<8x64xf32>
    %929 = vector.extract_strided_slice %914 {offsets = [0, 192], sizes = [8, 64], strides = [1, 1]} : vector<8x256xf32> to vector<8x64xf32>
    %930 = arith.negf %929 : vector<8x64xf32>
    %931 = math.exp %930 : vector<8x64xf32>
    %cst_240 = arith.constant 1.000000e+00 : f32
    %932 = vector.broadcast %cst_240 : f32 to vector<8x64xf32>
    %933 = arith.addf %932, %931 : vector<8x64xf32>
    %934 = arith.divf %932, %933 : vector<8x64xf32>
    %935 = arith.mulf %926, %908 : vector<8x64xf32>
    %936 = arith.mulf %920, %928 : vector<8x64xf32>
    %937 = arith.addf %935, %936 : vector<8x64xf32>
    %938 = math.tanh %937 : vector<8x64xf32>
    %939 = arith.mulf %934, %938 : vector<8x64xf32>
    %940 = arith.index_cast %910 : i32 to index
    %c0_241 = arith.constant 0 : index
    %941 = vector.load %arg1[%940, %c0_241] : memref<64x1xf32, #tpu.memory_space<vmem>>, vector<8x1xf32>
    %942 = vector.shape_cast %941 : vector<8x1xf32> to vector<8x1xf32>
    %943 = vector.broadcast %942 : vector<8x1xf32> to vector<8x64xf32>
    %cst_242 = arith.constant 0.000000e+00 : f32
    %944 = vector.broadcast %cst_242 : f32 to vector<8x64xf32>
    %945 = arith.cmpf ogt, %943, %944 : vector<8x64xf32>
    %946 = arith.select %945, %939, %907 : vector<8x64xi1>, vector<8x64xf32>
    %947 = arith.select %945, %937, %908 : vector<8x64xi1>, vector<8x64xf32>
    %c6_i32_243 = arith.constant 6 : i32
    %c8_i32_244 = arith.constant 8 : i32
    %948 = arith.muli %c6_i32_243, %c8_i32_244 : i32
    %949 = tpu.assume_multiple %948, 8 : i32
    %cst_245 = arith.constant dense<0.000000e+00> : vector<8x256xf32>
    %950 = tpu.matmul %946, %2, %cst_245 {dimension_numbers = #tpu.dot_dimension_numbers<[1], [0], [0], [1], [0, 0, 1, 1], [], []>} : vector<8x64xf32>, vector<64x256xf32>, vector<8x256xf32> -> vector<8x256xf32>
    %951 = arith.index_cast %949 : i32 to index
    %c0_246 = arith.constant 0 : index
    %952 = vector.load %arg17[%951, %c0_246] : memref<64x256xf32, #tpu.memory_space<vmem>>, vector<8x256xf32>
    %953 = arith.addf %950, %952 : vector<8x256xf32>
    %954 = vector.extract_strided_slice %953 {offsets = [0, 0], sizes = [8, 64], strides = [1, 1]} : vector<8x256xf32> to vector<8x64xf32>
    %955 = arith.negf %954 : vector<8x64xf32>
    %956 = math.exp %955 : vector<8x64xf32>
    %cst_247 = arith.constant 1.000000e+00 : f32
    %957 = vector.broadcast %cst_247 : f32 to vector<8x64xf32>
    %958 = arith.addf %957, %956 : vector<8x64xf32>
    %959 = arith.divf %957, %958 : vector<8x64xf32>
    %960 = vector.extract_strided_slice %953 {offsets = [0, 64], sizes = [8, 64], strides = [1, 1]} : vector<8x256xf32> to vector<8x64xf32>
    %961 = arith.negf %960 : vector<8x64xf32>
    %962 = math.exp %961 : vector<8x64xf32>
    %cst_248 = arith.constant 1.000000e+00 : f32
    %963 = vector.broadcast %cst_248 : f32 to vector<8x64xf32>
    %964 = arith.addf %963, %962 : vector<8x64xf32>
    %965 = arith.divf %963, %964 : vector<8x64xf32>
    %966 = vector.extract_strided_slice %953 {offsets = [0, 128], sizes = [8, 64], strides = [1, 1]} : vector<8x256xf32> to vector<8x64xf32>
    %967 = math.tanh %966 : vector<8x64xf32>
    %968 = vector.extract_strided_slice %953 {offsets = [0, 192], sizes = [8, 64], strides = [1, 1]} : vector<8x256xf32> to vector<8x64xf32>
    %969 = arith.negf %968 : vector<8x64xf32>
    %970 = math.exp %969 : vector<8x64xf32>
    %cst_249 = arith.constant 1.000000e+00 : f32
    %971 = vector.broadcast %cst_249 : f32 to vector<8x64xf32>
    %972 = arith.addf %971, %970 : vector<8x64xf32>
    %973 = arith.divf %971, %972 : vector<8x64xf32>
    %974 = arith.mulf %965, %947 : vector<8x64xf32>
    %975 = arith.mulf %959, %967 : vector<8x64xf32>
    %976 = arith.addf %974, %975 : vector<8x64xf32>
    %977 = math.tanh %976 : vector<8x64xf32>
    %978 = arith.mulf %973, %977 : vector<8x64xf32>
    %979 = arith.index_cast %949 : i32 to index
    %c0_250 = arith.constant 0 : index
    %980 = vector.load %arg1[%979, %c0_250] : memref<64x1xf32, #tpu.memory_space<vmem>>, vector<8x1xf32>
    %981 = vector.shape_cast %980 : vector<8x1xf32> to vector<8x1xf32>
    %982 = vector.broadcast %981 : vector<8x1xf32> to vector<8x64xf32>
    %cst_251 = arith.constant 0.000000e+00 : f32
    %983 = vector.broadcast %cst_251 : f32 to vector<8x64xf32>
    %984 = arith.cmpf ogt, %982, %983 : vector<8x64xf32>
    %985 = arith.select %984, %978, %946 : vector<8x64xi1>, vector<8x64xf32>
    %986 = arith.select %984, %976, %947 : vector<8x64xi1>, vector<8x64xf32>
    %c7_i32_252 = arith.constant 7 : i32
    %c8_i32_253 = arith.constant 8 : i32
    %987 = arith.muli %c7_i32_252, %c8_i32_253 : i32
    %988 = tpu.assume_multiple %987, 8 : i32
    %cst_254 = arith.constant dense<0.000000e+00> : vector<8x256xf32>
    %989 = tpu.matmul %985, %2, %cst_254 {dimension_numbers = #tpu.dot_dimension_numbers<[1], [0], [0], [1], [0, 0, 1, 1], [], []>} : vector<8x64xf32>, vector<64x256xf32>, vector<8x256xf32> -> vector<8x256xf32>
    %990 = arith.index_cast %988 : i32 to index
    %c0_255 = arith.constant 0 : index
    %991 = vector.load %arg17[%990, %c0_255] : memref<64x256xf32, #tpu.memory_space<vmem>>, vector<8x256xf32>
    %992 = arith.addf %989, %991 : vector<8x256xf32>
    %993 = vector.extract_strided_slice %992 {offsets = [0, 0], sizes = [8, 64], strides = [1, 1]} : vector<8x256xf32> to vector<8x64xf32>
    %994 = arith.negf %993 : vector<8x64xf32>
    %995 = math.exp %994 : vector<8x64xf32>
    %cst_256 = arith.constant 1.000000e+00 : f32
    %996 = vector.broadcast %cst_256 : f32 to vector<8x64xf32>
    %997 = arith.addf %996, %995 : vector<8x64xf32>
    %998 = arith.divf %996, %997 : vector<8x64xf32>
    %999 = vector.extract_strided_slice %992 {offsets = [0, 64], sizes = [8, 64], strides = [1, 1]} : vector<8x256xf32> to vector<8x64xf32>
    %1000 = arith.negf %999 : vector<8x64xf32>
    %1001 = math.exp %1000 : vector<8x64xf32>
    %cst_257 = arith.constant 1.000000e+00 : f32
    %1002 = vector.broadcast %cst_257 : f32 to vector<8x64xf32>
    %1003 = arith.addf %1002, %1001 : vector<8x64xf32>
    %1004 = arith.divf %1002, %1003 : vector<8x64xf32>
    %1005 = vector.extract_strided_slice %992 {offsets = [0, 128], sizes = [8, 64], strides = [1, 1]} : vector<8x256xf32> to vector<8x64xf32>
    %1006 = math.tanh %1005 : vector<8x64xf32>
    %1007 = vector.extract_strided_slice %992 {offsets = [0, 192], sizes = [8, 64], strides = [1, 1]} : vector<8x256xf32> to vector<8x64xf32>
    %1008 = arith.negf %1007 : vector<8x64xf32>
    %1009 = math.exp %1008 : vector<8x64xf32>
    %cst_258 = arith.constant 1.000000e+00 : f32
    %1010 = vector.broadcast %cst_258 : f32 to vector<8x64xf32>
    %1011 = arith.addf %1010, %1009 : vector<8x64xf32>
    %1012 = arith.divf %1010, %1011 : vector<8x64xf32>
    %1013 = arith.mulf %1004, %986 : vector<8x64xf32>
    %1014 = arith.mulf %998, %1006 : vector<8x64xf32>
    %1015 = arith.addf %1013, %1014 : vector<8x64xf32>
    %1016 = math.tanh %1015 : vector<8x64xf32>
    %1017 = arith.mulf %1012, %1016 : vector<8x64xf32>
    %1018 = arith.index_cast %988 : i32 to index
    %c0_259 = arith.constant 0 : index
    %1019 = vector.load %arg1[%1018, %c0_259] : memref<64x1xf32, #tpu.memory_space<vmem>>, vector<8x1xf32>
    %1020 = vector.shape_cast %1019 : vector<8x1xf32> to vector<8x1xf32>
    %1021 = vector.broadcast %1020 : vector<8x1xf32> to vector<8x64xf32>
    %cst_260 = arith.constant 0.000000e+00 : f32
    %1022 = vector.broadcast %cst_260 : f32 to vector<8x64xf32>
    %1023 = arith.cmpf ogt, %1021, %1022 : vector<8x64xf32>
    %1024 = arith.select %1023, %1017, %985 : vector<8x64xi1>, vector<8x64xf32>
    %1025 = arith.select %1023, %1015, %986 : vector<8x64xi1>, vector<8x64xf32>
    %c8_i32_261 = arith.constant 8 : i32
    %c56 = arith.constant 56 : index
    %c0_262 = arith.constant 0 : index
    %1026 = vector.load %arg16[%c56, %c0_262] : memref<64x128xf32, #tpu.memory_space<vmem>>, vector<8x128xf32>
    %c0_263 = arith.constant 0 : index
    %c0_264 = arith.constant 0 : index
    %1027 = vector.load %arg8[%c0_263, %c0_264] : memref<128x256xf32, #tpu.memory_space<vmem>>, vector<128x256xf32>
    %cst_265 = arith.constant dense<0.000000e+00> : vector<8x256xf32>
    %1028 = tpu.matmul %1026, %1027, %cst_265 {dimension_numbers = #tpu.dot_dimension_numbers<[1], [0], [0], [1], [0, 0, 1, 1], [], []>} : vector<8x128xf32>, vector<128x256xf32>, vector<8x256xf32> -> vector<8x256xf32>
    %c0_266 = arith.constant 0 : index
    %c0_267 = arith.constant 0 : index
    %1029 = vector.load %arg9[%c0_266, %c0_267] : memref<1x256xf32, #tpu.memory_space<vmem>>, vector<1x256xf32>
    %1030 = vector.broadcast %1029 : vector<1x256xf32> to vector<8x256xf32>
    %1031 = arith.addf %1028, %1030 : vector<8x256xf32>
    %1032 = vector.extract_strided_slice %1031 {offsets = [0, 0], sizes = [8, 64], strides = [1, 1]} : vector<8x256xf32> to vector<8x64xf32>
    %1033 = arith.negf %1032 : vector<8x64xf32>
    %1034 = math.exp %1033 : vector<8x64xf32>
    %cst_268 = arith.constant 1.000000e+00 : f32
    %1035 = vector.broadcast %cst_268 : f32 to vector<8x64xf32>
    %1036 = arith.addf %1035, %1034 : vector<8x64xf32>
    %1037 = arith.divf %1035, %1036 : vector<8x64xf32>
    %1038 = vector.extract_strided_slice %1031 {offsets = [0, 64], sizes = [8, 64], strides = [1, 1]} : vector<8x256xf32> to vector<8x64xf32>
    %1039 = arith.negf %1038 : vector<8x64xf32>
    %1040 = math.exp %1039 : vector<8x64xf32>
    %cst_269 = arith.constant 1.000000e+00 : f32
    %1041 = vector.broadcast %cst_269 : f32 to vector<8x64xf32>
    %1042 = arith.addf %1041, %1040 : vector<8x64xf32>
    %1043 = arith.divf %1041, %1042 : vector<8x64xf32>
    %1044 = vector.extract_strided_slice %1031 {offsets = [0, 128], sizes = [8, 64], strides = [1, 1]} : vector<8x256xf32> to vector<8x64xf32>
    %1045 = math.tanh %1044 : vector<8x64xf32>
    %1046 = vector.extract_strided_slice %1031 {offsets = [0, 192], sizes = [8, 64], strides = [1, 1]} : vector<8x256xf32> to vector<8x64xf32>
    %1047 = arith.negf %1046 : vector<8x64xf32>
    %1048 = math.exp %1047 : vector<8x64xf32>
    %cst_270 = arith.constant 1.000000e+00 : f32
    %1049 = vector.broadcast %cst_270 : f32 to vector<8x64xf32>
    %1050 = arith.addf %1049, %1048 : vector<8x64xf32>
    %1051 = arith.divf %1049, %1050 : vector<8x64xf32>
    %1052 = arith.mulf %1043, %10 : vector<8x64xf32>
    %1053 = arith.mulf %1037, %1045 : vector<8x64xf32>
    %1054 = arith.addf %1052, %1053 : vector<8x64xf32>
    %1055 = math.tanh %1054 : vector<8x64xf32>
    %1056 = arith.mulf %1051, %1055 : vector<8x64xf32>
    %c56_271 = arith.constant 56 : index
    %c0_272 = arith.constant 0 : index
    %1057 = vector.load %arg1[%c56_271, %c0_272] : memref<64x1xf32, #tpu.memory_space<vmem>>, vector<8x1xf32>
    %1058 = vector.shape_cast %1057 : vector<8x1xf32> to vector<8x1xf32>
    %1059 = vector.broadcast %1058 : vector<8x1xf32> to vector<8x64xf32>
    %cst_273 = arith.constant 0.000000e+00 : f32
    %1060 = vector.broadcast %cst_273 : f32 to vector<8x64xf32>
    %1061 = arith.cmpf ogt, %1059, %1060 : vector<8x64xf32>
    %cst_274 = arith.constant 0.000000e+00 : f32
    %1062 = vector.broadcast %cst_274 : f32 to vector<8x64xf32>
    %1063 = arith.select %1061, %1024, %1062 : vector<8x64xi1>, vector<8x64xf32>
    %cst_275 = arith.constant 0.000000e+00 : f32
    %1064 = vector.broadcast %cst_275 : f32 to vector<8x64xf32>
    %1065 = arith.select %1061, %1056, %1064 : vector<8x64xi1>, vector<8x64xf32>
    %c0_276 = arith.constant 0 : index
    %c0_277 = arith.constant 0 : index
    %1066 = vector.load %arg11[%c0_276, %c0_277] : memref<64x1xf32, #tpu.memory_space<vmem>>, vector<64x1xf32>
    %cst_278 = arith.constant dense<0.000000e+00> : vector<8x1xf32>
    %1067 = tpu.matmul %1063, %1066, %cst_278 {dimension_numbers = #tpu.dot_dimension_numbers<[1], [0], [0], [1], [0, 0, 1, 1], [], []>} : vector<8x64xf32>, vector<64x1xf32>, vector<8x1xf32> -> vector<8x1xf32>
    %c0_279 = arith.constant 0 : index
    %c0_280 = arith.constant 0 : index
    %1068 = vector.load %arg12[%c0_279, %c0_280] : memref<64x1xf32, #tpu.memory_space<vmem>>, vector<64x1xf32>
    %cst_281 = arith.constant dense<0.000000e+00> : vector<8x1xf32>
    %1069 = tpu.matmul %1065, %1068, %cst_281 {dimension_numbers = #tpu.dot_dimension_numbers<[1], [0], [0], [1], [0, 0, 1, 1], [], []>} : vector<8x64xf32>, vector<64x1xf32>, vector<8x1xf32> -> vector<8x1xf32>
    %1070 = arith.addf %1067, %1069 : vector<8x1xf32>
    %c0_282 = arith.constant 0 : index
    %c0_283 = arith.constant 0 : index
    %1071 = vector.load %arg13[%c0_282, %c0_283] : memref<1x1xf32, #tpu.memory_space<vmem>>, vector<1x1xf32>
    %1072 = vector.broadcast %1071 : vector<1x1xf32> to vector<8x1xf32>
    %1073 = arith.addf %1070, %1072 : vector<8x1xf32>
    %1074 = arith.negf %1073 : vector<8x1xf32>
    %1075 = math.exp %1074 : vector<8x1xf32>
    %cst_284 = arith.constant 1.000000e+00 : f32
    %1076 = vector.broadcast %cst_284 : f32 to vector<8x1xf32>
    %1077 = arith.addf %1076, %1075 : vector<8x1xf32>
    %1078 = arith.divf %1076, %1077 : vector<8x1xf32>
    %c0_285 = arith.constant 0 : index
    %c0_286 = arith.constant 0 : index
    %1079 = vector.load %arg14[%c0_285, %c0_286] : memref<8x1xf32, #tpu.memory_space<vmem>>, vector<8x1xf32>
    tpu.vector_store %arg14[%c0_285, %c0_286], %1078 {strides = array<i32>} : memref<8x1xf32, #tpu.memory_space<vmem>>, vector<8x1xf32>,
    return
  }
}

</mosaic_0001>

<llo_original>
// kernel: tpu_custom_call.1
$region0: #{tpu_custom_call.1}
  #allocation0 [shape = 'u32[]', space=smem, size = 0x4, offset = 0x4, fixed_abs, tag = 'smem constant byte address 0x4 - core index']
  #allocation1 [shape = 'u32[144,128]{1,0:T(1,128)}', space=vmem, size = 0x12000, scoped, tag = 'internal scratch']
  #allocation2 [shape = 'f32[64,512]{1,0:T(8,128)}', space=vmem, size = 0x20000, scoped, tag = 'scratch operand']
  #allocation3 [shape = 'f32[64,128]{1,0:T(8,128)}', space=vmem, size = 0x8000, scoped, tag = 'scratch operand']
  #allocation4 [shape = 'f32[64,256]{1,0:T(8,128)}', space=vmem, size = 0x10000, scoped, tag = 'scratch operand']
  #allocation5 [shape = 'f32[1,1]{1,0:T(1,128)S(1)}', space=vmem, size = 0x200, scoped, tag = 'scoped memory for tpu_custom_call.1']
  %s0 = inlined_call_operand.vmem [shape: f32[64,32], index: 0, kind: input, shape index: {}]
  %s1 = inlined_call_operand.vmem [shape: f32[64,1], index: 1, kind: input, shape index: {}]
  %s2 = inlined_call_operand.hbm [shape: f32[32,512], index: 2, kind: input, shape index: {}]
  %s3 = inlined_call_operand.vmem [shape: f32[1,512], index: 3, kind: input, shape index: {}]
  %s4 = inlined_call_operand.hbm [shape: f32[64,256], index: 4, kind: input, shape index: {}]
  %s5 = inlined_call_operand.hbm [shape: f32[64,256], index: 5, kind: input, shape index: {}]
  %s6 = inlined_call_operand.vmem [shape: f32[128,256], index: 6, kind: input, shape index: {}]
  %s7 = inlined_call_operand.vmem [shape: f32[1,256], index: 7, kind: input, shape index: {}]
  %s8 = inlined_call_operand.hbm [shape: f32[128,256], index: 8, kind: input, shape index: {}]
  %s9 = inlined_call_operand.vmem [shape: f32[1,256], index: 9, kind: input, shape index: {}]
  %s10 = inlined_call_operand.hbm [shape: f32[64,256], index: 10, kind: input, shape index: {}]
  %s11 = inlined_call_operand.vmem [shape: f32[64,1], index: 11, kind: input, shape index: {}]
  %s12 = inlined_call_operand.vmem [shape: f32[64,1], index: 12, kind: input, shape index: {}]
  %s13 = inlined_call_operand.<no memory space> [shape: f32[1,1], index: 13, kind: input, shape index: {}]
  %s14 = inlined_call_operand.vmem [shape: f32[8,1], index: 14, kind: output, shape index: {}]
  %s15 = sld [smem:[#allocation0]]
  $region86: #{tpu_custom_call.1} parent=0
    _
  %s17 = ssub.s32 1, %s15
  %s18 = scalar_select 0, %s17, %s15
  %v19 = vstv %s13
  %20 = vst [vmem:[#allocation5] sm:$0x1] %v19
  $region1: #{tpu_custom_call.1} parent=0
    #allocation6 [shape = 'u8[65536]{0}', space=vmem, size = 0x10000, scoped, tag = 'input window, operand 2, single buffered']
    #allocation7 [shape = 's32[1]{0}', space=sflag, size = 0x4, scoped, tag = 'scoped memory for tpu_custom_call.1']
    #allocation8 [shape = 'u8[65536]{0}', space=vmem, size = 0x10000, scoped, tag = 'input window, operand 4, single buffered']
    #allocation9 [shape = 's32[1]{0}', space=sflag, size = 0x4, scoped, tag = 'scoped memory for tpu_custom_call.1']
    #allocation10 [shape = 'u8[65536]{0}', space=vmem, size = 0x10000, scoped, tag = 'input window, operand 5, single buffered']
    #allocation11 [shape = 'u8[131072]{0}', space=vmem, size = 0x20000, scoped, tag = 'input window, operand 8, single buffered']
    #allocation12 [shape = 's32[1]{0}', space=sflag, size = 0x4, scoped, tag = 'scoped memory for tpu_custom_call.1']
    #allocation13 [shape = 'u8[65536]{0}', space=vmem, size = 0x10000, scoped, tag = 'input window, operand 10, single buffered']
    %21 = vsyncpa [#allocation7], 0
    %22 = vsyncpa [#allocation9], 0
    %23 = vsyncpa [#allocation12], 0
    // Predicated region
    $region2: #{tpu_custom_call.1} parent=1 // pred_check
      _
    $region3: #{tpu_custom_call.1} parent=1 // pred_check_branch
      %25 = sbr.rel (0) target = $region5
    $region4: #{tpu_custom_call.1} parent=1 // pred_region
      _
    $region5: #{tpu_custom_call.1} parent=1 // pred_fallthru
      _
    // Predicated region
    $region6: #{tpu_custom_call.1} parent=1 // pred_check
      _
    $region7: #{tpu_custom_call.1} parent=1 // pred_check_branch
      %27 = sbr.rel (0) target = $region9
    $region8: #{tpu_custom_call.1} parent=1 // pred_region
      _
    $region9: #{tpu_custom_call.1} parent=1 // pred_fallthru
      _
    // Predicated region
    $region10: #{tpu_custom_call.1} parent=1 // pred_check
      _
    $region11: #{tpu_custom_call.1} parent=1 // pred_check_branch
      %29 = sbr.rel (0) target = $region13
    $region12: #{tpu_custom_call.1} parent=1 // pred_region
      %s31 = ssub.s32 2048, 2048
      %32 = vsyncadd [#allocation7], %s31
      %s33 = sshll.u32 [#allocation6], 4
      %s34 = int_to_ptr.vmem [resolvable:$true] %s33
      %39 = dma.hbm_to_vmem [thread:$0]  %s2, 2048, %s34, [#allocation7], 512, 512, 32
    $region13: #{tpu_custom_call.1} parent=1 // pred_fallthru
      _
    // Predicated region
    $region14: #{tpu_custom_call.1} parent=1 // pred_check
      _
    $region15: #{tpu_custom_call.1} parent=1 // pred_check_branch
      %41 = sbr.rel (0) target = $region17
    $region16: #{tpu_custom_call.1} parent=1 // pred_region
      _
    $region17: #{tpu_custom_call.1} parent=1 // pred_fallthru
      _
    // Predicated region
    $region18: #{tpu_custom_call.1} parent=1 // pred_check
      _
    $region19: #{tpu_custom_call.1} parent=1 // pred_check_branch
      %43 = sbr.rel (0) target = $region21
    $region20: #{tpu_custom_call.1} parent=1 // pred_region
      %s45 = ssub.s32 2048, 2048
      %46 = vsyncadd [#allocation9], %s45
      %s47 = sshll.u32 [#allocation8], 4
      %s48 = int_to_ptr.vmem [resolvable:$true] %s47
      %53 = dma.hbm_to_vmem [thread:$0]  %s4, 2048, %s48, [#allocation9], 256, 256, 16
    $region21: #{tpu_custom_call.1} parent=1 // pred_fallthru
      _
    // Predicated region
    $region22: #{tpu_custom_call.1} parent=1 // pred_check
      _
    $region23: #{tpu_custom_call.1} parent=1 // pred_check_branch
      %55 = sbr.rel (0) target = $region25
    $region24: #{tpu_custom_call.1} parent=1 // pred_region
      %s57 = ssub.s32 2048, 2048
      %58 = vsyncadd [#allocation9], %s57
      %s59 = sshll.u32 [#allocation10], 4
      %s60 = int_to_ptr.vmem [resolvable:$true] %s59
      %65 = dma.hbm_to_vmem [thread:$0]  %s5, 2048, %s60, [#allocation9], 256, 256, 16
    $region25: #{tpu_custom_call.1} parent=1 // pred_fallthru
      _
    // Predicated region
    $region26: #{tpu_custom_call.1} parent=1 // pred_check
      _
    $region27: #{tpu_custom_call.1} parent=1 // pred_check_branch
      %67 = sbr.rel (0) target = $region29
    $region28: #{tpu_custom_call.1} parent=1 // pred_region
      _
    $region29: #{tpu_custom_call.1} parent=1 // pred_fallthru
      _
    // Predicated region
    $region30: #{tpu_custom_call.1} parent=1 // pred_check
      _
    $region31: #{tpu_custom_call.1} parent=1 // pred_check_branch
      %69 = sbr.rel (0) target = $region33
    $region32: #{tpu_custom_call.1} parent=1 // pred_region
      _
    $region33: #{tpu_custom_call.1} parent=1 // pred_fallthru
      _
    // Predicated region
    $region34: #{tpu_custom_call.1} parent=1 // pred_check
      _
    $region35: #{tpu_custom_call.1} parent=1 // pred_check_branch
      %71 = sbr.rel (0) target = $region37
    $region36: #{tpu_custom_call.1} parent=1 // pred_region
      %s73 = ssub.s32 4096, 4096
      %74 = vsyncadd [#allocation12], %s73
      %s75 = sshll.u32 [#allocation11], 4
      %s76 = int_to_ptr.vmem [resolvable:$true] %s75
      %81 = dma.hbm_to_vmem [thread:$0]  %s8, 4096, %s76, [#allocation12], 256, 256, 16
    $region37: #{tpu_custom_call.1} parent=1 // pred_fallthru
      _
    // Predicated region
    $region38: #{tpu_custom_call.1} parent=1 // pred_check
      _
    $region39: #{tpu_custom_call.1} parent=1 // pred_check_branch
      %83 = sbr.rel (0) target = $region41
    $region40: #{tpu_custom_call.1} parent=1 // pred_region
      _
    $region41: #{tpu_custom_call.1} parent=1 // pred_fallthru
      _
    // Predicated region
    $region42: #{tpu_custom_call.1} parent=1 // pred_check
      _
    $region43: #{tpu_custom_call.1} parent=1 // pred_check_branch
      %85 = sbr.rel (0) target = $region45
    $region44: #{tpu_custom_call.1} parent=1 // pred_region
      %s87 = ssub.s32 2048, 2048
      %88 = vsyncadd [#allocation12], %s87
      %s89 = sshll.u32 [#allocation13], 4
      %s90 = int_to_ptr.vmem [resolvable:$true] %s89
      %95 = dma.hbm_to_vmem [thread:$0]  %s10, 2048, %s90, [#allocation12], 256, 256, 16
    $region45: #{tpu_custom_call.1} parent=1 // pred_fallthru
      _
    // Predicated region
    $region46: #{tpu_custom_call.1} parent=1 // pred_check
      _
    $region47: #{tpu_custom_call.1} parent=1 // pred_check_branch
      %97 = sbr.rel (0) target = $region49
    $region48: #{tpu_custom_call.1} parent=1 // pred_region
      _
    $region49: #{tpu_custom_call.1} parent=1 // pred_fallthru
      _
    // Predicated region
    $region50: #{tpu_custom_call.1} parent=1 // pred_check
      _
    $region51: #{tpu_custom_call.1} parent=1 // pred_check_branch
      %99 = sbr.rel (0) target = $region53
    $region52: #{tpu_custom_call.1} parent=1 // pred_region
      _
    $region53: #{tpu_custom_call.1} parent=1 // pred_fallthru
      _
    // Predicated region
    $region54: #{tpu_custom_call.1} parent=1 // pred_check
      _
    $region55: #{tpu_custom_call.1} parent=1 // pred_check_branch
      %101 = sbr.rel (0) target = $region57
    $region56: #{tpu_custom_call.1} parent=1 // pred_region
      _
    $region57: #{tpu_custom_call.1} parent=1 // pred_fallthru
      _
    // Predicated region
    $region58: #{tpu_custom_call.1} parent=1 // pred_check
      _
    $region59: #{tpu_custom_call.1} parent=1 // pred_check_branch
      %103 = sbr.rel (0) target = $region61
    $region60: #{tpu_custom_call.1} parent=1 // pred_region
      %104 = dma.done [#allocation7], 2048
    $region61: #{tpu_custom_call.1} parent=1 // pred_fallthru
      _
    // Predicated region
    $region62: #{tpu_custom_call.1} parent=1 // pred_check
      _
    $region63: #{tpu_custom_call.1} parent=1 // pred_check_branch
      %106 = sbr.rel (0) target = $region65
    $region64: #{tpu_custom_call.1} parent=1 // pred_region
      %107 = dma.done [#allocation9], 2048
    $region65: #{tpu_custom_call.1} parent=1 // pred_fallthru
      _
    // Predicated region
    $region66: #{tpu_custom_call.1} parent=1 // pred_check
      _
    $region67: #{tpu_custom_call.1} parent=1 // pred_check_branch
      %109 = sbr.rel (0) target = $region69
    $region68: #{tpu_custom_call.1} parent=1 // pred_region
      %110 = dma.done [#allocation9], 2048
    $region69: #{tpu_custom_call.1} parent=1 // pred_fallthru
      _
    // Predicated region
    $region70: #{tpu_custom_call.1} parent=1 // pred_check
      _
    $region71: #{tpu_custom_call.1} parent=1 // pred_check_branch
      %112 = sbr.rel (0) target = $region73
    $region72: #{tpu_custom_call.1} parent=1 // pred_region
      %113 = dma.done [#allocation12], 4096
    $region73: #{tpu_custom_call.1} parent=1 // pred_fallthru
      _
    // Predicated region
    $region74: #{tpu_custom_call.1} parent=1 // pred_check
      _
    $region75: #{tpu_custom_call.1} parent=1 // pred_check_branch
      %115 = sbr.rel (0) target = $region77
    $region76: #{tpu_custom_call.1} parent=1 // pred_region
      %116 = dma.done [#allocation12], 2048
    $region77: #{tpu_custom_call.1} parent=1 // pred_fallthru
      _
    %v117 = vld [vmem:[#allocation8] sm:$0xff]
    %v118 = vld [vmem:[#allocation8 + $0x8] sm:$0xff]
    %v119 = vld [vmem:[#allocation8 + $0x10] sm:$0xff]
    %v120 = vld [vmem:[#allocation8 + $0x18] sm:$0xff]
    %v121 = vld [vmem:[#allocation8 + $0x20] sm:$0xff]
    %v122 = vld [vmem:[#allocation8 + $0x28] sm:$0xff]
    %v123 = vld [vmem:[#allocation8 + $0x30] sm:$0xff]
    %v124 = vld [vmem:[#allocation8 + $0x38] sm:$0xff]
    %v125 = vld [vmem:[#allocation8 + $0x40] sm:$0xff]
    %v126 = vld [vmem:[#allocation8 + $0x48] sm:$0xff]
    %v127 = vld [vmem:[#allocation8 + $0x50] sm:$0xff]
    %v128 = vld [vmem:[#allocation8 + $0x58] sm:$0xff]
    %v129 = vld [vmem:[#allocation8 + $0x60] sm:$0xff]
    %v130 = vld [vmem:[#allocation8 + $0x68] sm:$0xff]
    %v131 = vld [vmem:[#allocation8 + $0x70] sm:$0xff]
    %v132 = vld [vmem:[#allocation8 + $0x78] sm:$0xff]
    %v133 = vld [vmem:[#allocation10] sm:$0xff]
    %v134 = vld [vmem:[#allocation10 + $0x8] sm:$0xff]
    %v135 = vld [vmem:[#allocation10 + $0x10] sm:$0xff]
    %v136 = vld [vmem:[#allocation10 + $0x18] sm:$0xff]
    %v137 = vld [vmem:[#allocation10 + $0x20] sm:$0xff]
    %v138 = vld [vmem:[#allocation10 + $0x28] sm:$0xff]
    %v139 = vld [vmem:[#allocation10 + $0x30] sm:$0xff]
    %v140 = vld [vmem:[#allocation10 + $0x38] sm:$0xff]
    %v141 = vld [vmem:[#allocation10 + $0x40] sm:$0xff]
    %v142 = vld [vmem:[#allocation10 + $0x48] sm:$0xff]
    %v143 = vld [vmem:[#allocation10 + $0x50] sm:$0xff]
    %v144 = vld [vmem:[#allocation10 + $0x58] sm:$0xff]
    %v145 = vld [vmem:[#allocation10 + $0x60] sm:$0xff]
    %v146 = vld [vmem:[#allocation10 + $0x68] sm:$0xff]
    %v147 = vld [vmem:[#allocation10 + $0x70] sm:$0xff]
    %v148 = vld [vmem:[#allocation10 + $0x78] sm:$0xff]
    %v149 = vld [vmem:[#allocation13] sm:$0xff]
    %v150 = vld [vmem:[#allocation13 + $0x8] sm:$0xff]
    %v151 = vld [vmem:[#allocation13 + $0x10] sm:$0xff]
    %v152 = vld [vmem:[#allocation13 + $0x18] sm:$0xff]
    %v153 = vld [vmem:[#allocation13 + $0x20] sm:$0xff]
    %v154 = vld [vmem:[#allocation13 + $0x28] sm:$0xff]
    %v155 = vld [vmem:[#allocation13 + $0x30] sm:$0xff]
    %v156 = vld [vmem:[#allocation13 + $0x38] sm:$0xff]
    %v157 = vld [vmem:[#allocation13 + $0x40] sm:$0xff]
    %v158 = vld [vmem:[#allocation13 + $0x48] sm:$0xff]
    %v159 = vld [vmem:[#allocation13 + $0x50] sm:$0xff]
    %v160 = vld [vmem:[#allocation13 + $0x58] sm:$0xff]
    %v161 = vld [vmem:[#allocation13 + $0x60] sm:$0xff]
    %v162 = vld [vmem:[#allocation13 + $0x68] sm:$0xff]
    %v163 = vld [vmem:[#allocation13 + $0x70] sm:$0xff]
    %v164 = vld [vmem:[#allocation13 + $0x78] sm:$0xff]
    %v165 = vld [vmem:[%s0] sm:$0xff]
    %v166 = vld [vmem:[%s0 + $0x8] sm:$0xff]
    %v167 = vld [vmem:[%s0 + $0x10] sm:$0xff]
    %v168 = vld [vmem:[%s0 + $0x18] sm:$0xff]
    %v169 = vld [vmem:[%s0 + $0x20] sm:$0xff]
    %v170 = vld [vmem:[%s0 + $0x28] sm:$0xff]
    %v171 = vld [vmem:[%s0 + $0x30] sm:$0xff]
    %v172 = vld [vmem:[%s0 + $0x38] sm:$0xff]
    %v173 = vld [vmem:[#allocation6] sm:$0xff]
    %v174 = vld [vmem:[#allocation6 + $0x8] sm:$0xff]
    %v175 = vld [vmem:[#allocation6 + $0x10] sm:$0xff]
    %v176 = vld [vmem:[#allocation6 + $0x18] sm:$0xff]
    %v177 = vld [vmem:[#allocation6 + $0x20] sm:$0xff]
    %v178 = vld [vmem:[#allocation6 + $0x28] sm:$0xff]
    %v179 = vld [vmem:[#allocation6 + $0x30] sm:$0xff]
    %v180 = vld [vmem:[#allocation6 + $0x38] sm:$0xff]
    %v181 = vld [vmem:[#allocation6 + $0x40] sm:$0xff]
    %v182 = vld [vmem:[#allocation6 + $0x48] sm:$0xff]
    %v183 = vld [vmem:[#allocation6 + $0x50] sm:$0xff]
    %v184 = vld [vmem:[#allocation6 + $0x58] sm:$0xff]
    %v185 = vld [vmem:[#allocation6 + $0x60] sm:$0xff]
    %v186 = vld [vmem:[#allocation6 + $0x68] sm:$0xff]
    %v187 = vld [vmem:[#allocation6 + $0x70] sm:$0xff]
    %v188 = vld [vmem:[#allocation6 + $0x78] sm:$0xff]
    %v189 = vld [vmem:[%s3] sm:$0xf]
    %v191 = vlaneseq
    %v192 = vshrl.u32 %v191, 7
    %v193 = vsub.s32 0, %v192
    %v194 = vrot.slane %v189, %v193
    %v195 = vlaneseq
    %v196 = vshrl.u32 %v195, 7
    %v197 = vsub.s32 1, %v196
    %v198 = vrot.slane %v189, %v197
    %v199 = vlaneseq
    %v200 = vshrl.u32 %v199, 7
    %v201 = vsub.s32 2, %v200
    %v202 = vrot.slane %v189, %v201
    %v203 = vlaneseq
    %v204 = vshrl.u32 %v203, 7
    %v205 = vsub.s32 3, %v204
    %v206 = vrot.slane %v189, %v205
    %vm211 = vcmask 261120
    %v213 = vsel %vm211, %v165, 0
    %v216 = vsel %vm211, %v166, 0
    %v219 = vsel %vm211, %v167, 0
    %v222 = vsel %vm211, %v168, 0
    %v225 = vsel %vm211, %v169, 0
    %v228 = vsel %vm211, %v170, 0
    %v231 = vsel %vm211, %v171, 0
    %v234 = vsel %vm211, %v172, 0
    %236 = vmatprep.subr.mxu0 %v174
    %237 = vmatpush1.msra.mxu0 %v173
    %238 = vmatprep.subr.mxu0 %v178
    %239 = vmatpush1.msra.mxu0 %v177
    %240 = vmatprep.subr.mxu0 %v182
    %241 = vmatpush1.msra.mxu0 %v181
    %242 = vmatprep.subr.mxu0 %v186
    %243 = vmatpush1.msra.mxu0 %v185
    %244 = vmatprep.subr.mxu0 0.0
    %245 = vmatpush1.msra.mxu0 0.0
    %246 = vmatprep.subr.mxu0 0.0
    %247 = vmatpush1.msra.mxu0 0.0
    %248 = vmatprep.subr.mxu0 0.0
    %249 = vmatpush1.msra.mxu0 0.0
    %250 = vmatprep.subr.mxu0 0.0
    %251 = vmatpush1.msra.mxu0 0.0
    %252 = vmatprep.subr.mxu0 0.0
    %253 = vmatpush1.msra.mxu0 0.0
    %254 = vmatprep.subr.mxu0 0.0
    %255 = vmatpush1.msra.mxu0 0.0
    %256 = vmatprep.subr.mxu0 0.0
    %257 = vmatpush1.msra.mxu0 0.0
    %258 = vmatprep.subr.mxu0 0.0
    %259 = vmatpush1.msra.mxu0 0.0
    %260 = vmatprep.subr.mxu0 0.0
    %261 = vmatpush1.msra.mxu0 0.0
    %262 = vmatprep.subr.mxu0 0.0
    %263 = vmatpush1.msra.mxu0 0.0
    %264 = vmatprep.subr.mxu0 0.0
    %265 = vmatpush1.msra.mxu0 0.0
    %266 = vmatprep.subr.mxu0 0.0
    %267 = vmatpush1.msra.mxu0 0.0
    %268 = vmatprep.subr.mxu0 0.0
    %269 = vmatpush1.msra.mxu0 0.0
    %270 = vmatprep.subr.mxu0 0.0
    %271 = vmatpush1.msra.mxu0 0.0
    %272 = vmatprep.subr.mxu0 0.0
    %273 = vmatpush1.msra.mxu0 0.0
    %274 = vmatprep.subr.mxu0 0.0
    %275 = vmatpush1.msra.mxu0 0.0
    %276 = vmatprep.subr.mxu0 0.0
    %277 = vmatpush1.msra.mxu0 0.0
    %278 = vmatprep.subr.mxu0 0.0
    %279 = vmatpush1.msra.mxu0 0.0
    %280 = vmatprep.subr.mxu0 0.0
    %281 = vmatpush1.msra.mxu0 0.0
    %282 = vmatprep.subr.mxu0 0.0
    %283 = vmatpush1.msra.mxu0 0.0
    %284 = vmatprep.subr.mxu0 0.0
    %285 = vmatpush1.msra.mxu0 0.0
    %286 = vmatprep.subr.mxu0 0.0
    %287 = vmatpush1.msra.mxu0 0.0
    %288 = vmatprep.subr.mxu0 0.0
    %289 = vmatpush1.msra.mxu0 0.0
    %290 = vmatprep.subr.mxu0 0.0
    %291 = vmatpush1.msra.mxu0 0.0
    %292 = vmatprep.subr.mxu0 0.0
    %293 = vmatpush1.msra.mxu0 0.0
    %294 = vmatprep.subr.mxu0 0.0
    %295 = vmatpush1.msra.mxu0 0.0
    %296 = vmatprep.subr.mxu0 0.0
    %297 = vmatpush1.msra.mxu0 0.0
    %298 = vmatprep.subr.mxu0 0.0
    %299 = vmatpush1.msra.mxu0 0.0
    %300 = vmatprep.mubr.f32.mxu0 0.0
    %301 = vmatmul.mubr.f32.gmra.mrb[0].mxu0 %v213
    %v302 = vpop.f32.mrb[0].mxu0
    %v303 = vadd.f32 %v194, %v302
    %v304 = vpop.f32.mrb[0].mxu0
    %v305 = vadd.f32 %v198, %v304
    %306 = vmatprep.mubr.f32.mxu0 0.0
    %307 = vmatmul.mubr.f32.gmra.mrb[0].mxu0 %v216
    %v308 = vpop.f32.mrb[0].mxu0
    %v309 = vadd.f32 %v194, %v308
    %v310 = vpop.f32.mrb[0].mxu0
    %v311 = vadd.f32 %v198, %v310
    %312 = vmatprep.mubr.f32.mxu0 0.0
    %313 = vmatmul.mubr.f32.gmra.mrb[0].mxu0 %v219
    %v314 = vpop.f32.mrb[0].mxu0
    %v315 = vadd.f32 %v194, %v314
    %v316 = vpop.f32.mrb[0].mxu0
    %v317 = vadd.f32 %v198, %v316
    %318 = vmatprep.mubr.f32.mxu0 0.0
    %319 = vmatmul.mubr.f32.gmra.mrb[0].mxu0 %v222
    %v320 = vpop.f32.mrb[0].mxu0
    %v321 = vadd.f32 %v194, %v320
    %v322 = vpop.f32.mrb[0].mxu0
    %v323 = vadd.f32 %v198, %v322
    %324 = vmatprep.mubr.f32.mxu0 0.0
    %325 = vmatmul.mubr.f32.gmra.mrb[0].mxu0 %v225
    %v326 = vpop.f32.mrb[0].mxu0
    %v327 = vadd.f32 %v194, %v326
    %v328 = vpop.f32.mrb[0].mxu0
    %v329 = vadd.f32 %v198, %v328
    %330 = vmatprep.mubr.f32.mxu0 0.0
    %331 = vmatmul.mubr.f32.gmra.mrb[0].mxu0 %v228
    %v332 = vpop.f32.mrb[0].mxu0
    %v333 = vadd.f32 %v194, %v332
    %v334 = vpop.f32.mrb[0].mxu0
    %v335 = vadd.f32 %v198, %v334
    %336 = vmatprep.mubr.f32.mxu0 0.0
    %337 = vmatmul.mubr.f32.gmra.mrb[0].mxu0 %v231
    %v338 = vpop.f32.mrb[0].mxu0
    %v339 = vadd.f32 %v194, %v338
    %v340 = vpop.f32.mrb[0].mxu0
    %v341 = vadd.f32 %v198, %v340
    %342 = vmatprep.mubr.f32.mxu0 0.0
    %343 = vmatmul.mubr.f32.gmra.mrb[0].mxu0 %v234
    %v344 = vpop.f32.mrb[0].mxu0
    %v345 = vadd.f32 %v194, %v344
    %v346 = vpop.f32.mrb[0].mxu0
    %v347 = vadd.f32 %v198, %v346
    %348 = vdwg.mxu0
    %349 = vmatprep.subr.mxu0 %v176
    %350 = vmatpush1.msra.mxu0 %v175
    %351 = vmatprep.subr.mxu0 %v180
    %352 = vmatpush1.msra.mxu0 %v179
    %353 = vmatprep.subr.mxu0 %v184
    %354 = vmatpush1.msra.mxu0 %v183
    %355 = vmatprep.subr.mxu0 %v188
    %356 = vmatpush1.msra.mxu0 %v187
    %357 = vmatprep.subr.mxu0 0.0
    %358 = vmatpush1.msra.mxu0 0.0
    %359 = vmatprep.subr.mxu0 0.0
    %360 = vmatpush1.msra.mxu0 0.0
    %361 = vmatprep.subr.mxu0 0.0
    %362 = vmatpush1.msra.mxu0 0.0
    %363 = vmatprep.subr.mxu0 0.0
    %364 = vmatpush1.msra.mxu0 0.0
    %365 = vmatprep.subr.mxu0 0.0
    %366 = vmatpush1.msra.mxu0 0.0
    %367 = vmatprep.subr.mxu0 0.0
    %368 = vmatpush1.msra.mxu0 0.0
    %369 = vmatprep.subr.mxu0 0.0
    %370 = vmatpush1.msra.mxu0 0.0
    %371 = vmatprep.subr.mxu0 0.0
    %372 = vmatpush1.msra.mxu0 0.0
    %373 = vmatprep.subr.mxu0 0.0
    %374 = vmatpush1.msra.mxu0 0.0
    %375 = vmatprep.subr.mxu0 0.0
    %376 = vmatpush1.msra.mxu0 0.0
    %377 = vmatprep.subr.mxu0 0.0
    %378 = vmatpush1.msra.mxu0 0.0
    %379 = vmatprep.subr.mxu0 0.0
    %380 = vmatpush1.msra.mxu0 0.0
    %381 = vmatprep.subr.mxu0 0.0
    %382 = vmatpush1.msra.mxu0 0.0
    %383 = vmatprep.subr.mxu0 0.0
    %384 = vmatpush1.msra.mxu0 0.0
    %385 = vmatprep.subr.mxu0 0.0
    %386 = vmatpush1.msra.mxu0 0.0
    %387 = vmatprep.subr.mxu0 0.0
    %388 = vmatpush1.msra.mxu0 0.0
    %389 = vmatprep.subr.mxu0 0.0
    %390 = vmatpush1.msra.mxu0 0.0
    %391 = vmatprep.subr.mxu0 0.0
    %392 = vmatpush1.msra.mxu0 0.0
    %393 = vmatprep.subr.mxu0 0.0
    %394 = vmatpush1.msra.mxu0 0.0
    %395 = vmatprep.subr.mxu0 0.0
    %396 = vmatpush1.msra.mxu0 0.0
    %397 = vmatprep.subr.mxu0 0.0
    %398 = vmatpush1.msra.mxu0 0.0
    %399 = vmatprep.subr.mxu0 0.0
    %400 = vmatpush1.msra.mxu0 0.0
    %401 = vmatprep.subr.mxu0 0.0
    %402 = vmatpush1.msra.mxu0 0.0
    %403 = vmatprep.subr.mxu0 0.0
    %404 = vmatpush1.msra.mxu0 0.0
    %405 = vmatprep.subr.mxu0 0.0
    %406 = vmatpush1.msra.mxu0 0.0
    %407 = vmatprep.subr.mxu0 0.0
    %408 = vmatpush1.msra.mxu0 0.0
    %409 = vmatprep.subr.mxu0 0.0
    %410 = vmatpush1.msra.mxu0 0.0
    %411 = vmatprep.subr.mxu0 0.0
    %412 = vmatpush1.msra.mxu0 0.0
    %413 = vmatprep.mubr.f32.mxu0 0.0
    %414 = vmatmul.mubr.f32.gmra.mrb[0].mxu0 %v213
    %v415 = vpop.f32.mrb[0].mxu0
    %v416 = vadd.f32 %v202, %v415
    %v417 = vpop.f32.mrb[0].mxu0
    %v418 = vadd.f32 %v206, %v417
    %419 = vmatprep.mubr.f32.mxu0 0.0
    %420 = vmatmul.mubr.f32.gmra.mrb[0].mxu0 %v216
    %v421 = vpop.f32.mrb[0].mxu0
    %v422 = vadd.f32 %v202, %v421
    %v423 = vpop.f32.mrb[0].mxu0
    %v424 = vadd.f32 %v206, %v423
    %425 = vmatprep.mubr.f32.mxu0 0.0
    %426 = vmatmul.mubr.f32.gmra.mrb[0].mxu0 %v219
    %v427 = vpop.f32.mrb[0].mxu0
    %v428 = vadd.f32 %v202, %v427
    %v429 = vpop.f32.mrb[0].mxu0
    %v430 = vadd.f32 %v206, %v429
    %431 = vmatprep.mubr.f32.mxu0 0.0
    %432 = vmatmul.mubr.f32.gmra.mrb[0].mxu0 %v222
    %v433 = vpop.f32.mrb[0].mxu0
    %v434 = vadd.f32 %v202, %v433
    %v435 = vpop.f32.mrb[0].mxu0
    %v436 = vadd.f32 %v206, %v435
    %437 = vmatprep.mubr.f32.mxu0 0.0
    %438 = vmatmul.mubr.f32.gmra.mrb[0].mxu0 %v225
    %v439 = vpop.f32.mrb[0].mxu0
    %v440 = vadd.f32 %v202, %v439
    %v441 = vpop.f32.mrb[0].mxu0
    %v442 = vadd.f32 %v206, %v441
    %443 = vmatprep.mubr.f32.mxu0 0.0
    %444 = vmatmul.mubr.f32.gmra.mrb[0].mxu0 %v228
    %v445 = vpop.f32.mrb[0].mxu0
    %v446 = vadd.f32 %v202, %v445
    %v447 = vpop.f32.mrb[0].mxu0
    %v448 = vadd.f32 %v206, %v447
    %449 = vmatprep.mubr.f32.mxu0 0.0
    %450 = vmatmul.mubr.f32.gmra.mrb[0].mxu0 %v231
    %v451 = vpop.f32.mrb[0].mxu0
    %v452 = vadd.f32 %v202, %v451
    %v453 = vpop.f32.mrb[0].mxu0
    %v454 = vadd.f32 %v206, %v453
    %455 = vmatprep.mubr.f32.mxu0 0.0
    %456 = vmatmul.mubr.f32.gmra.mrb[0].mxu0 %v234
    %v457 = vpop.f32.mrb[0].mxu0
    %v458 = vadd.f32 %v202, %v457
    %v459 = vpop.f32.mrb[0].mxu0
    %v460 = vadd.f32 %v206, %v459
    %461 = vdwg.mxu0
    %462 = vst [vmem:[#allocation2] sm:$0xff] %v303
    %463 = vst [vmem:[#allocation2 + $0x8] sm:$0xff] %v305
    %464 = vst [vmem:[#allocation2 + $0x10] sm:$0xff] %v416
    %465 = vst [vmem:[#allocation2 + $0x18] sm:$0xff] %v418
    %466 = vst [vmem:[#allocation2 + $0x20] sm:$0xff] %v309
    %467 = vst [vmem:[#allocation2 + $0x28] sm:$0xff] %v311
    %468 = vst [vmem:[#allocation2 + $0x30] sm:$0xff] %v422
    %469 = vst [vmem:[#allocation2 + $0x38] sm:$0xff] %v424
    %470 = vst [vmem:[#allocation2 + $0x40] sm:$0xff] %v315
    %471 = vst [vmem:[#allocation2 + $0x48] sm:$0xff] %v317
    %472 = vst [vmem:[#allocation2 + $0x50] sm:$0xff] %v428
    %473 = vst [vmem:[#allocation2 + $0x58] sm:$0xff] %v430
    %474 = vst [vmem:[#allocation2 + $0x60] sm:$0xff] %v321
    %475 = vst [vmem:[#allocation2 + $0x68] sm:$0xff] %v323
    %476 = vst [vmem:[#allocation2 + $0x70] sm:$0xff] %v434
    %477 = vst [vmem:[#allocation2 + $0x78] sm:$0xff] %v436
    %478 = vst [vmem:[#allocation2 + $0x80] sm:$0xff] %v327
    %479 = vst [vmem:[#allocation2 + $0x88] sm:$0xff] %v329
    %480 = vst [vmem:[#allocation2 + $0x90] sm:$0xff] %v440
    %481 = vst [vmem:[#allocation2 + $0x98] sm:$0xff] %v442
    %482 = vst [vmem:[#allocation2 + $0xa0] sm:$0xff] %v333
    %483 = vst [vmem:[#allocation2 + $0xa8] sm:$0xff] %v335
    %484 = vst [vmem:[#allocation2 + $0xb0] sm:$0xff] %v446
    %485 = vst [vmem:[#allocation2 + $0xb8] sm:$0xff] %v448
    %486 = vst [vmem:[#allocation2 + $0xc0] sm:$0xff] %v339
    %487 = vst [vmem:[#allocation2 + $0xc8] sm:$0xff] %v341
    %488 = vst [vmem:[#allocation2 + $0xd0] sm:$0xff] %v452
    %489 = vst [vmem:[#allocation2 + $0xd8] sm:$0xff] %v454
    %490 = vst [vmem:[#allocation2 + $0xe0] sm:$0xff] %v345
    %491 = vst [vmem:[#allocation2 + $0xe8] sm:$0xff] %v347
    %492 = vst [vmem:[#allocation2 + $0xf0] sm:$0xff] %v458
    %493 = vst [vmem:[#allocation2 + $0xf8] sm:$0xff] %v460
    %s494 = smul.u32 0, 4
    %s495 = smul.addr %s494, 8
    %s496 = scalar_lea.vmem [#allocation2], %s495
    %v497 = vld [vmem:[%s496] sm:$0xff]
    %v498 = vld [vmem:[%s496 + $0x8] sm:$0xff]
    %vm499 = vcmask 523264
    %v501 = vsel %vm499, 0.0, 0
    %503 = vmatprep.subr.mxu0 %v118
    %504 = vmatpush1.msra.mxu0 %v117
    %505 = vmatprep.subr.mxu0 %v120
    %506 = vmatpush1.msra.mxu0 %v119
    %507 = vmatprep.subr.mxu0 %v122
    %508 = vmatpush1.msra.mxu0 %v121
    %509 = vmatprep.subr.mxu0 %v124
    %510 = vmatpush1.msra.mxu0 %v123
    %511 = vmatprep.subr.mxu0 %v126
    %512 = vmatpush1.msra.mxu0 %v125
    %513 = vmatprep.subr.mxu0 %v128
    %514 = vmatpush1.msra.mxu0 %v127
    %515 = vmatprep.subr.mxu0 %v130
    %516 = vmatpush1.msra.mxu0 %v129
    %517 = vmatprep.subr.mxu0 %v132
    %518 = vmatpush1.msra.mxu0 %v131
    %519 = vmatprep.subr.mxu0 0.0
    %520 = vmatpush1.msra.mxu0 0.0
    %521 = vmatprep.subr.mxu0 0.0
    %522 = vmatpush1.msra.mxu0 0.0
    %523 = vmatprep.subr.mxu0 0.0
    %524 = vmatpush1.msra.mxu0 0.0
    %525 = vmatprep.subr.mxu0 0.0
    %526 = vmatpush1.msra.mxu0 0.0
    %527 = vmatprep.subr.mxu0 0.0
    %528 = vmatpush1.msra.mxu0 0.0
    %529 = vmatprep.subr.mxu0 0.0
    %530 = vmatpush1.msra.mxu0 0.0
    %531 = vmatprep.subr.mxu0 0.0
    %532 = vmatpush1.msra.mxu0 0.0
    %533 = vmatprep.subr.mxu0 0.0
    %534 = vmatpush1.msra.mxu0 0.0
    %535 = vmatprep.subr.mxu0 0.0
    %536 = vmatpush1.msra.mxu0 0.0
    %537 = vmatprep.subr.mxu0 0.0
    %538 = vmatpush1.msra.mxu0 0.0
    %539 = vmatprep.subr.mxu0 0.0
    %540 = vmatpush1.msra.mxu0 0.0
    %541 = vmatprep.subr.mxu0 0.0
    %542 = vmatpush1.msra.mxu0 0.0
    %543 = vmatprep.subr.mxu0 0.0
    %544 = vmatpush1.msra.mxu0 0.0
    %545 = vmatprep.subr.mxu0 0.0
    %546 = vmatpush1.msra.mxu0 0.0
    %547 = vmatprep.subr.mxu0 0.0
    %548 = vmatpush1.msra.mxu0 0.0
    %549 = vmatprep.subr.mxu0 0.0
    %550 = vmatpush1.msra.mxu0 0.0
    %551 = vmatprep.subr.mxu0 0.0
    %552 = vmatpush1.msra.mxu0 0.0
    %553 = vmatprep.subr.mxu0 0.0
    %554 = vmatpush1.msra.mxu0 0.0
    %555 = vmatprep.subr.mxu0 0.0
    %556 = vmatpush1.msra.mxu0 0.0
    %557 = vmatprep.subr.mxu0 0.0
    %558 = vmatpush1.msra.mxu0 0.0
    %559 = vmatprep.subr.mxu0 0.0
    %560 = vmatpush1.msra.mxu0 0.0
    %561 = vmatprep.subr.mxu0 0.0
    %562 = vmatpush1.msra.mxu0 0.0
    %563 = vmatprep.subr.mxu0 0.0
    %564 = vmatpush1.msra.mxu0 0.0
    %565 = vmatprep.subr.mxu0 0.0
    %566 = vmatpush1.msra.mxu0 0.0
    %567 = vmatprep.mubr.f32.mxu0 0.0
    %568 = vmatmul.mubr.f32.gmra.mrb[0].mxu0 %v501
    %v569 = vpop.f32.mrb[0].mxu0
    %v570 = vadd.f32 %v497, %v569
    %v571 = vpop.f32.mrb[0].mxu0
    %v572 = vadd.f32 %v498, %v571
    %573 = vdwg.mxu0
    %s574 = smul.u32 7, 4
    %s575 = smul.addr %s574, 8
    %s576 = scalar_lea.vmem [#allocation2], %s575
    %v577 = vld [vmem:[%s576 + $0x10] sm:$0xff]
    %v578 = vld [vmem:[%s576 + $0x18] sm:$0xff]
    %579 = vmatprep.subr.mxu0 %v134
    %580 = vmatpush1.msra.mxu0 %v133
    %581 = vmatprep.subr.mxu0 %v136
    %582 = vmatpush1.msra.mxu0 %v135
    %583 = vmatprep.subr.mxu0 %v138
    %584 = vmatpush1.msra.mxu0 %v137
    %585 = vmatprep.subr.mxu0 %v140
    %586 = vmatpush1.msra.mxu0 %v139
    %587 = vmatprep.subr.mxu0 %v142
    %588 = vmatpush1.msra.mxu0 %v141
    %589 = vmatprep.subr.mxu0 %v144
    %590 = vmatpush1.msra.mxu0 %v143
    %591 = vmatprep.subr.mxu0 %v146
    %592 = vmatpush1.msra.mxu0 %v145
    %593 = vmatprep.subr.mxu0 %v148
    %594 = vmatpush1.msra.mxu0 %v147
    %595 = vmatprep.subr.mxu0 0.0
    %596 = vmatpush1.msra.mxu0 0.0
    %597 = vmatprep.subr.mxu0 0.0
    %598 = vmatpush1.msra.mxu0 0.0
    %599 = vmatprep.subr.mxu0 0.0
    %600 = vmatpush1.msra.mxu0 0.0
    %601 = vmatprep.subr.mxu0 0.0
    %602 = vmatpush1.msra.mxu0 0.0
    %603 = vmatprep.subr.mxu0 0.0
    %604 = vmatpush1.msra.mxu0 0.0
    %605 = vmatprep.subr.mxu0 0.0
    %606 = vmatpush1.msra.mxu0 0.0
    %607 = vmatprep.subr.mxu0 0.0
    %608 = vmatpush1.msra.mxu0 0.0
    %609 = vmatprep.subr.mxu0 0.0
    %610 = vmatpush1.msra.mxu0 0.0
    %611 = vmatprep.subr.mxu0 0.0
    %612 = vmatpush1.msra.mxu0 0.0
    %613 = vmatprep.subr.mxu0 0.0
    %614 = vmatpush1.msra.mxu0 0.0
    %615 = vmatprep.subr.mxu0 0.0
    %616 = vmatpush1.msra.mxu0 0.0
    %617 = vmatprep.subr.mxu0 0.0
    %618 = vmatpush1.msra.mxu0 0.0
    %619 = vmatprep.subr.mxu0 0.0
    %620 = vmatpush1.msra.mxu0 0.0
    %621 = vmatprep.subr.mxu0 0.0
    %622 = vmatpush1.msra.mxu0 0.0
    %623 = vmatprep.subr.mxu0 0.0
    %624 = vmatpush1.msra.mxu0 0.0
    %625 = vmatprep.subr.mxu0 0.0
    %626 = vmatpush1.msra.mxu0 0.0
    %627 = vmatprep.subr.mxu0 0.0
    %628 = vmatpush1.msra.mxu0 0.0
    %629 = vmatprep.subr.mxu0 0.0
    %630 = vmatpush1.msra.mxu0 0.0
    %631 = vmatprep.subr.mxu0 0.0
    %632 = vmatpush1.msra.mxu0 0.0
    %633 = vmatprep.subr.mxu0 0.0
    %634 = vmatpush1.msra.mxu0 0.0
    %635 = vmatprep.subr.mxu0 0.0
    %636 = vmatpush1.msra.mxu0 0.0
    %637 = vmatprep.subr.mxu0 0.0
    %638 = vmatpush1.msra.mxu0 0.0
    %639 = vmatprep.subr.mxu0 0.0
    %640 = vmatpush1.msra.mxu0 0.0
    %641 = vmatprep.subr.mxu0 0.0
    %642 = vmatpush1.msra.mxu0 0.0
    %643 = vmatprep.mubr.f32.mxu0 0.0
    %644 = vmatmul.mubr.f32.gmra.mrb[0].mxu0 %v501
    %v645 = vpop.f32.mrb[0].mxu0
    %v646 = vadd.f32 %v577, %v645
    %v647 = vpop.f32.mrb[0].mxu0
    %v648 = vadd.f32 %v578, %v647
    %649 = vdwg.mxu0
    %v650 = vxor.u32 %v570, 2147483648
    %v651 = vmul.f32 %v650, 1.442695
    %v652 = vpow.pop %v651
    %v653 = vadd.f32 %v652, 1.0
    %v654 = vrcp.pop %v653
    %v655 = vmul.f32 1.0, %v654
    %v656 = vtanh.pop %v572
    %v657 = vxor.u32 %v572, 2147483648
    %v658 = vmul.f32 %v657, 1.442695
    %v659 = vpow.pop %v658
    %v660 = vadd.f32 %v659, 1.0
    %v661 = vrcp.pop %v660
    %v662 = vmul.f32 1.0, %v661
    %v663 = vmul.f32 %v655, 0.0
    %v664 = vmul.f32 %v655, %v656
    %666 = vrot.lane.b32.xlu0 %v664, 64
    %v667 = vpop.permute.xlu0 %666
    %v669 = vadd.f32 %v663, %v667
    %v670 = vtanh.pop %v669
    %v671 = vmul.f32 %v662, %v670
    %v672 = vxor.u32 %v646, 2147483648
    %v673 = vmul.f32 %v672, 1.442695
    %v674 = vpow.pop %v673
    %v675 = vadd.f32 %v674, 1.0
    %v676 = vrcp.pop %v675
    %v677 = vmul.f32 1.0, %v676
    %v678 = vtanh.pop %v648
    %v679 = vxor.u32 %v648, 2147483648
    %v680 = vmul.f32 %v679, 1.442695
    %v681 = vpow.pop %v680
    %v682 = vadd.f32 %v681, 1.0
    %v683 = vrcp.pop %v682
    %v684 = vmul.f32 1.0, %v683
    %v685 = vmul.f32 %v677, 0.0
    %v686 = vmul.f32 %v677, %v678
    %688 = vrot.lane.b32.xlu0 %v686, 64
    %v689 = vpop.permute.xlu0 %688
    %v691 = vadd.f32 %v685, %v689
    %v692 = vtanh.pop %v691
    %v693 = vmul.f32 %v684, %v692
    %v694 = vld [vmem:[%s1] sm:$0xff]
    %696 = vset.pattern.permute.xlu0 0
    %697 = vperm.xlu0 %696, %v694
    %v698 = vpop.permute.xlu0 %697
    %vm700 = vcmp.gt.f32.partialorder %v698, 0.0
    %s701 = scalar_lea.vmem %s1, 56
    %v702 = vld [vmem:[%s701] sm:$0xff]
    %704 = vset.pattern.permute.xlu0 0
    %705 = vperm.xlu0 %704, %v702
    %v706 = vpop.permute.xlu0 %705
    %vm708 = vcmp.gt.f32.partialorder %v706, 0.0
    %v709 = vsel %vm700, %v671, 0.0
    %v710 = vsel %vm700, %v669, 0.0
    %v711 = vsel %vm708, %v693, 0.0
    %v712 = vsel %vm708, %v691, 0.0
    %714 = vrot.lane.b32.xlu0 %v709, 64
    %v715 = vpop.permute.xlu0 %714
    %717 = vst.msk [vmem:[#allocation3] sm:$0xff] %vm499, %v715
    %s718 = scalar_lea.vmem [#allocation3], 56
    %vm719 = vcmask 1048064
    %720 = vst.msk [vmem:[%s718] sm:$0xff] %vm719, %v711
    %s721 = smul.u32 1, 4
    %s722 = smul.addr %s721, 8
    %s723 = scalar_lea.vmem [#allocation2], %s722
    %v724 = vld [vmem:[%s723] sm:$0xff]
    %v725 = vld [vmem:[%s723 + $0x8] sm:$0xff]
    %v726 = vsel %vm499, %v715, 0
    %728 = vmatprep.subr.mxu0 %v118
    %729 = vmatpush1.msra.mxu0 %v117
    %730 = vmatprep.subr.mxu0 %v120
    %731 = vmatpush1.msra.mxu0 %v119
    %732 = vmatprep.subr.mxu0 %v122
    %733 = vmatpush1.msra.mxu0 %v121
    %734 = vmatprep.subr.mxu0 %v124
    %735 = vmatpush1.msra.mxu0 %v123
    %736 = vmatprep.subr.mxu0 %v126
    %737 = vmatpush1.msra.mxu0 %v125
    %738 = vmatprep.subr.mxu0 %v128
    %739 = vmatpush1.msra.mxu0 %v127
    %740 = vmatprep.subr.mxu0 %v130
    %741 = vmatpush1.msra.mxu0 %v129
    %742 = vmatprep.subr.mxu0 %v132
    %743 = vmatpush1.msra.mxu0 %v131
    %744 = vmatprep.subr.mxu0 0.0
    %745 = vmatpush1.msra.mxu0 0.0
    %746 = vmatprep.subr.mxu0 0.0
    %747 = vmatpush1.msra.mxu0 0.0
    %748 = vmatprep.subr.mxu0 0.0
    %749 = vmatpush1.msra.mxu0 0.0
    %750 = vmatprep.subr.mxu0 0.0
    %751 = vmatpush1.msra.mxu0 0.0
    %752 = vmatprep.subr.mxu0 0.0
    %753 = vmatpush1.msra.mxu0 0.0
    %754 = vmatprep.subr.mxu0 0.0
    %755 = vmatpush1.msra.mxu0 0.0
    %756 = vmatprep.subr.mxu0 0.0
    %757 = vmatpush1.msra.mxu0 0.0
    %758 = vmatprep.subr.mxu0 0.0
    %759 = vmatpush1.msra.mxu0 0.0
    %760 = vmatprep.subr.mxu0 0.0
    %761 = vmatpush1.msra.mxu0 0.0
    %762 = vmatprep.subr.mxu0 0.0
    %763 = vmatpush1.msra.mxu0 0.0
    %764 = vmatprep.subr.mxu0 0.0
    %765 = vmatpush1.msra.mxu0 0.0
    %766 = vmatprep.subr.mxu0 0.0
    %767 = vmatpush1.msra.mxu0 0.0
    %768 = vmatprep.subr.mxu0 0.0
    %769 = vmatpush1.msra.mxu0 0.0
    %770 = vmatprep.subr.mxu0 0.0
    %771 = vmatpush1.msra.mxu0 0.0
    %772 = vmatprep.subr.mxu0 0.0
    %773 = vmatpush1.msra.mxu0 0.0
    %774 = vmatprep.subr.mxu0 0.0
    %775 = vmatpush1.msra.mxu0 0.0
    %776 = vmatprep.subr.mxu0 0.0
    %777 = vmatpush1.msra.mxu0 0.0
    %778 = vmatprep.subr.mxu0 0.0
    %779 = vmatpush1.msra.mxu0 0.0
    %780 = vmatprep.subr.mxu0 0.0
    %781 = vmatpush1.msra.mxu0 0.0
    %782 = vmatprep.subr.mxu0 0.0
    %783 = vmatpush1.msra.mxu0 0.0
    %784 = vmatprep.subr.mxu0 0.0
    %785 = vmatpush1.msra.mxu0 0.0
    %786 = vmatprep.subr.mxu0 0.0
    %787 = vmatpush1.msra.mxu0 0.0
    %788 = vmatprep.subr.mxu0 0.0
    %789 = vmatpush1.msra.mxu0 0.0
    %790 = vmatprep.subr.mxu0 0.0
    %791 = vmatpush1.msra.mxu0 0.0
    %792 = vmatprep.mubr.f32.mxu0 0.0
    %793 = vmatmul.mubr.f32.gmra.mrb[0].mxu0 %v726
    %v794 = vpop.f32.mrb[0].mxu0
    %v795 = vadd.f32 %v724, %v794
    %v796 = vpop.f32.mrb[0].mxu0
    %v797 = vadd.f32 %v725, %v796
    %798 = vdwg.mxu0
    %s799 = smul.u32 6, 4
    %s800 = smul.addr %s799, 8
    %s801 = scalar_lea.vmem [#allocation2], %s800
    %v802 = vld [vmem:[%s801 + $0x10] sm:$0xff]
    %v803 = vld [vmem:[%s801 + $0x18] sm:$0xff]
    %805 = vrot.lane.b32.xlu0 %v711, 64
    %v806 = vpop.permute.xlu0 %805
    %v807 = vsel %vm499, %v806, 0
    %809 = vmatprep.subr.mxu0 %v134
    %810 = vmatpush1.msra.mxu0 %v133
    %811 = vmatprep.subr.mxu0 %v136
    %812 = vmatpush1.msra.mxu0 %v135
    %813 = vmatprep.subr.mxu0 %v138
    %814 = vmatpush1.msra.mxu0 %v137
    %815 = vmatprep.subr.mxu0 %v140
    %816 = vmatpush1.msra.mxu0 %v139
    %817 = vmatprep.subr.mxu0 %v142
    %818 = vmatpush1.msra.mxu0 %v141
    %819 = vmatprep.subr.mxu0 %v144
    %820 = vmatpush1.msra.mxu0 %v143
    %821 = vmatprep.subr.mxu0 %v146
    %822 = vmatpush1.msra.mxu0 %v145
    %823 = vmatprep.subr.mxu0 %v148
    %824 = vmatpush1.msra.mxu0 %v147
    %825 = vmatprep.subr.mxu0 0.0
    %826 = vmatpush1.msra.mxu0 0.0
    %827 = vmatprep.subr.mxu0 0.0
    %828 = vmatpush1.msra.mxu0 0.0
    %829 = vmatprep.subr.mxu0 0.0
    %830 = vmatpush1.msra.mxu0 0.0
    %831 = vmatprep.subr.mxu0 0.0
    %832 = vmatpush1.msra.mxu0 0.0
    %833 = vmatprep.subr.mxu0 0.0
    %834 = vmatpush1.msra.mxu0 0.0
    %835 = vmatprep.subr.mxu0 0.0
    %836 = vmatpush1.msra.mxu0 0.0
    %837 = vmatprep.subr.mxu0 0.0
    %838 = vmatpush1.msra.mxu0 0.0
    %839 = vmatprep.subr.mxu0 0.0
    %840 = vmatpush1.msra.mxu0 0.0
    %841 = vmatprep.subr.mxu0 0.0
    %842 = vmatpush1.msra.mxu0 0.0
    %843 = vmatprep.subr.mxu0 0.0
    %844 = vmatpush1.msra.mxu0 0.0
    %845 = vmatprep.subr.mxu0 0.0
    %846 = vmatpush1.msra.mxu0 0.0
    %847 = vmatprep.subr.mxu0 0.0
    %848 = vmatpush1.msra.mxu0 0.0
    %849 = vmatprep.subr.mxu0 0.0
    %850 = vmatpush1.msra.mxu0 0.0
    %851 = vmatprep.subr.mxu0 0.0
    %852 = vmatpush1.msra.mxu0 0.0
    %853 = vmatprep.subr.mxu0 0.0
    %854 = vmatpush1.msra.mxu0 0.0
    %855 = vmatprep.subr.mxu0 0.0
    %856 = vmatpush1.msra.mxu0 0.0
    %857 = vmatprep.subr.mxu0 0.0
    %858 = vmatpush1.msra.mxu0 0.0
    %859 = vmatprep.subr.mxu0 0.0
    %860 = vmatpush1.msra.mxu0 0.0
    %861 = vmatprep.subr.mxu0 0.0
    %862 = vmatpush1.msra.mxu0 0.0
    %863 = vmatprep.subr.mxu0 0.0
    %864 = vmatpush1.msra.mxu0 0.0
    %865 = vmatprep.subr.mxu0 0.0
    %866 = vmatpush1.msra.mxu0 0.0
    %867 = vmatprep.subr.mxu0 0.0
    %868 = vmatpush1.msra.mxu0 0.0
    %869 = vmatprep.subr.mxu0 0.0
    %870 = vmatpush1.msra.mxu0 0.0
    %871 = vmatprep.subr.mxu0 0.0
    %872 = vmatpush1.msra.mxu0 0.0
    %873 = vmatprep.mubr.f32.mxu0 0.0
    %874 = vmatmul.mubr.f32.gmra.mrb[0].mxu0 %v807
    %v875 = vpop.f32.mrb[0].mxu0
    %v876 = vadd.f32 %v802, %v875
    %v877 = vpop.f32.mrb[0].mxu0
    %v878 = vadd.f32 %v803, %v877
    %879 = vdwg.mxu0
    %v880 = vxor.u32 %v795, 2147483648
    %v881 = vmul.f32 %v880, 1.442695
    %v882 = vpow.pop %v881
    %v883 = vadd.f32 %v882, 1.0
    %v884 = vrcp.pop %v883
    %v885 = vmul.f32 1.0, %v884
    %v886 = vtanh.pop %v797
    %v887 = vxor.u32 %v797, 2147483648
    %v888 = vmul.f32 %v887, 1.442695
    %v889 = vpow.pop %v888
    %v890 = vadd.f32 %v889, 1.0
    %v891 = vrcp.pop %v890
    %v892 = vmul.f32 1.0, %v891
    %v893 = vmul.f32 %v885, %v710
    %v894 = vmul.f32 %v885, %v886
    %896 = vrot.lane.b32.xlu0 %v894, 64
    %v897 = vpop.permute.xlu0 %896
    %v899 = vadd.f32 %v893, %v897
    %v900 = vtanh.pop %v899
    %v901 = vmul.f32 %v892, %v900
    %v902 = vxor.u32 %v876, 2147483648
    %v903 = vmul.f32 %v902, 1.442695
    %v904 = vpow.pop %v903
    %v905 = vadd.f32 %v904, 1.0
    %v906 = vrcp.pop %v905
    %v907 = vmul.f32 1.0, %v906
    %v908 = vtanh.pop %v878
    %v909 = vxor.u32 %v878, 2147483648
    %v910 = vmul.f32 %v909, 1.442695
    %v911 = vpow.pop %v910
    %v912 = vadd.f32 %v911, 1.0
    %v913 = vrcp.pop %v912
    %v914 = vmul.f32 1.0, %v913
    %v915 = vmul.f32 %v907, %v712
    %v916 = vmul.f32 %v907, %v908
    %918 = vrot.lane.b32.xlu0 %v916, 64
    %v919 = vpop.permute.xlu0 %918
    %v921 = vadd.f32 %v915, %v919
    %v922 = vtanh.pop %v921
    %v923 = vmul.f32 %v914, %v922
    %s924 = scalar_lea.vmem %s1, 8
    %v925 = vld [vmem:[%s924] sm:$0xff]
    %927 = vset.pattern.permute.xlu0 0
    %928 = vperm.xlu0 %927, %v925
    %v929 = vpop.permute.xlu0 %928
    %vm931 = vcmp.gt.f32.partialorder %v929, 0.0
    %s932 = scalar_lea.vmem %s1, 48
    %v933 = vld [vmem:[%s932] sm:$0xff]
    %935 = vset.pattern.permute.xlu0 0
    %936 = vperm.xlu0 %935, %v933
    %v937 = vpop.permute.xlu0 %936
    %vm939 = vcmp.gt.f32.partialorder %v937, 0.0
    %v940 = vsel %vm931, %v901, %v709
    %v941 = vsel %vm931, %v899, %v710
    %v942 = vsel %vm939, %v923, %v711
    %v943 = vsel %vm939, %v921, %v712
    %v944 = vsel %vm931, %v901, 0.0
    %946 = vrot.lane.b32.xlu0 %v944, 64
    %v947 = vpop.permute.xlu0 %946
    %s949 = scalar_lea.vmem [#allocation3], 8
    %950 = vst.msk [vmem:[%s949] sm:$0xff] %vm499, %v947
    %v951 = vsel %vm939, %v923, 0.0
    %s952 = scalar_lea.vmem [#allocation3], 48
    %953 = vst.msk [vmem:[%s952] sm:$0xff] %vm719, %v951
    %s954 = smul.u32 2, 4
    %s955 = smul.addr %s954, 8
    %s956 = scalar_lea.vmem [#allocation2], %s955
    %v957 = vld [vmem:[%s956] sm:$0xff]
    %v958 = vld [vmem:[%s956 + $0x8] sm:$0xff]
    %960 = vrot.lane.b32.xlu0 %v940, 64
    %v961 = vpop.permute.xlu0 %960
    %v962 = vsel %vm499, %v961, 0
    %964 = vmatprep.subr.mxu0 %v118
    %965 = vmatpush1.msra.mxu0 %v117
    %966 = vmatprep.subr.mxu0 %v120
    %967 = vmatpush1.msra.mxu0 %v119
    %968 = vmatprep.subr.mxu0 %v122
    %969 = vmatpush1.msra.mxu0 %v121
    %970 = vmatprep.subr.mxu0 %v124
    %971 = vmatpush1.msra.mxu0 %v123
    %972 = vmatprep.subr.mxu0 %v126
    %973 = vmatpush1.msra.mxu0 %v125
    %974 = vmatprep.subr.mxu0 %v128
    %975 = vmatpush1.msra.mxu0 %v127
    %976 = vmatprep.subr.mxu0 %v130
    %977 = vmatpush1.msra.mxu0 %v129
    %978 = vmatprep.subr.mxu0 %v132
    %979 = vmatpush1.msra.mxu0 %v131
    %980 = vmatprep.subr.mxu0 0.0
    %981 = vmatpush1.msra.mxu0 0.0
    %982 = vmatprep.subr.mxu0 0.0
    %983 = vmatpush1.msra.mxu0 0.0
    %984 = vmatprep.subr.mxu0 0.0
    %985 = vmatpush1.msra.mxu0 0.0
    %986 = vmatprep.subr.mxu0 0.0
    %987 = vmatpush1.msra.mxu0 0.0
    %988 = vmatprep.subr.mxu0 0.0
    %989 = vmatpush1.msra.mxu0 0.0
    %990 = vmatprep.subr.mxu0 0.0
    %991 = vmatpush1.msra.mxu0 0.0
    %992 = vmatprep.subr.mxu0 0.0
    %993 = vmatpush1.msra.mxu0 0.0
    %994 = vmatprep.subr.mxu0 0.0
    %995 = vmatpush1.msra.mxu0 0.0
    %996 = vmatprep.subr.mxu0 0.0
    %997 = vmatpush1.msra.mxu0 0.0
    %998 = vmatprep.subr.mxu0 0.0
    %999 = vmatpush1.msra.mxu0 0.0
    %1000 = vmatprep.subr.mxu0 0.0
    %1001 = vmatpush1.msra.mxu0 0.0
    %1002 = vmatprep.subr.mxu0 0.0
    %1003 = vmatpush1.msra.mxu0 0.0
    %1004 = vmatprep.subr.mxu0 0.0
    %1005 = vmatpush1.msra.mxu0 0.0
    %1006 = vmatprep.subr.mxu0 0.0
    %1007 = vmatpush1.msra.mxu0 0.0
    %1008 = vmatprep.subr.mxu0 0.0
    %1009 = vmatpush1.msra.mxu0 0.0
    %1010 = vmatprep.subr.mxu0 0.0
    %1011 = vmatpush1.msra.mxu0 0.0
    %1012 = vmatprep.subr.mxu0 0.0
    %1013 = vmatpush1.msra.mxu0 0.0
    %1014 = vmatprep.subr.mxu0 0.0
    %1015 = vmatpush1.msra.mxu0 0.0
    %1016 = vmatprep.subr.mxu0 0.0
    %1017 = vmatpush1.msra.mxu0 0.0
    %1018 = vmatprep.subr.mxu0 0.0
    %1019 = vmatpush1.msra.mxu0 0.0
    %1020 = vmatprep.subr.mxu0 0.0
    %1021 = vmatpush1.msra.mxu0 0.0
    %1022 = vmatprep.subr.mxu0 0.0
    %1023 = vmatpush1.msra.mxu0 0.0
    %1024 = vmatprep.subr.mxu0 0.0
    %1025 = vmatpush1.msra.mxu0 0.0
    %1026 = vmatprep.subr.mxu0 0.0
    %1027 = vmatpush1.msra.mxu0 0.0
    %1028 = vmatprep.mubr.f32.mxu0 0.0
    %1029 = vmatmul.mubr.f32.gmra.mrb[0].mxu0 %v962
    %v1030 = vpop.f32.mrb[0].mxu0
    %v1031 = vadd.f32 %v957, %v1030
    %v1032 = vpop.f32.mrb[0].mxu0
    %v1033 = vadd.f32 %v958, %v1032
    %1034 = vdwg.mxu0
    %s1035 = smul.u32 5, 4
    %s1036 = smul.addr %s1035, 8
    %s1037 = scalar_lea.vmem [#allocation2], %s1036
    %v1038 = vld [vmem:[%s1037 + $0x10] sm:$0xff]
    %v1039 = vld [vmem:[%s1037 + $0x18] sm:$0xff]
    %1041 = vrot.lane.b32.xlu0 %v942, 64
    %v1042 = vpop.permute.xlu0 %1041
    %v1043 = vsel %vm499, %v1042, 0
    %1045 = vmatprep.subr.mxu0 %v134
    %1046 = vmatpush1.msra.mxu0 %v133
    %1047 = vmatprep.subr.mxu0 %v136
    %1048 = vmatpush1.msra.mxu0 %v135
    %1049 = vmatprep.subr.mxu0 %v138
    %1050 = vmatpush1.msra.mxu0 %v137
    %1051 = vmatprep.subr.mxu0 %v140
    %1052 = vmatpush1.msra.mxu0 %v139
    %1053 = vmatprep.subr.mxu0 %v142
    %1054 = vmatpush1.msra.mxu0 %v141
    %1055 = vmatprep.subr.mxu0 %v144
    %1056 = vmatpush1.msra.mxu0 %v143
    %1057 = vmatprep.subr.mxu0 %v146
    %1058 = vmatpush1.msra.mxu0 %v145
    %1059 = vmatprep.subr.mxu0 %v148
    %1060 = vmatpush1.msra.mxu0 %v147
    %1061 = vmatprep.subr.mxu0 0.0
    %1062 = vmatpush1.msra.mxu0 0.0
    %1063 = vmatprep.subr.mxu0 0.0
    %1064 = vmatpush1.msra.mxu0 0.0
    %1065 = vmatprep.subr.mxu0 0.0
    %1066 = vmatpush1.msra.mxu0 0.0
    %1067 = vmatprep.subr.mxu0 0.0
    %1068 = vmatpush1.msra.mxu0 0.0
    %1069 = vmatprep.subr.mxu0 0.0
    %1070 = vmatpush1.msra.mxu0 0.0
    %1071 = vmatprep.subr.mxu0 0.0
    %1072 = vmatpush1.msra.mxu0 0.0
    %1073 = vmatprep.subr.mxu0 0.0
    %1074 = vmatpush1.msra.mxu0 0.0
    %1075 = vmatprep.subr.mxu0 0.0
    %1076 = vmatpush1.msra.mxu0 0.0
    %1077 = vmatprep.subr.mxu0 0.0
    %1078 = vmatpush1.msra.mxu0 0.0
    %1079 = vmatprep.subr.mxu0 0.0
    %1080 = vmatpush1.msra.mxu0 0.0
    %1081 = vmatprep.subr.mxu0 0.0
    %1082 = vmatpush1.msra.mxu0 0.0
    %1083 = vmatprep.subr.mxu0 0.0
    %1084 = vmatpush1.msra.mxu0 0.0
    %1085 = vmatprep.subr.mxu0 0.0
    %1086 = vmatpush1.msra.mxu0 0.0
    %1087 = vmatprep.subr.mxu0 0.0
    %1088 = vmatpush1.msra.mxu0 0.0
    %1089 = vmatprep.subr.mxu0 0.0
    %1090 = vmatpush1.msra.mxu0 0.0
    %1091 = vmatprep.subr.mxu0 0.0
    %1092 = vmatpush1.msra.mxu0 0.0
    %1093 = vmatprep.subr.mxu0 0.0
    %1094 = vmatpush1.msra.mxu0 0.0
    %1095 = vmatprep.subr.mxu0 0.0
    %1096 = vmatpush1.msra.mxu0 0.0
    %1097 = vmatprep.subr.mxu0 0.0
    %1098 = vmatpush1.msra.mxu0 0.0
    %1099 = vmatprep.subr.mxu0 0.0
    %1100 = vmatpush1.msra.mxu0 0.0
    %1101 = vmatprep.subr.mxu0 0.0
    %1102 = vmatpush1.msra.mxu0 0.0
    %1103 = vmatprep.subr.mxu0 0.0
    %1104 = vmatpush1.msra.mxu0 0.0
    %1105 = vmatprep.subr.mxu0 0.0
    %1106 = vmatpush1.msra.mxu0 0.0
    %1107 = vmatprep.subr.mxu0 0.0
    %1108 = vmatpush1.msra.mxu0 0.0
    %1109 = vmatprep.mubr.f32.mxu0 0.0
    %1110 = vmatmul.mubr.f32.gmra.mrb[0].mxu0 %v1043
    %v1111 = vpop.f32.mrb[0].mxu0
    %v1112 = vadd.f32 %v1038, %v1111
    %v1113 = vpop.f32.mrb[0].mxu0
    %v1114 = vadd.f32 %v1039, %v1113
    %1115 = vdwg.mxu0
    %v1116 = vxor.u32 %v1031, 2147483648
    %v1117 = vmul.f32 %v1116, 1.442695
    %v1118 = vpow.pop %v1117
    %v1119 = vadd.f32 %v1118, 1.0
    %v1120 = vrcp.pop %v1119
    %v1121 = vmul.f32 1.0, %v1120
    %v1122 = vtanh.pop %v1033
    %v1123 = vxor.u32 %v1033, 2147483648
    %v1124 = vmul.f32 %v1123, 1.442695
    %v1125 = vpow.pop %v1124
    %v1126 = vadd.f32 %v1125, 1.0
    %v1127 = vrcp.pop %v1126
    %v1128 = vmul.f32 1.0, %v1127
    %v1129 = vmul.f32 %v1121, %v941
    %v1130 = vmul.f32 %v1121, %v1122
    %1132 = vrot.lane.b32.xlu0 %v1130, 64
    %v1133 = vpop.permute.xlu0 %1132
    %v1135 = vadd.f32 %v1129, %v1133
    %v1136 = vtanh.pop %v1135
    %v1137 = vmul.f32 %v1128, %v1136
    %v1138 = vxor.u32 %v1112, 2147483648
    %v1139 = vmul.f32 %v1138, 1.442695
    %v1140 = vpow.pop %v1139
    %v1141 = vadd.f32 %v1140, 1.0
    %v1142 = vrcp.pop %v1141
    %v1143 = vmul.f32 1.0, %v1142
    %v1144 = vtanh.pop %v1114
    %v1145 = vxor.u32 %v1114, 2147483648
    %v1146 = vmul.f32 %v1145, 1.442695
    %v1147 = vpow.pop %v1146
    %v1148 = vadd.f32 %v1147, 1.0
    %v1149 = vrcp.pop %v1148
    %v1150 = vmul.f32 1.0, %v1149
    %v1151 = vmul.f32 %v1143, %v943
    %v1152 = vmul.f32 %v1143, %v1144
    %1154 = vrot.lane.b32.xlu0 %v1152, 64
    %v1155 = vpop.permute.xlu0 %1154
    %v1157 = vadd.f32 %v1151, %v1155
    %v1158 = vtanh.pop %v1157
    %v1159 = vmul.f32 %v1150, %v1158
    %s1160 = scalar_lea.vmem %s1, 16
    %v1161 = vld [vmem:[%s1160] sm:$0xff]
    %1163 = vset.pattern.permute.xlu0 0
    %1164 = vperm.xlu0 %1163, %v1161
    %v1165 = vpop.permute.xlu0 %1164
    %vm1167 = vcmp.gt.f32.partialorder %v1165, 0.0
    %s1168 = scalar_lea.vmem %s1, 40
    %v1169 = vld [vmem:[%s1168] sm:$0xff]
    %1171 = vset.pattern.permute.xlu0 0
    %1172 = vperm.xlu0 %1171, %v1169
    %v1173 = vpop.permute.xlu0 %1172
    %vm1175 = vcmp.gt.f32.partialorder %v1173, 0.0
    %v1176 = vsel %vm1167, %v1137, %v940
    %v1177 = vsel %vm1167, %v1135, %v941
    %v1178 = vsel %vm1175, %v1159, %v942
    %v1179 = vsel %vm1175, %v1157, %v943
    %v1180 = vsel %vm1167, %v1137, 0.0
    %1182 = vrot.lane.b32.xlu0 %v1180, 64
    %v1183 = vpop.permute.xlu0 %1182
    %s1185 = scalar_lea.vmem [#allocation3], 16
    %1186 = vst.msk [vmem:[%s1185] sm:$0xff] %vm499, %v1183
    %v1187 = vsel %vm1175, %v1159, 0.0
    %s1188 = scalar_lea.vmem [#allocation3], 40
    %1189 = vst.msk [vmem:[%s1188] sm:$0xff] %vm719, %v1187
    %s1190 = smul.u32 3, 4
    %s1191 = smul.addr %s1190, 8
    %s1192 = scalar_lea.vmem [#allocation2], %s1191
    %v1193 = vld [vmem:[%s1192] sm:$0xff]
    %v1194 = vld [vmem:[%s1192 + $0x8] sm:$0xff]
    %1196 = vrot.lane.b32.xlu0 %v1176, 64
    %v1197 = vpop.permute.xlu0 %1196
    %v1198 = vsel %vm499, %v1197, 0
    %1200 = vmatprep.subr.mxu0 %v118
    %1201 = vmatpush1.msra.mxu0 %v117
    %1202 = vmatprep.subr.mxu0 %v120
    %1203 = vmatpush1.msra.mxu0 %v119
    %1204 = vmatprep.subr.mxu0 %v122
    %1205 = vmatpush1.msra.mxu0 %v121
    %1206 = vmatprep.subr.mxu0 %v124
    %1207 = vmatpush1.msra.mxu0 %v123
    %1208 = vmatprep.subr.mxu0 %v126
    %1209 = vmatpush1.msra.mxu0 %v125
    %1210 = vmatprep.subr.mxu0 %v128
    %1211 = vmatpush1.msra.mxu0 %v127
    %1212 = vmatprep.subr.mxu0 %v130
    %1213 = vmatpush1.msra.mxu0 %v129
    %1214 = vmatprep.subr.mxu0 %v132
    %1215 = vmatpush1.msra.mxu0 %v131
    %1216 = vmatprep.subr.mxu0 0.0
    %1217 = vmatpush1.msra.mxu0 0.0
    %1218 = vmatprep.subr.mxu0 0.0
    %1219 = vmatpush1.msra.mxu0 0.0
    %1220 = vmatprep.subr.mxu0 0.0
    %1221 = vmatpush1.msra.mxu0 0.0
    %1222 = vmatprep.subr.mxu0 0.0
    %1223 = vmatpush1.msra.mxu0 0.0
    %1224 = vmatprep.subr.mxu0 0.0
    %1225 = vmatpush1.msra.mxu0 0.0
    %1226 = vmatprep.subr.mxu0 0.0
    %1227 = vmatpush1.msra.mxu0 0.0
    %1228 = vmatprep.subr.mxu0 0.0
    %1229 = vmatpush1.msra.mxu0 0.0
    %1230 = vmatprep.subr.mxu0 0.0
    %1231 = vmatpush1.msra.mxu0 0.0
    %1232 = vmatprep.subr.mxu0 0.0
    %1233 = vmatpush1.msra.mxu0 0.0
    %1234 = vmatprep.subr.mxu0 0.0
    %1235 = vmatpush1.msra.mxu0 0.0
    %1236 = vmatprep.subr.mxu0 0.0
    %1237 = vmatpush1.msra.mxu0 0.0
    %1238 = vmatprep.subr.mxu0 0.0
    %1239 = vmatpush1.msra.mxu0 0.0
    %1240 = vmatprep.subr.mxu0 0.0
    %1241 = vmatpush1.msra.mxu0 0.0
    %1242 = vmatprep.subr.mxu0 0.0
    %1243 = vmatpush1.msra.mxu0 0.0
    %1244 = vmatprep.subr.mxu0 0.0
    %1245 = vmatpush1.msra.mxu0 0.0
    %1246 = vmatprep.subr.mxu0 0.0
    %1247 = vmatpush1.msra.mxu0 0.0
    %1248 = vmatprep.subr.mxu0 0.0
    %1249 = vmatpush1.msra.mxu0 0.0
    %1250 = vmatprep.subr.mxu0 0.0
    %1251 = vmatpush1.msra.mxu0 0.0
    %1252 = vmatprep.subr.mxu0 0.0
    %1253 = vmatpush1.msra.mxu0 0.0
    %1254 = vmatprep.subr.mxu0 0.0
    %1255 = vmatpush1.msra.mxu0 0.0
    %1256 = vmatprep.subr.mxu0 0.0
    %1257 = vmatpush1.msra.mxu0 0.0
    %1258 = vmatprep.subr.mxu0 0.0
    %1259 = vmatpush1.msra.mxu0 0.0
    %1260 = vmatprep.subr.mxu0 0.0
    %1261 = vmatpush1.msra.mxu0 0.0
    %1262 = vmatprep.subr.mxu0 0.0
    %1263 = vmatpush1.msra.mxu0 0.0
    %1264 = vmatprep.mubr.f32.mxu0 0.0
    %1265 = vmatmul.mubr.f32.gmra.mrb[0].mxu0 %v1198
    %v1266 = vpop.f32.mrb[0].mxu0
    %v1267 = vadd.f32 %v1193, %v1266
    %v1268 = vpop.f32.mrb[0].mxu0
    %v1269 = vadd.f32 %v1194, %v1268
    %1270 = vdwg.mxu0
    %s1271 = smul.u32 4, 4
    %s1272 = smul.addr %s1271, 8
    %s1273 = scalar_lea.vmem [#allocation2], %s1272
    %v1274 = vld [vmem:[%s1273 + $0x10] sm:$0xff]
    %v1275 = vld [vmem:[%s1273 + $0x18] sm:$0xff]
    %1277 = vrot.lane.b32.xlu0 %v1178, 64
    %v1278 = vpop.permute.xlu0 %1277
    %v1279 = vsel %vm499, %v1278, 0
    %1281 = vmatprep.subr.mxu0 %v134
    %1282 = vmatpush1.msra.mxu0 %v133
    %1283 = vmatprep.subr.mxu0 %v136
    %1284 = vmatpush1.msra.mxu0 %v135
    %1285 = vmatprep.subr.mxu0 %v138
    %1286 = vmatpush1.msra.mxu0 %v137
    %1287 = vmatprep.subr.mxu0 %v140
    %1288 = vmatpush1.msra.mxu0 %v139
    %1289 = vmatprep.subr.mxu0 %v142
    %1290 = vmatpush1.msra.mxu0 %v141
    %1291 = vmatprep.subr.mxu0 %v144
    %1292 = vmatpush1.msra.mxu0 %v143
    %1293 = vmatprep.subr.mxu0 %v146
    %1294 = vmatpush1.msra.mxu0 %v145
    %1295 = vmatprep.subr.mxu0 %v148
    %1296 = vmatpush1.msra.mxu0 %v147
    %1297 = vmatprep.subr.mxu0 0.0
    %1298 = vmatpush1.msra.mxu0 0.0
    %1299 = vmatprep.subr.mxu0 0.0
    %1300 = vmatpush1.msra.mxu0 0.0
    %1301 = vmatprep.subr.mxu0 0.0
    %1302 = vmatpush1.msra.mxu0 0.0
    %1303 = vmatprep.subr.mxu0 0.0
    %1304 = vmatpush1.msra.mxu0 0.0
    %1305 = vmatprep.subr.mxu0 0.0
    %1306 = vmatpush1.msra.mxu0 0.0
    %1307 = vmatprep.subr.mxu0 0.0
    %1308 = vmatpush1.msra.mxu0 0.0
    %1309 = vmatprep.subr.mxu0 0.0
    %1310 = vmatpush1.msra.mxu0 0.0
    %1311 = vmatprep.subr.mxu0 0.0
    %1312 = vmatpush1.msra.mxu0 0.0
    %1313 = vmatprep.subr.mxu0 0.0
    %1314 = vmatpush1.msra.mxu0 0.0
    %1315 = vmatprep.subr.mxu0 0.0
    %1316 = vmatpush1.msra.mxu0 0.0
    %1317 = vmatprep.subr.mxu0 0.0
    %1318 = vmatpush1.msra.mxu0 0.0
    %1319 = vmatprep.subr.mxu0 0.0
    %1320 = vmatpush1.msra.mxu0 0.0
    %1321 = vmatprep.subr.mxu0 0.0
    %1322 = vmatpush1.msra.mxu0 0.0
    %1323 = vmatprep.subr.mxu0 0.0
    %1324 = vmatpush1.msra.mxu0 0.0
    %1325 = vmatprep.subr.mxu0 0.0
    %1326 = vmatpush1.msra.mxu0 0.0
    %1327 = vmatprep.subr.mxu0 0.0
    %1328 = vmatpush1.msra.mxu0 0.0
    %1329 = vmatprep.subr.mxu0 0.0
    %1330 = vmatpush1.msra.mxu0 0.0
    %1331 = vmatprep.subr.mxu0 0.0
    %1332 = vmatpush1.msra.mxu0 0.0
    %1333 = vmatprep.subr.mxu0 0.0
    %1334 = vmatpush1.msra.mxu0 0.0
    %1335 = vmatprep.subr.mxu0 0.0
    %1336 = vmatpush1.msra.mxu0 0.0
    %1337 = vmatprep.subr.mxu0 0.0
    %1338 = vmatpush1.msra.mxu0 0.0
    %1339 = vmatprep.subr.mxu0 0.0
    %1340 = vmatpush1.msra.mxu0 0.0
    %1341 = vmatprep.subr.mxu0 0.0
    %1342 = vmatpush1.msra.mxu0 0.0
    %1343 = vmatprep.subr.mxu0 0.0
    %1344 = vmatpush1.msra.mxu0 0.0
    %1345 = vmatprep.mubr.f32.mxu0 0.0
    %1346 = vmatmul.mubr.f32.gmra.mrb[0].mxu0 %v1279
    %v1347 = vpop.f32.mrb[0].mxu0
    %v1348 = vadd.f32 %v1274, %v1347
    %v1349 = vpop.f32.mrb[0].mxu0
    %v1350 = vadd.f32 %v1275, %v1349
    %1351 = vdwg.mxu0
    %v1352 = vxor.u32 %v1267, 2147483648
    %v1353 = vmul.f32 %v1352, 1.442695
    %v1354 = vpow.pop %v1353
    %v1355 = vadd.f32 %v1354, 1.0
    %v1356 = vrcp.pop %v1355
    %v1357 = vmul.f32 1.0, %v1356
    %v1358 = vtanh.pop %v1269
    %v1359 = vxor.u32 %v1269, 2147483648
    %v1360 = vmul.f32 %v1359, 1.442695
    %v1361 = vpow.pop %v1360
    %v1362 = vadd.f32 %v1361, 1.0
    %v1363 = vrcp.pop %v1362
    %v1364 = vmul.f32 1.0, %v1363
    %v1365 = vmul.f32 %v1357, %v1177
    %v1366 = vmul.f32 %v1357, %v1358
    %1368 = vrot.lane.b32.xlu0 %v1366, 64
    %v1369 = vpop.permute.xlu0 %1368
    %v1371 = vadd.f32 %v1365, %v1369
    %v1372 = vtanh.pop %v1371
    %v1373 = vmul.f32 %v1364, %v1372
    %v1374 = vxor.u32 %v1348, 2147483648
    %v1375 = vmul.f32 %v1374, 1.442695
    %v1376 = vpow.pop %v1375
    %v1377 = vadd.f32 %v1376, 1.0
    %v1378 = vrcp.pop %v1377
    %v1379 = vmul.f32 1.0, %v1378
    %v1380 = vtanh.pop %v1350
    %v1381 = vxor.u32 %v1350, 2147483648
    %v1382 = vmul.f32 %v1381, 1.442695
    %v1383 = vpow.pop %v1382
    %v1384 = vadd.f32 %v1383, 1.0
    %v1385 = vrcp.pop %v1384
    %v1386 = vmul.f32 1.0, %v1385
    %v1387 = vmul.f32 %v1379, %v1179
    %v1388 = vmul.f32 %v1379, %v1380
    %1390 = vrot.lane.b32.xlu0 %v1388, 64
    %v1391 = vpop.permute.xlu0 %1390
    %v1393 = vadd.f32 %v1387, %v1391
    %v1394 = vtanh.pop %v1393
    %v1395 = vmul.f32 %v1386, %v1394
    %s1396 = scalar_lea.vmem %s1, 24
    %v1397 = vld [vmem:[%s1396] sm:$0xff]
    %1399 = vset.pattern.permute.xlu0 0
    %1400 = vperm.xlu0 %1399, %v1397
    %v1401 = vpop.permute.xlu0 %1400
    %vm1403 = vcmp.gt.f32.partialorder %v1401, 0.0
    %s1404 = scalar_lea.vmem %s1, 32
    %v1405 = vld [vmem:[%s1404] sm:$0xff]
    %1407 = vset.pattern.permute.xlu0 0
    %1408 = vperm.xlu0 %1407, %v1405
    %v1409 = vpop.permute.xlu0 %1408
    %vm1411 = vcmp.gt.f32.partialorder %v1409, 0.0
    %v1412 = vsel %vm1403, %v1373, %v1176
    %v1413 = vsel %vm1403, %v1371, %v1177
    %v1414 = vsel %vm1411, %v1395, %v1178
    %v1415 = vsel %vm1411, %v1393, %v1179
    %v1416 = vsel %vm1403, %v1373, 0.0
    %1418 = vrot.lane.b32.xlu0 %v1416, 64
    %v1419 = vpop.permute.xlu0 %1418
    %s1421 = scalar_lea.vmem [#allocation3], 24
    %1422 = vst.msk [vmem:[%s1421] sm:$0xff] %vm499, %v1419
    %v1423 = vsel %vm1411, %v1395, 0.0
    %s1424 = scalar_lea.vmem [#allocation3], 32
    %1425 = vst.msk [vmem:[%s1424] sm:$0xff] %vm719, %v1423
    %v1426 = vld [vmem:[%s1273] sm:$0xff]
    %v1427 = vld [vmem:[%s1273 + $0x8] sm:$0xff]
    %1429 = vrot.lane.b32.xlu0 %v1412, 64
    %v1430 = vpop.permute.xlu0 %1429
    %v1431 = vsel %vm499, %v1430, 0
    %1433 = vmatprep.subr.mxu0 %v118
    %1434 = vmatpush1.msra.mxu0 %v117
    %1435 = vmatprep.subr.mxu0 %v120
    %1436 = vmatpush1.msra.mxu0 %v119
    %1437 = vmatprep.subr.mxu0 %v122
    %1438 = vmatpush1.msra.mxu0 %v121
    %1439 = vmatprep.subr.mxu0 %v124
    %1440 = vmatpush1.msra.mxu0 %v123
    %1441 = vmatprep.subr.mxu0 %v126
    %1442 = vmatpush1.msra.mxu0 %v125
    %1443 = vmatprep.subr.mxu0 %v128
    %1444 = vmatpush1.msra.mxu0 %v127
    %1445 = vmatprep.subr.mxu0 %v130
    %1446 = vmatpush1.msra.mxu0 %v129
    %1447 = vmatprep.subr.mxu0 %v132
    %1448 = vmatpush1.msra.mxu0 %v131
    %1449 = vmatprep.subr.mxu0 0.0
    %1450 = vmatpush1.msra.mxu0 0.0
    %1451 = vmatprep.subr.mxu0 0.0
    %1452 = vmatpush1.msra.mxu0 0.0
    %1453 = vmatprep.subr.mxu0 0.0
    %1454 = vmatpush1.msra.mxu0 0.0
    %1455 = vmatprep.subr.mxu0 0.0
    %1456 = vmatpush1.msra.mxu0 0.0
    %1457 = vmatprep.subr.mxu0 0.0
    %1458 = vmatpush1.msra.mxu0 0.0
    %1459 = vmatprep.subr.mxu0 0.0
    %1460 = vmatpush1.msra.mxu0 0.0
    %1461 = vmatprep.subr.mxu0 0.0
    %1462 = vmatpush1.msra.mxu0 0.0
    %1463 = vmatprep.subr.mxu0 0.0
    %1464 = vmatpush1.msra.mxu0 0.0
    %1465 = vmatprep.subr.mxu0 0.0
    %1466 = vmatpush1.msra.mxu0 0.0
    %1467 = vmatprep.subr.mxu0 0.0
    %1468 = vmatpush1.msra.mxu0 0.0
    %1469 = vmatprep.subr.mxu0 0.0
    %1470 = vmatpush1.msra.mxu0 0.0
    %1471 = vmatprep.subr.mxu0 0.0
    %1472 = vmatpush1.msra.mxu0 0.0
    %1473 = vmatprep.subr.mxu0 0.0
    %1474 = vmatpush1.msra.mxu0 0.0
    %1475 = vmatprep.subr.mxu0 0.0
    %1476 = vmatpush1.msra.mxu0 0.0
    %1477 = vmatprep.subr.mxu0 0.0
    %1478 = vmatpush1.msra.mxu0 0.0
    %1479 = vmatprep.subr.mxu0 0.0
    %1480 = vmatpush1.msra.mxu0 0.0
    %1481 = vmatprep.subr.mxu0 0.0
    %1482 = vmatpush1.msra.mxu0 0.0
    %1483 = vmatprep.subr.mxu0 0.0
    %1484 = vmatpush1.msra.mxu0 0.0
    %1485 = vmatprep.subr.mxu0 0.0
    %1486 = vmatpush1.msra.mxu0 0.0
    %1487 = vmatprep.subr.mxu0 0.0
    %1488 = vmatpush1.msra.mxu0 0.0
    %1489 = vmatprep.subr.mxu0 0.0
    %1490 = vmatpush1.msra.mxu0 0.0
    %1491 = vmatprep.subr.mxu0 0.0
    %1492 = vmatpush1.msra.mxu0 0.0
    %1493 = vmatprep.subr.mxu0 0.0
    %1494 = vmatpush1.msra.mxu0 0.0
    %1495 = vmatprep.subr.mxu0 0.0
    %1496 = vmatpush1.msra.mxu0 0.0
    %1497 = vmatprep.mubr.f32.mxu0 0.0
    %1498 = vmatmul.mubr.f32.gmra.mrb[0].mxu0 %v1431
    %v1499 = vpop.f32.mrb[0].mxu0
    %v1500 = vadd.f32 %v1426, %v1499
    %v1501 = vpop.f32.mrb[0].mxu0
    %v1502 = vadd.f32 %v1427, %v1501
    %1503 = vdwg.mxu0
    %v1504 = vld [vmem:[%s1192 + $0x10] sm:$0xff]
    %v1505 = vld [vmem:[%s1192 + $0x18] sm:$0xff]
    %1507 = vrot.lane.b32.xlu0 %v1414, 64
    %v1508 = vpop.permute.xlu0 %1507
    %v1509 = vsel %vm499, %v1508, 0
    %1511 = vmatprep.subr.mxu0 %v134
    %1512 = vmatpush1.msra.mxu0 %v133
    %1513 = vmatprep.subr.mxu0 %v136
    %1514 = vmatpush1.msra.mxu0 %v135
    %1515 = vmatprep.subr.mxu0 %v138
    %1516 = vmatpush1.msra.mxu0 %v137
    %1517 = vmatprep.subr.mxu0 %v140
    %1518 = vmatpush1.msra.mxu0 %v139
    %1519 = vmatprep.subr.mxu0 %v142
    %1520 = vmatpush1.msra.mxu0 %v141
    %1521 = vmatprep.subr.mxu0 %v144
    %1522 = vmatpush1.msra.mxu0 %v143
    %1523 = vmatprep.subr.mxu0 %v146
    %1524 = vmatpush1.msra.mxu0 %v145
    %1525 = vmatprep.subr.mxu0 %v148
    %1526 = vmatpush1.msra.mxu0 %v147
    %1527 = vmatprep.subr.mxu0 0.0
    %1528 = vmatpush1.msra.mxu0 0.0
    %1529 = vmatprep.subr.mxu0 0.0
    %1530 = vmatpush1.msra.mxu0 0.0
    %1531 = vmatprep.subr.mxu0 0.0
    %1532 = vmatpush1.msra.mxu0 0.0
    %1533 = vmatprep.subr.mxu0 0.0
    %1534 = vmatpush1.msra.mxu0 0.0
    %1535 = vmatprep.subr.mxu0 0.0
    %1536 = vmatpush1.msra.mxu0 0.0
    %1537 = vmatprep.subr.mxu0 0.0
    %1538 = vmatpush1.msra.mxu0 0.0
    %1539 = vmatprep.subr.mxu0 0.0
    %1540 = vmatpush1.msra.mxu0 0.0
    %1541 = vmatprep.subr.mxu0 0.0
    %1542 = vmatpush1.msra.mxu0 0.0
    %1543 = vmatprep.subr.mxu0 0.0
    %1544 = vmatpush1.msra.mxu0 0.0
    %1545 = vmatprep.subr.mxu0 0.0
    %1546 = vmatpush1.msra.mxu0 0.0
    %1547 = vmatprep.subr.mxu0 0.0
    %1548 = vmatpush1.msra.mxu0 0.0
    %1549 = vmatprep.subr.mxu0 0.0
    %1550 = vmatpush1.msra.mxu0 0.0
    %1551 = vmatprep.subr.mxu0 0.0
    %1552 = vmatpush1.msra.mxu0 0.0
    %1553 = vmatprep.subr.mxu0 0.0
    %1554 = vmatpush1.msra.mxu0 0.0
    %1555 = vmatprep.subr.mxu0 0.0
    %1556 = vmatpush1.msra.mxu0 0.0
    %1557 = vmatprep.subr.mxu0 0.0
    %1558 = vmatpush1.msra.mxu0 0.0
    %1559 = vmatprep.subr.mxu0 0.0
    %1560 = vmatpush1.msra.mxu0 0.0
    %1561 = vmatprep.subr.mxu0 0.0
    %1562 = vmatpush1.msra.mxu0 0.0
    %1563 = vmatprep.subr.mxu0 0.0
    %1564 = vmatpush1.msra.mxu0 0.0
    %1565 = vmatprep.subr.mxu0 0.0
    %1566 = vmatpush1.msra.mxu0 0.0
    %1567 = vmatprep.subr.mxu0 0.0
    %1568 = vmatpush1.msra.mxu0 0.0
    %1569 = vmatprep.subr.mxu0 0.0
    %1570 = vmatpush1.msra.mxu0 0.0
    %1571 = vmatprep.subr.mxu0 0.0
    %1572 = vmatpush1.msra.mxu0 0.0
    %1573 = vmatprep.subr.mxu0 0.0
    %1574 = vmatpush1.msra.mxu0 0.0
    %1575 = vmatprep.mubr.f32.mxu0 0.0
    %1576 = vmatmul.mubr.f32.gmra.mrb[0].mxu0 %v1509
    %v1577 = vpop.f32.mrb[0].mxu0
    %v1578 = vadd.f32 %v1504, %v1577
    %v1579 = vpop.f32.mrb[0].mxu0
    %v1580 = vadd.f32 %v1505, %v1579
    %1581 = vdwg.mxu0
    %v1582 = vxor.u32 %v1500, 2147483648
    %v1583 = vmul.f32 %v1582, 1.442695
    %v1584 = vpow.pop %v1583
    %v1585 = vadd.f32 %v1584, 1.0
    %v1586 = vrcp.pop %v1585
    %v1587 = vmul.f32 1.0, %v1586
    %v1588 = vtanh.pop %v1502
    %v1589 = vxor.u32 %v1502, 2147483648
    %v1590 = vmul.f32 %v1589, 1.442695
    %v1591 = vpow.pop %v1590
    %v1592 = vadd.f32 %v1591, 1.0
    %v1593 = vrcp.pop %v1592
    %v1594 = vmul.f32 1.0, %v1593
    %v1595 = vmul.f32 %v1587, %v1413
    %v1596 = vmul.f32 %v1587, %v1588
    %1598 = vrot.lane.b32.xlu0 %v1596, 64
    %v1599 = vpop.permute.xlu0 %1598
    %v1601 = vadd.f32 %v1595, %v1599
    %v1602 = vtanh.pop %v1601
    %v1603 = vmul.f32 %v1594, %v1602
    %v1604 = vxor.u32 %v1578, 2147483648
    %v1605 = vmul.f32 %v1604, 1.442695
    %v1606 = vpow.pop %v1605
    %v1607 = vadd.f32 %v1606, 1.0
    %v1608 = vrcp.pop %v1607
    %v1609 = vmul.f32 1.0, %v1608
    %v1610 = vtanh.pop %v1580
    %v1611 = vxor.u32 %v1580, 2147483648
    %v1612 = vmul.f32 %v1611, 1.442695
    %v1613 = vpow.pop %v1612
    %v1614 = vadd.f32 %v1613, 1.0
    %v1615 = vrcp.pop %v1614
    %v1616 = vmul.f32 1.0, %v1615
    %v1617 = vmul.f32 %v1609, %v1415
    %v1618 = vmul.f32 %v1609, %v1610
    %1620 = vrot.lane.b32.xlu0 %v1618, 64
    %v1621 = vpop.permute.xlu0 %1620
    %v1623 = vadd.f32 %v1617, %v1621
    %v1624 = vtanh.pop %v1623
    %v1625 = vmul.f32 %v1616, %v1624
    %v1626 = vld [vmem:[%s1404] sm:$0xff]
    %1628 = vset.pattern.permute.xlu0 0
    %1629 = vperm.xlu0 %1628, %v1626
    %v1630 = vpop.permute.xlu0 %1629
    %vm1632 = vcmp.gt.f32.partialorder %v1630, 0.0
    %v1633 = vld [vmem:[%s1396] sm:$0xff]
    %1635 = vset.pattern.permute.xlu0 0
    %1636 = vperm.xlu0 %1635, %v1633
    %v1637 = vpop.permute.xlu0 %1636
    %vm1639 = vcmp.gt.f32.partialorder %v1637, 0.0
    %v1640 = vsel %vm1632, %v1603, %v1412
    %v1641 = vsel %vm1632, %v1601, %v1413
    %v1642 = vsel %vm1639, %v1625, %v1414
    %v1643 = vsel %vm1639, %v1623, %v1415
    %v1644 = vsel %vm1632, %v1603, 0.0
    %1646 = vrot.lane.b32.xlu0 %v1644, 64
    %v1647 = vpop.permute.xlu0 %1646
    %1649 = vst.msk [vmem:[%s1424] sm:$0xff] %vm499, %v1647
    %v1650 = vsel %vm1639, %v1625, 0.0
    %1651 = vst.msk [vmem:[%s1421] sm:$0xff] %vm719, %v1650
    %v1652 = vld [vmem:[%s1037] sm:$0xff]
    %v1653 = vld [vmem:[%s1037 + $0x8] sm:$0xff]
    %1655 = vrot.lane.b32.xlu0 %v1640, 64
    %v1656 = vpop.permute.xlu0 %1655
    %v1657 = vsel %vm499, %v1656, 0
    %1659 = vmatprep.subr.mxu0 %v118
    %1660 = vmatpush1.msra.mxu0 %v117
    %1661 = vmatprep.subr.mxu0 %v120
    %1662 = vmatpush1.msra.mxu0 %v119
    %1663 = vmatprep.subr.mxu0 %v122
    %1664 = vmatpush1.msra.mxu0 %v121
    %1665 = vmatprep.subr.mxu0 %v124
    %1666 = vmatpush1.msra.mxu0 %v123
    %1667 = vmatprep.subr.mxu0 %v126
    %1668 = vmatpush1.msra.mxu0 %v125
    %1669 = vmatprep.subr.mxu0 %v128
    %1670 = vmatpush1.msra.mxu0 %v127
    %1671 = vmatprep.subr.mxu0 %v130
    %1672 = vmatpush1.msra.mxu0 %v129
    %1673 = vmatprep.subr.mxu0 %v132
    %1674 = vmatpush1.msra.mxu0 %v131
    %1675 = vmatprep.subr.mxu0 0.0
    %1676 = vmatpush1.msra.mxu0 0.0
    %1677 = vmatprep.subr.mxu0 0.0
    %1678 = vmatpush1.msra.mxu0 0.0
    %1679 = vmatprep.subr.mxu0 0.0
    %1680 = vmatpush1.msra.mxu0 0.0
    %1681 = vmatprep.subr.mxu0 0.0
    %1682 = vmatpush1.msra.mxu0 0.0
    %1683 = vmatprep.subr.mxu0 0.0
    %1684 = vmatpush1.msra.mxu0 0.0
    %1685 = vmatprep.subr.mxu0 0.0
    %1686 = vmatpush1.msra.mxu0 0.0
    %1687 = vmatprep.subr.mxu0 0.0
    %1688 = vmatpush1.msra.mxu0 0.0
    %1689 = vmatprep.subr.mxu0 0.0
    %1690 = vmatpush1.msra.mxu0 0.0
    %1691 = vmatprep.subr.mxu0 0.0
    %1692 = vmatpush1.msra.mxu0 0.0
    %1693 = vmatprep.subr.mxu0 0.0
    %1694 = vmatpush1.msra.mxu0 0.0
    %1695 = vmatprep.subr.mxu0 0.0
    %1696 = vmatpush1.msra.mxu0 0.0
    %1697 = vmatprep.subr.mxu0 0.0
    %1698 = vmatpush1.msra.mxu0 0.0
    %1699 = vmatprep.subr.mxu0 0.0
    %1700 = vmatpush1.msra.mxu0 0.0
    %1701 = vmatprep.subr.mxu0 0.0
    %1702 = vmatpush1.msra.mxu0 0.0
    %1703 = vmatprep.subr.mxu0 0.0
    %1704 = vmatpush1.msra.mxu0 0.0
    %1705 = vmatprep.subr.mxu0 0.0
    %1706 = vmatpush1.msra.mxu0 0.0
    %1707 = vmatprep.subr.mxu0 0.0
    %1708 = vmatpush1.msra.mxu0 0.0
    %1709 = vmatprep.subr.mxu0 0.0
    %1710 = vmatpush1.msra.mxu0 0.0
    %1711 = vmatprep.subr.mxu0 0.0
    %1712 = vmatpush1.msra.mxu0 0.0
    %1713 = vmatprep.subr.mxu0 0.0
    %1714 = vmatpush1.msra.mxu0 0.0
    %1715 = vmatprep.subr.mxu0 0.0
    %1716 = vmatpush1.msra.mxu0 0.0
    %1717 = vmatprep.subr.mxu0 0.0
    %1718 = vmatpush1.msra.mxu0 0.0
    %1719 = vmatprep.subr.mxu0 0.0
    %1720 = vmatpush1.msra.mxu0 0.0
    %1721 = vmatprep.subr.mxu0 0.0
    %1722 = vmatpush1.msra.mxu0 0.0
    %1723 = vmatprep.mubr.f32.mxu0 0.0
    %1724 = vmatmul.mubr.f32.gmra.mrb[0].mxu0 %v1657
    %v1725 = vpop.f32.mrb[0].mxu0
    %v1726 = vadd.f32 %v1652, %v1725
    %v1727 = vpop.f32.mrb[0].mxu0
    %v1728 = vadd.f32 %v1653, %v1727
    %1729 = vdwg.mxu0
    %v1730 = vld [vmem:[%s956 + $0x10] sm:$0xff]
    %v1731 = vld [vmem:[%s956 + $0x18] sm:$0xff]
    %1733 = vrot.lane.b32.xlu0 %v1642, 64
    %v1734 = vpop.permute.xlu0 %1733
    %v1735 = vsel %vm499, %v1734, 0
    %1737 = vmatprep.subr.mxu0 %v134
    %1738 = vmatpush1.msra.mxu0 %v133
    %1739 = vmatprep.subr.mxu0 %v136
    %1740 = vmatpush1.msra.mxu0 %v135
    %1741 = vmatprep.subr.mxu0 %v138
    %1742 = vmatpush1.msra.mxu0 %v137
    %1743 = vmatprep.subr.mxu0 %v140
    %1744 = vmatpush1.msra.mxu0 %v139
    %1745 = vmatprep.subr.mxu0 %v142
    %1746 = vmatpush1.msra.mxu0 %v141
    %1747 = vmatprep.subr.mxu0 %v144
    %1748 = vmatpush1.msra.mxu0 %v143
    %1749 = vmatprep.subr.mxu0 %v146
    %1750 = vmatpush1.msra.mxu0 %v145
    %1751 = vmatprep.subr.mxu0 %v148
    %1752 = vmatpush1.msra.mxu0 %v147
    %1753 = vmatprep.subr.mxu0 0.0
    %1754 = vmatpush1.msra.mxu0 0.0
    %1755 = vmatprep.subr.mxu0 0.0
    %1756 = vmatpush1.msra.mxu0 0.0
    %1757 = vmatprep.subr.mxu0 0.0
    %1758 = vmatpush1.msra.mxu0 0.0
    %1759 = vmatprep.subr.mxu0 0.0
    %1760 = vmatpush1.msra.mxu0 0.0
    %1761 = vmatprep.subr.mxu0 0.0
    %1762 = vmatpush1.msra.mxu0 0.0
    %1763 = vmatprep.subr.mxu0 0.0
    %1764 = vmatpush1.msra.mxu0 0.0
    %1765 = vmatprep.subr.mxu0 0.0
    %1766 = vmatpush1.msra.mxu0 0.0
    %1767 = vmatprep.subr.mxu0 0.0
    %1768 = vmatpush1.msra.mxu0 0.0
    %1769 = vmatprep.subr.mxu0 0.0
    %1770 = vmatpush1.msra.mxu0 0.0
    %1771 = vmatprep.subr.mxu0 0.0
    %1772 = vmatpush1.msra.mxu0 0.0
    %1773 = vmatprep.subr.mxu0 0.0
    %1774 = vmatpush1.msra.mxu0 0.0
    %1775 = vmatprep.subr.mxu0 0.0
    %1776 = vmatpush1.msra.mxu0 0.0
    %1777 = vmatprep.subr.mxu0 0.0
    %1778 = vmatpush1.msra.mxu0 0.0
    %1779 = vmatprep.subr.mxu0 0.0
    %1780 = vmatpush1.msra.mxu0 0.0
    %1781 = vmatprep.subr.mxu0 0.0
    %1782 = vmatpush1.msra.mxu0 0.0
    %1783 = vmatprep.subr.mxu0 0.0
    %1784 = vmatpush1.msra.mxu0 0.0
    %1785 = vmatprep.subr.mxu0 0.0
    %1786 = vmatpush1.msra.mxu0 0.0
    %1787 = vmatprep.subr.mxu0 0.0
    %1788 = vmatpush1.msra.mxu0 0.0
    %1789 = vmatprep.subr.mxu0 0.0
    %1790 = vmatpush1.msra.mxu0 0.0
    %1791 = vmatprep.subr.mxu0 0.0
    %1792 = vmatpush1.msra.mxu0 0.0
    %1793 = vmatprep.subr.mxu0 0.0
    %1794 = vmatpush1.msra.mxu0 0.0
    %1795 = vmatprep.subr.mxu0 0.0
    %1796 = vmatpush1.msra.mxu0 0.0
    %1797 = vmatprep.subr.mxu0 0.0
    %1798 = vmatpush1.msra.mxu0 0.0
    %1799 = vmatprep.subr.mxu0 0.0
    %1800 = vmatpush1.msra.mxu0 0.0
    %1801 = vmatprep.mubr.f32.mxu0 0.0
    %1802 = vmatmul.mubr.f32.gmra.mrb[0].mxu0 %v1735
    %v1803 = vpop.f32.mrb[0].mxu0
    %v1804 = vadd.f32 %v1730, %v1803
    %v1805 = vpop.f32.mrb[0].mxu0
    %v1806 = vadd.f32 %v1731, %v1805
    %1807 = vdwg.mxu0
    %v1808 = vxor.u32 %v1726, 2147483648
    %v1809 = vmul.f32 %v1808, 1.442695
    %v1810 = vpow.pop %v1809
    %v1811 = vadd.f32 %v1810, 1.0
    %v1812 = vrcp.pop %v1811
    %v1813 = vmul.f32 1.0, %v1812
    %v1814 = vtanh.pop %v1728
    %v1815 = vxor.u32 %v1728, 2147483648
    %v1816 = vmul.f32 %v1815, 1.442695
    %v1817 = vpow.pop %v1816
    %v1818 = vadd.f32 %v1817, 1.0
    %v1819 = vrcp.pop %v1818
    %v1820 = vmul.f32 1.0, %v1819
    %v1821 = vmul.f32 %v1813, %v1641
    %v1822 = vmul.f32 %v1813, %v1814
    %1824 = vrot.lane.b32.xlu0 %v1822, 64
    %v1825 = vpop.permute.xlu0 %1824
    %v1827 = vadd.f32 %v1821, %v1825
    %v1828 = vtanh.pop %v1827
    %v1829 = vmul.f32 %v1820, %v1828
    %v1830 = vxor.u32 %v1804, 2147483648
    %v1831 = vmul.f32 %v1830, 1.442695
    %v1832 = vpow.pop %v1831
    %v1833 = vadd.f32 %v1832, 1.0
    %v1834 = vrcp.pop %v1833
    %v1835 = vmul.f32 1.0, %v1834
    %v1836 = vtanh.pop %v1806
    %v1837 = vxor.u32 %v1806, 2147483648
    %v1838 = vmul.f32 %v1837, 1.442695
    %v1839 = vpow.pop %v1838
    %v1840 = vadd.f32 %v1839, 1.0
    %v1841 = vrcp.pop %v1840
    %v1842 = vmul.f32 1.0, %v1841
    %v1843 = vmul.f32 %v1835, %v1643
    %v1844 = vmul.f32 %v1835, %v1836
    %1846 = vrot.lane.b32.xlu0 %v1844, 64
    %v1847 = vpop.permute.xlu0 %1846
    %v1849 = vadd.f32 %v1843, %v1847
    %v1850 = vtanh.pop %v1849
    %v1851 = vmul.f32 %v1842, %v1850
    %v1852 = vld [vmem:[%s1168] sm:$0xff]
    %1854 = vset.pattern.permute.xlu0 0
    %1855 = vperm.xlu0 %1854, %v1852
    %v1856 = vpop.permute.xlu0 %1855
    %vm1858 = vcmp.gt.f32.partialorder %v1856, 0.0
    %v1859 = vld [vmem:[%s1160] sm:$0xff]
    %1861 = vset.pattern.permute.xlu0 0
    %1862 = vperm.xlu0 %1861, %v1859
    %v1863 = vpop.permute.xlu0 %1862
    %vm1865 = vcmp.gt.f32.partialorder %v1863, 0.0
    %v1866 = vsel %vm1858, %v1829, %v1640
    %v1867 = vsel %vm1858, %v1827, %v1641
    %v1868 = vsel %vm1865, %v1851, %v1642
    %v1869 = vsel %vm1865, %v1849, %v1643
    %v1870 = vsel %vm1858, %v1829, 0.0
    %1872 = vrot.lane.b32.xlu0 %v1870, 64
    %v1873 = vpop.permute.xlu0 %1872
    %1875 = vst.msk [vmem:[%s1188] sm:$0xff] %vm499, %v1873
    %v1876 = vsel %vm1865, %v1851, 0.0
    %1877 = vst.msk [vmem:[%s1185] sm:$0xff] %vm719, %v1876
    %v1878 = vld [vmem:[%s801] sm:$0xff]
    %v1879 = vld [vmem:[%s801 + $0x8] sm:$0xff]
    %1881 = vrot.lane.b32.xlu0 %v1866, 64
    %v1882 = vpop.permute.xlu0 %1881
    %v1883 = vsel %vm499, %v1882, 0
    %1885 = vmatprep.subr.mxu0 %v118
    %1886 = vmatpush1.msra.mxu0 %v117
    %1887 = vmatprep.subr.mxu0 %v120
    %1888 = vmatpush1.msra.mxu0 %v119
    %1889 = vmatprep.subr.mxu0 %v122
    %1890 = vmatpush1.msra.mxu0 %v121
    %1891 = vmatprep.subr.mxu0 %v124
    %1892 = vmatpush1.msra.mxu0 %v123
    %1893 = vmatprep.subr.mxu0 %v126
    %1894 = vmatpush1.msra.mxu0 %v125
    %1895 = vmatprep.subr.mxu0 %v128
    %1896 = vmatpush1.msra.mxu0 %v127
    %1897 = vmatprep.subr.mxu0 %v130
    %1898 = vmatpush1.msra.mxu0 %v129
    %1899 = vmatprep.subr.mxu0 %v132
    %1900 = vmatpush1.msra.mxu0 %v131
    %1901 = vmatprep.subr.mxu0 0.0
    %1902 = vmatpush1.msra.mxu0 0.0
    %1903 = vmatprep.subr.mxu0 0.0
    %1904 = vmatpush1.msra.mxu0 0.0
    %1905 = vmatprep.subr.mxu0 0.0
    %1906 = vmatpush1.msra.mxu0 0.0
    %1907 = vmatprep.subr.mxu0 0.0
    %1908 = vmatpush1.msra.mxu0 0.0
    %1909 = vmatprep.subr.mxu0 0.0
    %1910 = vmatpush1.msra.mxu0 0.0
    %1911 = vmatprep.subr.mxu0 0.0
    %1912 = vmatpush1.msra.mxu0 0.0
    %1913 = vmatprep.subr.mxu0 0.0
    %1914 = vmatpush1.msra.mxu0 0.0
    %1915 = vmatprep.subr.mxu0 0.0
    %1916 = vmatpush1.msra.mxu0 0.0
    %1917 = vmatprep.subr.mxu0 0.0
    %1918 = vmatpush1.msra.mxu0 0.0
    %1919 = vmatprep.subr.mxu0 0.0
    %1920 = vmatpush1.msra.mxu0 0.0
    %1921 = vmatprep.subr.mxu0 0.0
    %1922 = vmatpush1.msra.mxu0 0.0
    %1923 = vmatprep.subr.mxu0 0.0
    %1924 = vmatpush1.msra.mxu0 0.0
    %1925 = vmatprep.subr.mxu0 0.0
    %1926 = vmatpush1.msra.mxu0 0.0
    %1927 = vmatprep.subr.mxu0 0.0
    %1928 = vmatpush1.msra.mxu0 0.0
    %1929 = vmatprep.subr.mxu0 0.0
    %1930 = vmatpush1.msra.mxu0 0.0
    %1931 = vmatprep.subr.mxu0 0.0
    %1932 = vmatpush1.msra.mxu0 0.0
    %1933 = vmatprep.subr.mxu0 0.0
    %1934 = vmatpush1.msra.mxu0 0.0
    %1935 = vmatprep.subr.mxu0 0.0
    %1936 = vmatpush1.msra.mxu0 0.0
    %1937 = vmatprep.subr.mxu0 0.0
    %1938 = vmatpush1.msra.mxu0 0.0
    %1939 = vmatprep.subr.mxu0 0.0
    %1940 = vmatpush1.msra.mxu0 0.0
    %1941 = vmatprep.subr.mxu0 0.0
    %1942 = vmatpush1.msra.mxu0 0.0
    %1943 = vmatprep.subr.mxu0 0.0
    %1944 = vmatpush1.msra.mxu0 0.0
    %1945 = vmatprep.subr.mxu0 0.0
    %1946 = vmatpush1.msra.mxu0 0.0
    %1947 = vmatprep.subr.mxu0 0.0
    %1948 = vmatpush1.msra.mxu0 0.0
    %1949 = vmatprep.mubr.f32.mxu0 0.0
    %1950 = vmatmul.mubr.f32.gmra.mrb[0].mxu0 %v1883
    %v1951 = vpop.f32.mrb[0].mxu0
    %v1952 = vadd.f32 %v1878, %v1951
    %v1953 = vpop.f32.mrb[0].mxu0
    %v1954 = vadd.f32 %v1879, %v1953
    %1955 = vdwg.mxu0
    %v1956 = vld [vmem:[%s723 + $0x10] sm:$0xff]
    %v1957 = vld [vmem:[%s723 + $0x18] sm:$0xff]
    %1959 = vrot.lane.b32.xlu0 %v1868, 64
    %v1960 = vpop.permute.xlu0 %1959
    %v1961 = vsel %vm499, %v1960, 0
    %1963 = vmatprep.subr.mxu0 %v134
    %1964 = vmatpush1.msra.mxu0 %v133
    %1965 = vmatprep.subr.mxu0 %v136
    %1966 = vmatpush1.msra.mxu0 %v135
    %1967 = vmatprep.subr.mxu0 %v138
    %1968 = vmatpush1.msra.mxu0 %v137
    %1969 = vmatprep.subr.mxu0 %v140
    %1970 = vmatpush1.msra.mxu0 %v139
    %1971 = vmatprep.subr.mxu0 %v142
    %1972 = vmatpush1.msra.mxu0 %v141
    %1973 = vmatprep.subr.mxu0 %v144
    %1974 = vmatpush1.msra.mxu0 %v143
    %1975 = vmatprep.subr.mxu0 %v146
    %1976 = vmatpush1.msra.mxu0 %v145
    %1977 = vmatprep.subr.mxu0 %v148
    %1978 = vmatpush1.msra.mxu0 %v147
    %1979 = vmatprep.subr.mxu0 0.0
    %1980 = vmatpush1.msra.mxu0 0.0
    %1981 = vmatprep.subr.mxu0 0.0
    %1982 = vmatpush1.msra.mxu0 0.0
    %1983 = vmatprep.subr.mxu0 0.0
    %1984 = vmatpush1.msra.mxu0 0.0
    %1985 = vmatprep.subr.mxu0 0.0
    %1986 = vmatpush1.msra.mxu0 0.0
    %1987 = vmatprep.subr.mxu0 0.0
    %1988 = vmatpush1.msra.mxu0 0.0
    %1989 = vmatprep.subr.mxu0 0.0
    %1990 = vmatpush1.msra.mxu0 0.0
    %1991 = vmatprep.subr.mxu0 0.0
    %1992 = vmatpush1.msra.mxu0 0.0
    %1993 = vmatprep.subr.mxu0 0.0
    %1994 = vmatpush1.msra.mxu0 0.0
    %1995 = vmatprep.subr.mxu0 0.0
    %1996 = vmatpush1.msra.mxu0 0.0
    %1997 = vmatprep.subr.mxu0 0.0
    %1998 = vmatpush1.msra.mxu0 0.0
    %1999 = vmatprep.subr.mxu0 0.0
    %2000 = vmatpush1.msra.mxu0 0.0
    %2001 = vmatprep.subr.mxu0 0.0
    %2002 = vmatpush1.msra.mxu0 0.0
    %2003 = vmatprep.subr.mxu0 0.0
    %2004 = vmatpush1.msra.mxu0 0.0
    %2005 = vmatprep.subr.mxu0 0.0
    %2006 = vmatpush1.msra.mxu0 0.0
    %2007 = vmatprep.subr.mxu0 0.0
    %2008 = vmatpush1.msra.mxu0 0.0
    %2009 = vmatprep.subr.mxu0 0.0
    %2010 = vmatpush1.msra.mxu0 0.0
    %2011 = vmatprep.subr.mxu0 0.0
    %2012 = vmatpush1.msra.mxu0 0.0
    %2013 = vmatprep.subr.mxu0 0.0
    %2014 = vmatpush1.msra.mxu0 0.0
    %2015 = vmatprep.subr.mxu0 0.0
    %2016 = vmatpush1.msra.mxu0 0.0
    %2017 = vmatprep.subr.mxu0 0.0
    %2018 = vmatpush1.msra.mxu0 0.0
    %2019 = vmatprep.subr.mxu0 0.0
    %2020 = vmatpush1.msra.mxu0 0.0
    %2021 = vmatprep.subr.mxu0 0.0
    %2022 = vmatpush1.msra.mxu0 0.0
    %2023 = vmatprep.subr.mxu0 0.0
    %2024 = vmatpush1.msra.mxu0 0.0
    %2025 = vmatprep.subr.mxu0 0.0
    %2026 = vmatpush1.msra.mxu0 0.0
    %2027 = vmatprep.mubr.f32.mxu0 0.0
    %2028 = vmatmul.mubr.f32.gmra.mrb[0].mxu0 %v1961
    %v2029 = vpop.f32.mrb[0].mxu0
    %v2030 = vadd.f32 %v1956, %v2029
    %v2031 = vpop.f32.mrb[0].mxu0
    %v2032 = vadd.f32 %v1957, %v2031
    %2033 = vdwg.mxu0
    %v2034 = vxor.u32 %v1952, 2147483648
    %v2035 = vmul.f32 %v2034, 1.442695
    %v2036 = vpow.pop %v2035
    %v2037 = vadd.f32 %v2036, 1.0
    %v2038 = vrcp.pop %v2037
    %v2039 = vmul.f32 1.0, %v2038
    %v2040 = vtanh.pop %v1954
    %v2041 = vxor.u32 %v1954, 2147483648
    %v2042 = vmul.f32 %v2041, 1.442695
    %v2043 = vpow.pop %v2042
    %v2044 = vadd.f32 %v2043, 1.0
    %v2045 = vrcp.pop %v2044
    %v2046 = vmul.f32 1.0, %v2045
    %v2047 = vmul.f32 %v2039, %v1867
    %v2048 = vmul.f32 %v2039, %v2040
    %2050 = vrot.lane.b32.xlu0 %v2048, 64
    %v2051 = vpop.permute.xlu0 %2050
    %v2053 = vadd.f32 %v2047, %v2051
    %v2054 = vtanh.pop %v2053
    %v2055 = vmul.f32 %v2046, %v2054
    %v2056 = vxor.u32 %v2030, 2147483648
    %v2057 = vmul.f32 %v2056, 1.442695
    %v2058 = vpow.pop %v2057
    %v2059 = vadd.f32 %v2058, 1.0
    %v2060 = vrcp.pop %v2059
    %v2061 = vmul.f32 1.0, %v2060
    %v2062 = vtanh.pop %v2032
    %v2063 = vxor.u32 %v2032, 2147483648
    %v2064 = vmul.f32 %v2063, 1.442695
    %v2065 = vpow.pop %v2064
    %v2066 = vadd.f32 %v2065, 1.0
    %v2067 = vrcp.pop %v2066
    %v2068 = vmul.f32 1.0, %v2067
    %v2069 = vmul.f32 %v2061, %v1869
    %v2070 = vmul.f32 %v2061, %v2062
    %2072 = vrot.lane.b32.xlu0 %v2070, 64
    %v2073 = vpop.permute.xlu0 %2072
    %v2075 = vadd.f32 %v2069, %v2073
    %v2076 = vtanh.pop %v2075
    %v2077 = vmul.f32 %v2068, %v2076
    %v2078 = vld [vmem:[%s932] sm:$0xff]
    %2080 = vset.pattern.permute.xlu0 0
    %2081 = vperm.xlu0 %2080, %v2078
    %v2082 = vpop.permute.xlu0 %2081
    %vm2084 = vcmp.gt.f32.partialorder %v2082, 0.0
    %v2085 = vld [vmem:[%s924] sm:$0xff]
    %2087 = vset.pattern.permute.xlu0 0
    %2088 = vperm.xlu0 %2087, %v2085
    %v2089 = vpop.permute.xlu0 %2088
    %vm2091 = vcmp.gt.f32.partialorder %v2089, 0.0
    %v2092 = vsel %vm2084, %v2055, %v1866
    %v2093 = vsel %vm2084, %v2053, %v1867
    %v2094 = vsel %vm2091, %v2077, %v1868
    %v2095 = vsel %vm2091, %v2075, %v1869
    %v2096 = vsel %vm2084, %v2055, 0.0
    %2098 = vrot.lane.b32.xlu0 %v2096, 64
    %v2099 = vpop.permute.xlu0 %2098
    %2101 = vst.msk [vmem:[%s952] sm:$0xff] %vm499, %v2099
    %v2102 = vsel %vm2091, %v2077, 0.0
    %2103 = vst.msk [vmem:[%s949] sm:$0xff] %vm719, %v2102
    %v2104 = vld [vmem:[%s576] sm:$0xff]
    %v2105 = vld [vmem:[%s576 + $0x8] sm:$0xff]
    %2107 = vrot.lane.b32.xlu0 %v2092, 64
    %v2108 = vpop.permute.xlu0 %2107
    %v2109 = vsel %vm499, %v2108, 0
    %2111 = vmatprep.subr.mxu0 %v118
    %2112 = vmatpush1.msra.mxu0 %v117
    %2113 = vmatprep.subr.mxu0 %v120
    %2114 = vmatpush1.msra.mxu0 %v119
    %2115 = vmatprep.subr.mxu0 %v122
    %2116 = vmatpush1.msra.mxu0 %v121
    %2117 = vmatprep.subr.mxu0 %v124
    %2118 = vmatpush1.msra.mxu0 %v123
    %2119 = vmatprep.subr.mxu0 %v126
    %2120 = vmatpush1.msra.mxu0 %v125
    %2121 = vmatprep.subr.mxu0 %v128
    %2122 = vmatpush1.msra.mxu0 %v127
    %2123 = vmatprep.subr.mxu0 %v130
    %2124 = vmatpush1.msra.mxu0 %v129
    %2125 = vmatprep.subr.mxu0 %v132
    %2126 = vmatpush1.msra.mxu0 %v131
    %2127 = vmatprep.subr.mxu0 0.0
    %2128 = vmatpush1.msra.mxu0 0.0
    %2129 = vmatprep.subr.mxu0 0.0
    %2130 = vmatpush1.msra.mxu0 0.0
    %2131 = vmatprep.subr.mxu0 0.0
    %2132 = vmatpush1.msra.mxu0 0.0
    %2133 = vmatprep.subr.mxu0 0.0
    %2134 = vmatpush1.msra.mxu0 0.0
    %2135 = vmatprep.subr.mxu0 0.0
    %2136 = vmatpush1.msra.mxu0 0.0
    %2137 = vmatprep.subr.mxu0 0.0
    %2138 = vmatpush1.msra.mxu0 0.0
    %2139 = vmatprep.subr.mxu0 0.0
    %2140 = vmatpush1.msra.mxu0 0.0
    %2141 = vmatprep.subr.mxu0 0.0
    %2142 = vmatpush1.msra.mxu0 0.0
    %2143 = vmatprep.subr.mxu0 0.0
    %2144 = vmatpush1.msra.mxu0 0.0
    %2145 = vmatprep.subr.mxu0 0.0
    %2146 = vmatpush1.msra.mxu0 0.0
    %2147 = vmatprep.subr.mxu0 0.0
    %2148 = vmatpush1.msra.mxu0 0.0
    %2149 = vmatprep.subr.mxu0 0.0
    %2150 = vmatpush1.msra.mxu0 0.0
    %2151 = vmatprep.subr.mxu0 0.0
    %2152 = vmatpush1.msra.mxu0 0.0
    %2153 = vmatprep.subr.mxu0 0.0
    %2154 = vmatpush1.msra.mxu0 0.0
    %2155 = vmatprep.subr.mxu0 0.0
    %2156 = vmatpush1.msra.mxu0 0.0
    %2157 = vmatprep.subr.mxu0 0.0
    %2158 = vmatpush1.msra.mxu0 0.0
    %2159 = vmatprep.subr.mxu0 0.0
    %2160 = vmatpush1.msra.mxu0 0.0
    %2161 = vmatprep.subr.mxu0 0.0
    %2162 = vmatpush1.msra.mxu0 0.0
    %2163 = vmatprep.subr.mxu0 0.0
    %2164 = vmatpush1.msra.mxu0 0.0
    %2165 = vmatprep.subr.mxu0 0.0
    %2166 = vmatpush1.msra.mxu0 0.0
    %2167 = vmatprep.subr.mxu0 0.0
    %2168 = vmatpush1.msra.mxu0 0.0
    %2169 = vmatprep.subr.mxu0 0.0
    %2170 = vmatpush1.msra.mxu0 0.0
    %2171 = vmatprep.subr.mxu0 0.0
    %2172 = vmatpush1.msra.mxu0 0.0
    %2173 = vmatprep.subr.mxu0 0.0
    %2174 = vmatpush1.msra.mxu0 0.0
    %2175 = vmatprep.mubr.f32.mxu0 0.0
    %2176 = vmatmul.mubr.f32.gmra.mrb[0].mxu0 %v2109
    %v2177 = vpop.f32.mrb[0].mxu0
    %v2178 = vadd.f32 %v2104, %v2177
    %v2179 = vpop.f32.mrb[0].mxu0
    %v2180 = vadd.f32 %v2105, %v2179
    %2181 = vdwg.mxu0
    %v2182 = vld [vmem:[%s496 + $0x10] sm:$0xff]
    %v2183 = vld [vmem:[%s496 + $0x18] sm:$0xff]
    %2185 = vrot.lane.b32.xlu0 %v2094, 64
    %v2186 = vpop.permute.xlu0 %2185
    %v2187 = vsel %vm499, %v2186, 0
    %2189 = vmatprep.subr.mxu0 %v134
    %2190 = vmatpush1.msra.mxu0 %v133
    %2191 = vmatprep.subr.mxu0 %v136
    %2192 = vmatpush1.msra.mxu0 %v135
    %2193 = vmatprep.subr.mxu0 %v138
    %2194 = vmatpush1.msra.mxu0 %v137
    %2195 = vmatprep.subr.mxu0 %v140
    %2196 = vmatpush1.msra.mxu0 %v139
    %2197 = vmatprep.subr.mxu0 %v142
    %2198 = vmatpush1.msra.mxu0 %v141
    %2199 = vmatprep.subr.mxu0 %v144
    %2200 = vmatpush1.msra.mxu0 %v143
    %2201 = vmatprep.subr.mxu0 %v146
    %2202 = vmatpush1.msra.mxu0 %v145
    %2203 = vmatprep.subr.mxu0 %v148
    %2204 = vmatpush1.msra.mxu0 %v147
    %2205 = vmatprep.subr.mxu0 0.0
    %2206 = vmatpush1.msra.mxu0 0.0
    %2207 = vmatprep.subr.mxu0 0.0
    %2208 = vmatpush1.msra.mxu0 0.0
    %2209 = vmatprep.subr.mxu0 0.0
    %2210 = vmatpush1.msra.mxu0 0.0
    %2211 = vmatprep.subr.mxu0 0.0
    %2212 = vmatpush1.msra.mxu0 0.0
    %2213 = vmatprep.subr.mxu0 0.0
    %2214 = vmatpush1.msra.mxu0 0.0
    %2215 = vmatprep.subr.mxu0 0.0
    %2216 = vmatpush1.msra.mxu0 0.0
    %2217 = vmatprep.subr.mxu0 0.0
    %2218 = vmatpush1.msra.mxu0 0.0
    %2219 = vmatprep.subr.mxu0 0.0
    %2220 = vmatpush1.msra.mxu0 0.0
    %2221 = vmatprep.subr.mxu0 0.0
    %2222 = vmatpush1.msra.mxu0 0.0
    %2223 = vmatprep.subr.mxu0 0.0
    %2224 = vmatpush1.msra.mxu0 0.0
    %2225 = vmatprep.subr.mxu0 0.0
    %2226 = vmatpush1.msra.mxu0 0.0
    %2227 = vmatprep.subr.mxu0 0.0
    %2228 = vmatpush1.msra.mxu0 0.0
    %2229 = vmatprep.subr.mxu0 0.0
    %2230 = vmatpush1.msra.mxu0 0.0
    %2231 = vmatprep.subr.mxu0 0.0
    %2232 = vmatpush1.msra.mxu0 0.0
    %2233 = vmatprep.subr.mxu0 0.0
    %2234 = vmatpush1.msra.mxu0 0.0
    %2235 = vmatprep.subr.mxu0 0.0
    %2236 = vmatpush1.msra.mxu0 0.0
    %2237 = vmatprep.subr.mxu0 0.0
    %2238 = vmatpush1.msra.mxu0 0.0
    %2239 = vmatprep.subr.mxu0 0.0
    %2240 = vmatpush1.msra.mxu0 0.0
    %2241 = vmatprep.subr.mxu0 0.0
    %2242 = vmatpush1.msra.mxu0 0.0
    %2243 = vmatprep.subr.mxu0 0.0
    %2244 = vmatpush1.msra.mxu0 0.0
    %2245 = vmatprep.subr.mxu0 0.0
    %2246 = vmatpush1.msra.mxu0 0.0
    %2247 = vmatprep.subr.mxu0 0.0
    %2248 = vmatpush1.msra.mxu0 0.0
    %2249 = vmatprep.subr.mxu0 0.0
    %2250 = vmatpush1.msra.mxu0 0.0
    %2251 = vmatprep.subr.mxu0 0.0
    %2252 = vmatpush1.msra.mxu0 0.0
    %2253 = vmatprep.mubr.f32.mxu0 0.0
    %2254 = vmatmul.mubr.f32.gmra.mrb[0].mxu0 %v2187
    %v2255 = vpop.f32.mrb[0].mxu0
    %v2256 = vadd.f32 %v2182, %v2255
    %v2257 = vpop.f32.mrb[0].mxu0
    %v2258 = vadd.f32 %v2183, %v2257
    %2259 = vdwg.mxu0
    %v2260 = vxor.u32 %v2178, 2147483648
    %v2261 = vmul.f32 %v2260, 1.442695
    %v2262 = vpow.pop %v2261
    %v2263 = vadd.f32 %v2262, 1.0
    %v2264 = vrcp.pop %v2263
    %v2265 = vmul.f32 1.0, %v2264
    %v2266 = vtanh.pop %v2180
    %v2267 = vxor.u32 %v2180, 2147483648
    %v2268 = vmul.f32 %v2267, 1.442695
    %v2269 = vpow.pop %v2268
    %v2270 = vadd.f32 %v2269, 1.0
    %v2271 = vrcp.pop %v2270
    %v2272 = vmul.f32 1.0, %v2271
    %v2273 = vmul.f32 %v2265, %v2093
    %v2274 = vmul.f32 %v2265, %v2266
    %2276 = vrot.lane.b32.xlu0 %v2274, 64
    %v2277 = vpop.permute.xlu0 %2276
    %v2279 = vadd.f32 %v2273, %v2277
    %v2280 = vtanh.pop %v2279
    %v2281 = vmul.f32 %v2272, %v2280
    %v2282 = vxor.u32 %v2256, 2147483648
    %v2283 = vmul.f32 %v2282, 1.442695
    %v2284 = vpow.pop %v2283
    %v2285 = vadd.f32 %v2284, 1.0
    %v2286 = vrcp.pop %v2285
    %v2287 = vmul.f32 1.0, %v2286
    %v2288 = vtanh.pop %v2258
    %v2289 = vxor.u32 %v2258, 2147483648
    %v2290 = vmul.f32 %v2289, 1.442695
    %v2291 = vpow.pop %v2290
    %v2292 = vadd.f32 %v2291, 1.0
    %v2293 = vrcp.pop %v2292
    %v2294 = vmul.f32 1.0, %v2293
    %v2295 = vmul.f32 %v2287, %v2095
    %v2296 = vmul.f32 %v2287, %v2288
    %2298 = vrot.lane.b32.xlu0 %v2296, 64
    %v2299 = vpop.permute.xlu0 %2298
    %v2301 = vadd.f32 %v2295, %v2299
    %v2302 = vtanh.pop %v2301
    %v2303 = vmul.f32 %v2294, %v2302
    %v2304 = vld [vmem:[%s701] sm:$0xff]
    %2306 = vset.pattern.permute.xlu0 0
    %2307 = vperm.xlu0 %2306, %v2304
    %v2308 = vpop.permute.xlu0 %2307
    %vm2310 = vcmp.gt.f32.partialorder %v2308, 0.0
    %v2311 = vld [vmem:[%s1] sm:$0xff]
    %2313 = vset.pattern.permute.xlu0 0
    %2314 = vperm.xlu0 %2313, %v2311
    %v2315 = vpop.permute.xlu0 %2314
    %vm2317 = vcmp.gt.f32.partialorder %v2315, 0.0
    %v2318 = vsel %vm2310, %v2281, 0.0
    %2320 = vrot.lane.b32.xlu0 %v2318, 64
    %v2321 = vpop.permute.xlu0 %2320
    %2323 = vst.msk [vmem:[%s718] sm:$0xff] %vm499, %v2321
    %v2324 = vsel %vm2317, %v2303, 0.0
    %2325 = vst.msk [vmem:[#allocation3] sm:$0xff] %vm719, %v2324
    %v2326 = vld [vmem:[#allocation3] sm:$0xff]
    %v2327 = vld [vmem:[#allocation3 + $0x8] sm:$0xff]
    %v2328 = vld [vmem:[#allocation3 + $0x10] sm:$0xff]
    %v2329 = vld [vmem:[#allocation3 + $0x18] sm:$0xff]
    %v2330 = vld [vmem:[#allocation3 + $0x20] sm:$0xff]
    %v2331 = vld [vmem:[#allocation3 + $0x28] sm:$0xff]
    %v2332 = vld [vmem:[#allocation3 + $0x30] sm:$0xff]
    %v2333 = vld [vmem:[#allocation3 + $0x38] sm:$0xff]
    %v2334 = vld [vmem:[%s6] sm:$0xff]
    %v2335 = vld [vmem:[%s6 + $0x8] sm:$0xff]
    %v2336 = vld [vmem:[%s6 + $0x10] sm:$0xff]
    %v2337 = vld [vmem:[%s6 + $0x18] sm:$0xff]
    %v2338 = vld [vmem:[%s6 + $0x20] sm:$0xff]
    %v2339 = vld [vmem:[%s6 + $0x28] sm:$0xff]
    %v2340 = vld [vmem:[%s6 + $0x30] sm:$0xff]
    %v2341 = vld [vmem:[%s6 + $0x38] sm:$0xff]
    %v2342 = vld [vmem:[%s6 + $0x40] sm:$0xff]
    %v2343 = vld [vmem:[%s6 + $0x48] sm:$0xff]
    %v2344 = vld [vmem:[%s6 + $0x50] sm:$0xff]
    %v2345 = vld [vmem:[%s6 + $0x58] sm:$0xff]
    %v2346 = vld [vmem:[%s6 + $0x60] sm:$0xff]
    %v2347 = vld [vmem:[%s6 + $0x68] sm:$0xff]
    %v2348 = vld [vmem:[%s6 + $0x70] sm:$0xff]
    %v2349 = vld [vmem:[%s6 + $0x78] sm:$0xff]
    %v2350 = vld [vmem:[%s6 + $0x80] sm:$0xff]
    %v2351 = vld [vmem:[%s6 + $0x88] sm:$0xff]
    %v2352 = vld [vmem:[%s6 + $0x90] sm:$0xff]
    %v2353 = vld [vmem:[%s6 + $0x98] sm:$0xff]
    %v2354 = vld [vmem:[%s6 + $0xa0] sm:$0xff]
    %v2355 = vld [vmem:[%s6 + $0xa8] sm:$0xff]
    %v2356 = vld [vmem:[%s6 + $0xb0] sm:$0xff]
    %v2357 = vld [vmem:[%s6 + $0xb8] sm:$0xff]
    %v2358 = vld [vmem:[%s6 + $0xc0] sm:$0xff]
    %v2359 = vld [vmem:[%s6 + $0xc8] sm:$0xff]
    %v2360 = vld [vmem:[%s6 + $0xd0] sm:$0xff]
    %v2361 = vld [vmem:[%s6 + $0xd8] sm:$0xff]
    %v2362 = vld [vmem:[%s6 + $0xe0] sm:$0xff]
    %v2363 = vld [vmem:[%s6 + $0xe8] sm:$0xff]
    %v2364 = vld [vmem:[%s6 + $0xf0] sm:$0xff]
    %v2365 = vld [vmem:[%s6 + $0xf8] sm:$0xff]
    %v2366 = vld [vmem:[%s7] sm:$0x3]
    %v2368 = vlaneseq
    %v2369 = vshrl.u32 %v2368, 7
    %v2370 = vsub.s32 0, %v2369
    %v2371 = vrot.slane %v2366, %v2370
    %v2372 = vlaneseq
    %v2373 = vshrl.u32 %v2372, 7
    %v2374 = vsub.s32 1, %v2373
    %v2375 = vrot.slane %v2366, %v2374
    %2378 = vmatprep.subr.mxu0 %v2335
    %2379 = vmatpush1.msra.mxu0 %v2334
    %2380 = vmatprep.subr.mxu0 %v2337
    %2381 = vmatpush1.msra.mxu0 %v2336
    %2382 = vmatprep.subr.mxu0 %v2339
    %2383 = vmatpush1.msra.mxu0 %v2338
    %2384 = vmatprep.subr.mxu0 %v2341
    %2385 = vmatpush1.msra.mxu0 %v2340
    %2386 = vmatprep.subr.mxu0 %v2343
    %2387 = vmatpush1.msra.mxu0 %v2342
    %2388 = vmatprep.subr.mxu0 %v2345
    %2389 = vmatpush1.msra.mxu0 %v2344
    %2390 = vmatprep.subr.mxu0 %v2347
    %2391 = vmatpush1.msra.mxu0 %v2346
    %2392 = vmatprep.subr.mxu0 %v2349
    %2393 = vmatpush1.msra.mxu0 %v2348
    %2394 = vmatprep.subr.mxu0 %v2351
    %2395 = vmatpush1.msra.mxu0 %v2350
    %2396 = vmatprep.subr.mxu0 %v2353
    %2397 = vmatpush1.msra.mxu0 %v2352
    %2398 = vmatprep.subr.mxu0 %v2355
    %2399 = vmatpush1.msra.mxu0 %v2354
    %2400 = vmatprep.subr.mxu0 %v2357
    %2401 = vmatpush1.msra.mxu0 %v2356
    %2402 = vmatprep.subr.mxu0 %v2359
    %2403 = vmatpush1.msra.mxu0 %v2358
    %2404 = vmatprep.subr.mxu0 %v2361
    %2405 = vmatpush1.msra.mxu0 %v2360
    %2406 = vmatprep.subr.mxu0 %v2363
    %2407 = vmatpush1.msra.mxu0 %v2362
    %2408 = vmatprep.subr.mxu0 %v2365
    %2409 = vmatpush1.msra.mxu0 %v2364
    %2410 = vmatprep.subr.mxu0 0.0
    %2411 = vmatpush1.msra.mxu0 0.0
    %2412 = vmatprep.subr.mxu0 0.0
    %2413 = vmatpush1.msra.mxu0 0.0
    %2414 = vmatprep.subr.mxu0 0.0
    %2415 = vmatpush1.msra.mxu0 0.0
    %2416 = vmatprep.subr.mxu0 0.0
    %2417 = vmatpush1.msra.mxu0 0.0
    %2418 = vmatprep.subr.mxu0 0.0
    %2419 = vmatpush1.msra.mxu0 0.0
    %2420 = vmatprep.subr.mxu0 0.0
    %2421 = vmatpush1.msra.mxu0 0.0
    %2422 = vmatprep.subr.mxu0 0.0
    %2423 = vmatpush1.msra.mxu0 0.0
    %2424 = vmatprep.subr.mxu0 0.0
    %2425 = vmatpush1.msra.mxu0 0.0
    %2426 = vmatprep.subr.mxu0 0.0
    %2427 = vmatpush1.msra.mxu0 0.0
    %2428 = vmatprep.subr.mxu0 0.0
    %2429 = vmatpush1.msra.mxu0 0.0
    %2430 = vmatprep.subr.mxu0 0.0
    %2431 = vmatpush1.msra.mxu0 0.0
    %2432 = vmatprep.subr.mxu0 0.0
    %2433 = vmatpush1.msra.mxu0 0.0
    %2434 = vmatprep.subr.mxu0 0.0
    %2435 = vmatpush1.msra.mxu0 0.0
    %2436 = vmatprep.subr.mxu0 0.0
    %2437 = vmatpush1.msra.mxu0 0.0
    %2438 = vmatprep.subr.mxu0 0.0
    %2439 = vmatpush1.msra.mxu0 0.0
    %2440 = vmatprep.subr.mxu0 0.0
    %2441 = vmatpush1.msra.mxu0 0.0
    %2442 = vmatprep.mubr.f32.mxu0 0.0
    %2443 = vmatmul.mubr.f32.gmra.mrb[0].mxu0 %v2326
    %v2444 = vpop.f32.mrb[0].mxu0
    %v2445 = vadd.f32 %v2371, %v2444
    %v2446 = vpop.f32.mrb[0].mxu0
    %v2447 = vadd.f32 %v2375, %v2446
    %2448 = vmatprep.mubr.f32.mxu0 0.0
    %2449 = vmatmul.mubr.f32.gmra.mrb[0].mxu0 %v2327
    %v2450 = vpop.f32.mrb[0].mxu0
    %v2451 = vadd.f32 %v2371, %v2450
    %v2452 = vpop.f32.mrb[0].mxu0
    %v2453 = vadd.f32 %v2375, %v2452
    %2454 = vmatprep.mubr.f32.mxu0 0.0
    %2455 = vmatmul.mubr.f32.gmra.mrb[0].mxu0 %v2328
    %v2456 = vpop.f32.mrb[0].mxu0
    %v2457 = vadd.f32 %v2371, %v2456
    %v2458 = vpop.f32.mrb[0].mxu0
    %v2459 = vadd.f32 %v2375, %v2458
    %2460 = vmatprep.mubr.f32.mxu0 0.0
    %2461 = vmatmul.mubr.f32.gmra.mrb[0].mxu0 %v2329
    %v2462 = vpop.f32.mrb[0].mxu0
    %v2463 = vadd.f32 %v2371, %v2462
    %v2464 = vpop.f32.mrb[0].mxu0
    %v2465 = vadd.f32 %v2375, %v2464
    %2466 = vmatprep.mubr.f32.mxu0 0.0
    %2467 = vmatmul.mubr.f32.gmra.mrb[0].mxu0 %v2330
    %v2468 = vpop.f32.mrb[0].mxu0
    %v2469 = vadd.f32 %v2371, %v2468
    %v2470 = vpop.f32.mrb[0].mxu0
    %v2471 = vadd.f32 %v2375, %v2470
    %2472 = vmatprep.mubr.f32.mxu0 0.0
    %2473 = vmatmul.mubr.f32.gmra.mrb[0].mxu0 %v2331
    %v2474 = vpop.f32.mrb[0].mxu0
    %v2475 = vadd.f32 %v2371, %v2474
    %v2476 = vpop.f32.mrb[0].mxu0
    %v2477 = vadd.f32 %v2375, %v2476
    %2478 = vmatprep.mubr.f32.mxu0 0.0
    %2479 = vmatmul.mubr.f32.gmra.mrb[0].mxu0 %v2332
    %v2480 = vpop.f32.mrb[0].mxu0
    %v2481 = vadd.f32 %v2371, %v2480
    %v2482 = vpop.f32.mrb[0].mxu0
    %v2483 = vadd.f32 %v2375, %v2482
    %2484 = vmatprep.mubr.f32.mxu0 0.0
    %2485 = vmatmul.mubr.f32.gmra.mrb[0].mxu0 %v2333
    %v2486 = vpop.f32.mrb[0].mxu0
    %v2487 = vadd.f32 %v2371, %v2486
    %v2488 = vpop.f32.mrb[0].mxu0
    %v2489 = vadd.f32 %v2375, %v2488
    %2490 = vdwg.mxu0
    %2491 = vst [vmem:[#allocation4] sm:$0xff] %v2445
    %2492 = vst [vmem:[#allocation4 + $0x8] sm:$0xff] %v2447
    %2493 = vst [vmem:[#allocation4 + $0x10] sm:$0xff] %v2451
    %2494 = vst [vmem:[#allocation4 + $0x18] sm:$0xff] %v2453
    %2495 = vst [vmem:[#allocation4 + $0x20] sm:$0xff] %v2457
    %2496 = vst [vmem:[#allocation4 + $0x28] sm:$0xff] %v2459
    %2497 = vst [vmem:[#allocation4 + $0x30] sm:$0xff] %v2463
    %2498 = vst [vmem:[#allocation4 + $0x38] sm:$0xff] %v2465
    %2499 = vst [vmem:[#allocation4 + $0x40] sm:$0xff] %v2469
    %2500 = vst [vmem:[#allocation4 + $0x48] sm:$0xff] %v2471
    %2501 = vst [vmem:[#allocation4 + $0x50] sm:$0xff] %v2475
    %2502 = vst [vmem:[#allocation4 + $0x58] sm:$0xff] %v2477
    %2503 = vst [vmem:[#allocation4 + $0x60] sm:$0xff] %v2481
    %2504 = vst [vmem:[#allocation4 + $0x68] sm:$0xff] %v2483
    %2505 = vst [vmem:[#allocation4 + $0x70] sm:$0xff] %v2487
    %2506 = vst [vmem:[#allocation4 + $0x78] sm:$0xff] %v2489
    %s2507 = smul.u32 0, 2
    %s2508 = smul.addr %s2507, 8
    %s2509 = scalar_lea.vmem [#allocation4], %s2508
    %v2510 = vld [vmem:[%s2509] sm:$0xff]
    %v2511 = vld [vmem:[%s2509 + $0x8] sm:$0xff]
    %2512 = vmatprep.subr.mxu0 %v150
    %2513 = vmatpush1.msra.mxu0 %v149
    %2514 = vmatprep.subr.mxu0 %v152
    %2515 = vmatpush1.msra.mxu0 %v151
    %2516 = vmatprep.subr.mxu0 %v154
    %2517 = vmatpush1.msra.mxu0 %v153
    %2518 = vmatprep.subr.mxu0 %v156
    %2519 = vmatpush1.msra.mxu0 %v155
    %2520 = vmatprep.subr.mxu0 %v158
    %2521 = vmatpush1.msra.mxu0 %v157
    %2522 = vmatprep.subr.mxu0 %v160
    %2523 = vmatpush1.msra.mxu0 %v159
    %2524 = vmatprep.subr.mxu0 %v162
    %2525 = vmatpush1.msra.mxu0 %v161
    %2526 = vmatprep.subr.mxu0 %v164
    %2527 = vmatpush1.msra.mxu0 %v163
    %2528 = vmatprep.subr.mxu0 0.0
    %2529 = vmatpush1.msra.mxu0 0.0
    %2530 = vmatprep.subr.mxu0 0.0
    %2531 = vmatpush1.msra.mxu0 0.0
    %2532 = vmatprep.subr.mxu0 0.0
    %2533 = vmatpush1.msra.mxu0 0.0
    %2534 = vmatprep.subr.mxu0 0.0
    %2535 = vmatpush1.msra.mxu0 0.0
    %2536 = vmatprep.subr.mxu0 0.0
    %2537 = vmatpush1.msra.mxu0 0.0
    %2538 = vmatprep.subr.mxu0 0.0
    %2539 = vmatpush1.msra.mxu0 0.0
    %2540 = vmatprep.subr.mxu0 0.0
    %2541 = vmatpush1.msra.mxu0 0.0
    %2542 = vmatprep.subr.mxu0 0.0
    %2543 = vmatpush1.msra.mxu0 0.0
    %2544 = vmatprep.subr.mxu0 0.0
    %2545 = vmatpush1.msra.mxu0 0.0
    %2546 = vmatprep.subr.mxu0 0.0
    %2547 = vmatpush1.msra.mxu0 0.0
    %2548 = vmatprep.subr.mxu0 0.0
    %2549 = vmatpush1.msra.mxu0 0.0
    %2550 = vmatprep.subr.mxu0 0.0
    %2551 = vmatpush1.msra.mxu0 0.0
    %2552 = vmatprep.subr.mxu0 0.0
    %2553 = vmatpush1.msra.mxu0 0.0
    %2554 = vmatprep.subr.mxu0 0.0
    %2555 = vmatpush1.msra.mxu0 0.0
    %2556 = vmatprep.subr.mxu0 0.0
    %2557 = vmatpush1.msra.mxu0 0.0
    %2558 = vmatprep.subr.mxu0 0.0
    %2559 = vmatpush1.msra.mxu0 0.0
    %2560 = vmatprep.subr.mxu0 0.0
    %2561 = vmatpush1.msra.mxu0 0.0
    %2562 = vmatprep.subr.mxu0 0.0
    %2563 = vmatpush1.msra.mxu0 0.0
    %2564 = vmatprep.subr.mxu0 0.0
    %2565 = vmatpush1.msra.mxu0 0.0
    %2566 = vmatprep.subr.mxu0 0.0
    %2567 = vmatpush1.msra.mxu0 0.0
    %2568 = vmatprep.subr.mxu0 0.0
    %2569 = vmatpush1.msra.mxu0 0.0
    %2570 = vmatprep.subr.mxu0 0.0
    %2571 = vmatpush1.msra.mxu0 0.0
    %2572 = vmatprep.subr.mxu0 0.0
    %2573 = vmatpush1.msra.mxu0 0.0
    %2574 = vmatprep.subr.mxu0 0.0
    %2575 = vmatpush1.msra.mxu0 0.0
    %2576 = vmatprep.mubr.f32.mxu0 0.0
    %2577 = vmatmul.mubr.f32.gmra.mrb[0].mxu0 %v501
    %v2578 = vpop.f32.mrb[0].mxu0
    %v2579 = vadd.f32 %v2510, %v2578
    %v2580 = vpop.f32.mrb[0].mxu0
    %v2581 = vadd.f32 %v2511, %v2580
    %2582 = vdwg.mxu0
    %v2583 = vxor.u32 %v2579, 2147483648
    %v2584 = vmul.f32 %v2583, 1.442695
    %v2585 = vpow.pop %v2584
    %v2586 = vadd.f32 %v2585, 1.0
    %v2587 = vrcp.pop %v2586
    %v2588 = vmul.f32 1.0, %v2587
    %v2589 = vtanh.pop %v2581
    %v2590 = vxor.u32 %v2581, 2147483648
    %v2591 = vmul.f32 %v2590, 1.442695
    %v2592 = vpow.pop %v2591
    %v2593 = vadd.f32 %v2592, 1.0
    %v2594 = vrcp.pop %v2593
    %v2595 = vmul.f32 1.0, %v2594
    %v2596 = vmul.f32 %v2588, 0.0
    %v2597 = vmul.f32 %v2588, %v2589
    %2599 = vrot.lane.b32.xlu0 %v2597, 64
    %v2600 = vpop.permute.xlu0 %2599
    %v2602 = vadd.f32 %v2596, %v2600
    %v2603 = vtanh.pop %v2602
    %v2604 = vmul.f32 %v2595, %v2603
    %v2605 = vld [vmem:[%s1] sm:$0xff]
    %2607 = vset.pattern.permute.xlu0 0
    %2608 = vperm.xlu0 %2607, %v2605
    %v2609 = vpop.permute.xlu0 %2608
    %vm2611 = vcmp.gt.f32.partialorder %v2609, 0.0
    %v2612 = vsel %vm2611, %v2604, 0.0
    %v2613 = vsel %vm2611, %v2602, 0.0
    %s2614 = smul.u32 1, 2
    %s2615 = smul.addr %s2614, 8
    %s2616 = scalar_lea.vmem [#allocation4], %s2615
    %v2617 = vld [vmem:[%s2616] sm:$0xff]
    %v2618 = vld [vmem:[%s2616 + $0x8] sm:$0xff]
    %2620 = vrot.lane.b32.xlu0 %v2612, 64
    %v2621 = vpop.permute.xlu0 %2620
    %v2622 = vsel %vm499, %v2621, 0
    %2624 = vmatprep.subr.mxu0 %v150
    %2625 = vmatpush1.msra.mxu0 %v149
    %2626 = vmatprep.subr.mxu0 %v152
    %2627 = vmatpush1.msra.mxu0 %v151
    %2628 = vmatprep.subr.mxu0 %v154
    %2629 = vmatpush1.msra.mxu0 %v153
    %2630 = vmatprep.subr.mxu0 %v156
    %2631 = vmatpush1.msra.mxu0 %v155
    %2632 = vmatprep.subr.mxu0 %v158
    %2633 = vmatpush1.msra.mxu0 %v157
    %2634 = vmatprep.subr.mxu0 %v160
    %2635 = vmatpush1.msra.mxu0 %v159
    %2636 = vmatprep.subr.mxu0 %v162
    %2637 = vmatpush1.msra.mxu0 %v161
    %2638 = vmatprep.subr.mxu0 %v164
    %2639 = vmatpush1.msra.mxu0 %v163
    %2640 = vmatprep.subr.mxu0 0.0
    %2641 = vmatpush1.msra.mxu0 0.0
    %2642 = vmatprep.subr.mxu0 0.0
    %2643 = vmatpush1.msra.mxu0 0.0
    %2644 = vmatprep.subr.mxu0 0.0
    %2645 = vmatpush1.msra.mxu0 0.0
    %2646 = vmatprep.subr.mxu0 0.0
    %2647 = vmatpush1.msra.mxu0 0.0
    %2648 = vmatprep.subr.mxu0 0.0
    %2649 = vmatpush1.msra.mxu0 0.0
    %2650 = vmatprep.subr.mxu0 0.0
    %2651 = vmatpush1.msra.mxu0 0.0
    %2652 = vmatprep.subr.mxu0 0.0
    %2653 = vmatpush1.msra.mxu0 0.0
    %2654 = vmatprep.subr.mxu0 0.0
    %2655 = vmatpush1.msra.mxu0 0.0
    %2656 = vmatprep.subr.mxu0 0.0
    %2657 = vmatpush1.msra.mxu0 0.0
    %2658 = vmatprep.subr.mxu0 0.0
    %2659 = vmatpush1.msra.mxu0 0.0
    %2660 = vmatprep.subr.mxu0 0.0
    %2661 = vmatpush1.msra.mxu0 0.0
    %2662 = vmatprep.subr.mxu0 0.0
    %2663 = vmatpush1.msra.mxu0 0.0
    %2664 = vmatprep.subr.mxu0 0.0
    %2665 = vmatpush1.msra.mxu0 0.0
    %2666 = vmatprep.subr.mxu0 0.0
    %2667 = vmatpush1.msra.mxu0 0.0
    %2668 = vmatprep.subr.mxu0 0.0
    %2669 = vmatpush1.msra.mxu0 0.0
    %2670 = vmatprep.subr.mxu0 0.0
    %2671 = vmatpush1.msra.mxu0 0.0
    %2672 = vmatprep.subr.mxu0 0.0
    %2673 = vmatpush1.msra.mxu0 0.0
    %2674 = vmatprep.subr.mxu0 0.0
    %2675 = vmatpush1.msra.mxu0 0.0
    %2676 = vmatprep.subr.mxu0 0.0
    %2677 = vmatpush1.msra.mxu0 0.0
    %2678 = vmatprep.subr.mxu0 0.0
    %2679 = vmatpush1.msra.mxu0 0.0
    %2680 = vmatprep.subr.mxu0 0.0
    %2681 = vmatpush1.msra.mxu0 0.0
    %2682 = vmatprep.subr.mxu0 0.0
    %2683 = vmatpush1.msra.mxu0 0.0
    %2684 = vmatprep.subr.mxu0 0.0
    %2685 = vmatpush1.msra.mxu0 0.0
    %2686 = vmatprep.subr.mxu0 0.0
    %2687 = vmatpush1.msra.mxu0 0.0
    %2688 = vmatprep.mubr.f32.mxu0 0.0
    %2689 = vmatmul.mubr.f32.gmra.mrb[0].mxu0 %v2622
    %v2690 = vpop.f32.mrb[0].mxu0
    %v2691 = vadd.f32 %v2617, %v2690
    %v2692 = vpop.f32.mrb[0].mxu0
    %v2693 = vadd.f32 %v2618, %v2692
    %2694 = vdwg.mxu0
    %v2695 = vxor.u32 %v2691, 2147483648
    %v2696 = vmul.f32 %v2695, 1.442695
    %v2697 = vpow.pop %v2696
    %v2698 = vadd.f32 %v2697, 1.0
    %v2699 = vrcp.pop %v2698
    %v2700 = vmul.f32 1.0, %v2699
    %v2701 = vtanh.pop %v2693
    %v2702 = vxor.u32 %v2693, 2147483648
    %v2703 = vmul.f32 %v2702, 1.442695
    %v2704 = vpow.pop %v2703
    %v2705 = vadd.f32 %v2704, 1.0
    %v2706 = vrcp.pop %v2705
    %v2707 = vmul.f32 1.0, %v2706
    %v2708 = vmul.f32 %v2700, %v2613
    %v2709 = vmul.f32 %v2700, %v2701
    %2711 = vrot.lane.b32.xlu0 %v2709, 64
    %v2712 = vpop.permute.xlu0 %2711
    %v2714 = vadd.f32 %v2708, %v2712
    %v2715 = vtanh.pop %v2714
    %v2716 = vmul.f32 %v2707, %v2715
    %v2717 = vld [vmem:[%s924] sm:$0xff]
    %2719 = vset.pattern.permute.xlu0 0
    %2720 = vperm.xlu0 %2719, %v2717
    %v2721 = vpop.permute.xlu0 %2720
    %vm2723 = vcmp.gt.f32.partialorder %v2721, 0.0
    %v2724 = vsel %vm2723, %v2716, %v2612
    %v2725 = vsel %vm2723, %v2714, %v2613
    %s2726 = smul.u32 2, 2
    %s2727 = smul.addr %s2726, 8
    %s2728 = scalar_lea.vmem [#allocation4], %s2727
    %v2729 = vld [vmem:[%s2728] sm:$0xff]
    %v2730 = vld [vmem:[%s2728 + $0x8] sm:$0xff]
    %2732 = vrot.lane.b32.xlu0 %v2724, 64
    %v2733 = vpop.permute.xlu0 %2732
    %v2734 = vsel %vm499, %v2733, 0
    %2736 = vmatprep.subr.mxu0 %v150
    %2737 = vmatpush1.msra.mxu0 %v149
    %2738 = vmatprep.subr.mxu0 %v152
    %2739 = vmatpush1.msra.mxu0 %v151
    %2740 = vmatprep.subr.mxu0 %v154
    %2741 = vmatpush1.msra.mxu0 %v153
    %2742 = vmatprep.subr.mxu0 %v156
    %2743 = vmatpush1.msra.mxu0 %v155
    %2744 = vmatprep.subr.mxu0 %v158
    %2745 = vmatpush1.msra.mxu0 %v157
    %2746 = vmatprep.subr.mxu0 %v160
    %2747 = vmatpush1.msra.mxu0 %v159
    %2748 = vmatprep.subr.mxu0 %v162
    %2749 = vmatpush1.msra.mxu0 %v161
    %2750 = vmatprep.subr.mxu0 %v164
    %2751 = vmatpush1.msra.mxu0 %v163
    %2752 = vmatprep.subr.mxu0 0.0
    %2753 = vmatpush1.msra.mxu0 0.0
    %2754 = vmatprep.subr.mxu0 0.0
    %2755 = vmatpush1.msra.mxu0 0.0
    %2756 = vmatprep.subr.mxu0 0.0
    %2757 = vmatpush1.msra.mxu0 0.0
    %2758 = vmatprep.subr.mxu0 0.0
    %2759 = vmatpush1.msra.mxu0 0.0
    %2760 = vmatprep.subr.mxu0 0.0
    %2761 = vmatpush1.msra.mxu0 0.0
    %2762 = vmatprep.subr.mxu0 0.0
    %2763 = vmatpush1.msra.mxu0 0.0
    %2764 = vmatprep.subr.mxu0 0.0
    %2765 = vmatpush1.msra.mxu0 0.0
    %2766 = vmatprep.subr.mxu0 0.0
    %2767 = vmatpush1.msra.mxu0 0.0
    %2768 = vmatprep.subr.mxu0 0.0
    %2769 = vmatpush1.msra.mxu0 0.0
    %2770 = vmatprep.subr.mxu0 0.0
    %2771 = vmatpush1.msra.mxu0 0.0
    %2772 = vmatprep.subr.mxu0 0.0
    %2773 = vmatpush1.msra.mxu0 0.0
    %2774 = vmatprep.subr.mxu0 0.0
    %2775 = vmatpush1.msra.mxu0 0.0
    %2776 = vmatprep.subr.mxu0 0.0
    %2777 = vmatpush1.msra.mxu0 0.0
    %2778 = vmatprep.subr.mxu0 0.0
    %2779 = vmatpush1.msra.mxu0 0.0
    %2780 = vmatprep.subr.mxu0 0.0
    %2781 = vmatpush1.msra.mxu0 0.0
    %2782 = vmatprep.subr.mxu0 0.0
    %2783 = vmatpush1.msra.mxu0 0.0
    %2784 = vmatprep.subr.mxu0 0.0
    %2785 = vmatpush1.msra.mxu0 0.0
    %2786 = vmatprep.subr.mxu0 0.0
    %2787 = vmatpush1.msra.mxu0 0.0
    %2788 = vmatprep.subr.mxu0 0.0
    %2789 = vmatpush1.msra.mxu0 0.0
    %2790 = vmatprep.subr.mxu0 0.0
    %2791 = vmatpush1.msra.mxu0 0.0
    %2792 = vmatprep.subr.mxu0 0.0
    %2793 = vmatpush1.msra.mxu0 0.0
    %2794 = vmatprep.subr.mxu0 0.0
    %2795 = vmatpush1.msra.mxu0 0.0
    %2796 = vmatprep.subr.mxu0 0.0
    %2797 = vmatpush1.msra.mxu0 0.0
    %2798 = vmatprep.subr.mxu0 0.0
    %2799 = vmatpush1.msra.mxu0 0.0
    %2800 = vmatprep.mubr.f32.mxu0 0.0
    %2801 = vmatmul.mubr.f32.gmra.mrb[0].mxu0 %v2734
    %v2802 = vpop.f32.mrb[0].mxu0
    %v2803 = vadd.f32 %v2729, %v2802
    %v2804 = vpop.f32.mrb[0].mxu0
    %v2805 = vadd.f32 %v2730, %v2804
    %2806 = vdwg.mxu0
    %v2807 = vxor.u32 %v2803, 2147483648
    %v2808 = vmul.f32 %v2807, 1.442695
    %v2809 = vpow.pop %v2808
    %v2810 = vadd.f32 %v2809, 1.0
    %v2811 = vrcp.pop %v2810
    %v2812 = vmul.f32 1.0, %v2811
    %v2813 = vtanh.pop %v2805
    %v2814 = vxor.u32 %v2805, 2147483648
    %v2815 = vmul.f32 %v2814, 1.442695
    %v2816 = vpow.pop %v2815
    %v2817 = vadd.f32 %v2816, 1.0
    %v2818 = vrcp.pop %v2817
    %v2819 = vmul.f32 1.0, %v2818
    %v2820 = vmul.f32 %v2812, %v2725
    %v2821 = vmul.f32 %v2812, %v2813
    %2823 = vrot.lane.b32.xlu0 %v2821, 64
    %v2824 = vpop.permute.xlu0 %2823
    %v2826 = vadd.f32 %v2820, %v2824
    %v2827 = vtanh.pop %v2826
    %v2828 = vmul.f32 %v2819, %v2827
    %v2829 = vld [vmem:[%s1160] sm:$0xff]
    %2831 = vset.pattern.permute.xlu0 0
    %2832 = vperm.xlu0 %2831, %v2829
    %v2833 = vpop.permute.xlu0 %2832
    %vm2835 = vcmp.gt.f32.partialorder %v2833, 0.0
    %v2836 = vsel %vm2835, %v2828, %v2724
    %v2837 = vsel %vm2835, %v2826, %v2725
    %s2838 = smul.u32 3, 2
    %s2839 = smul.addr %s2838, 8
    %s2840 = scalar_lea.vmem [#allocation4], %s2839
    %v2841 = vld [vmem:[%s2840] sm:$0xff]
    %v2842 = vld [vmem:[%s2840 + $0x8] sm:$0xff]
    %2844 = vrot.lane.b32.xlu0 %v2836, 64
    %v2845 = vpop.permute.xlu0 %2844
    %v2846 = vsel %vm499, %v2845, 0
    %2848 = vmatprep.subr.mxu0 %v150
    %2849 = vmatpush1.msra.mxu0 %v149
    %2850 = vmatprep.subr.mxu0 %v152
    %2851 = vmatpush1.msra.mxu0 %v151
    %2852 = vmatprep.subr.mxu0 %v154
    %2853 = vmatpush1.msra.mxu0 %v153
    %2854 = vmatprep.subr.mxu0 %v156
    %2855 = vmatpush1.msra.mxu0 %v155
    %2856 = vmatprep.subr.mxu0 %v158
    %2857 = vmatpush1.msra.mxu0 %v157
    %2858 = vmatprep.subr.mxu0 %v160
    %2859 = vmatpush1.msra.mxu0 %v159
    %2860 = vmatprep.subr.mxu0 %v162
    %2861 = vmatpush1.msra.mxu0 %v161
    %2862 = vmatprep.subr.mxu0 %v164
    %2863 = vmatpush1.msra.mxu0 %v163
    %2864 = vmatprep.subr.mxu0 0.0
    %2865 = vmatpush1.msra.mxu0 0.0
    %2866 = vmatprep.subr.mxu0 0.0
    %2867 = vmatpush1.msra.mxu0 0.0
    %2868 = vmatprep.subr.mxu0 0.0
    %2869 = vmatpush1.msra.mxu0 0.0
    %2870 = vmatprep.subr.mxu0 0.0
    %2871 = vmatpush1.msra.mxu0 0.0
    %2872 = vmatprep.subr.mxu0 0.0
    %2873 = vmatpush1.msra.mxu0 0.0
    %2874 = vmatprep.subr.mxu0 0.0
    %2875 = vmatpush1.msra.mxu0 0.0
    %2876 = vmatprep.subr.mxu0 0.0
    %2877 = vmatpush1.msra.mxu0 0.0
    %2878 = vmatprep.subr.mxu0 0.0
    %2879 = vmatpush1.msra.mxu0 0.0
    %2880 = vmatprep.subr.mxu0 0.0
    %2881 = vmatpush1.msra.mxu0 0.0
    %2882 = vmatprep.subr.mxu0 0.0
    %2883 = vmatpush1.msra.mxu0 0.0
    %2884 = vmatprep.subr.mxu0 0.0
    %2885 = vmatpush1.msra.mxu0 0.0
    %2886 = vmatprep.subr.mxu0 0.0
    %2887 = vmatpush1.msra.mxu0 0.0
    %2888 = vmatprep.subr.mxu0 0.0
    %2889 = vmatpush1.msra.mxu0 0.0
    %2890 = vmatprep.subr.mxu0 0.0
    %2891 = vmatpush1.msra.mxu0 0.0
    %2892 = vmatprep.subr.mxu0 0.0
    %2893 = vmatpush1.msra.mxu0 0.0
    %2894 = vmatprep.subr.mxu0 0.0
    %2895 = vmatpush1.msra.mxu0 0.0
    %2896 = vmatprep.subr.mxu0 0.0
    %2897 = vmatpush1.msra.mxu0 0.0
    %2898 = vmatprep.subr.mxu0 0.0
    %2899 = vmatpush1.msra.mxu0 0.0
    %2900 = vmatprep.subr.mxu0 0.0
    %2901 = vmatpush1.msra.mxu0 0.0
    %2902 = vmatprep.subr.mxu0 0.0
    %2903 = vmatpush1.msra.mxu0 0.0
    %2904 = vmatprep.subr.mxu0 0.0
    %2905 = vmatpush1.msra.mxu0 0.0
    %2906 = vmatprep.subr.mxu0 0.0
    %2907 = vmatpush1.msra.mxu0 0.0
    %2908 = vmatprep.subr.mxu0 0.0
    %2909 = vmatpush1.msra.mxu0 0.0
    %2910 = vmatprep.subr.mxu0 0.0
    %2911 = vmatpush1.msra.mxu0 0.0
    %2912 = vmatprep.mubr.f32.mxu0 0.0
    %2913 = vmatmul.mubr.f32.gmra.mrb[0].mxu0 %v2846
    %v2914 = vpop.f32.mrb[0].mxu0
    %v2915 = vadd.f32 %v2841, %v2914
    %v2916 = vpop.f32.mrb[0].mxu0
    %v2917 = vadd.f32 %v2842, %v2916
    %2918 = vdwg.mxu0
    %v2919 = vxor.u32 %v2915, 2147483648
    %v2920 = vmul.f32 %v2919, 1.442695
    %v2921 = vpow.pop %v2920
    %v2922 = vadd.f32 %v2921, 1.0
    %v2923 = vrcp.pop %v2922
    %v2924 = vmul.f32 1.0, %v2923
    %v2925 = vtanh.pop %v2917
    %v2926 = vxor.u32 %v2917, 2147483648
    %v2927 = vmul.f32 %v2926, 1.442695
    %v2928 = vpow.pop %v2927
    %v2929 = vadd.f32 %v2928, 1.0
    %v2930 = vrcp.pop %v2929
    %v2931 = vmul.f32 1.0, %v2930
    %v2932 = vmul.f32 %v2924, %v2837
    %v2933 = vmul.f32 %v2924, %v2925
    %2935 = vrot.lane.b32.xlu0 %v2933, 64
    %v2936 = vpop.permute.xlu0 %2935
    %v2938 = vadd.f32 %v2932, %v2936
    %v2939 = vtanh.pop %v2938
    %v2940 = vmul.f32 %v2931, %v2939
    %v2941 = vld [vmem:[%s1396] sm:$0xff]
    %2943 = vset.pattern.permute.xlu0 0
    %2944 = vperm.xlu0 %2943, %v2941
    %v2945 = vpop.permute.xlu0 %2944
    %vm2947 = vcmp.gt.f32.partialorder %v2945, 0.0
    %v2948 = vsel %vm2947, %v2940, %v2836
    %v2949 = vsel %vm2947, %v2938, %v2837
    %s2950 = smul.u32 4, 2
    %s2951 = smul.addr %s2950, 8
    %s2952 = scalar_lea.vmem [#allocation4], %s2951
    %v2953 = vld [vmem:[%s2952] sm:$0xff]
    %v2954 = vld [vmem:[%s2952 + $0x8] sm:$0xff]
    %2956 = vrot.lane.b32.xlu0 %v2948, 64
    %v2957 = vpop.permute.xlu0 %2956
    %v2958 = vsel %vm499, %v2957, 0
    %2960 = vmatprep.subr.mxu0 %v150
    %2961 = vmatpush1.msra.mxu0 %v149
    %2962 = vmatprep.subr.mxu0 %v152
    %2963 = vmatpush1.msra.mxu0 %v151
    %2964 = vmatprep.subr.mxu0 %v154
    %2965 = vmatpush1.msra.mxu0 %v153
    %2966 = vmatprep.subr.mxu0 %v156
    %2967 = vmatpush1.msra.mxu0 %v155
    %2968 = vmatprep.subr.mxu0 %v158
    %2969 = vmatpush1.msra.mxu0 %v157
    %2970 = vmatprep.subr.mxu0 %v160
    %2971 = vmatpush1.msra.mxu0 %v159
    %2972 = vmatprep.subr.mxu0 %v162
    %2973 = vmatpush1.msra.mxu0 %v161
    %2974 = vmatprep.subr.mxu0 %v164
    %2975 = vmatpush1.msra.mxu0 %v163
    %2976 = vmatprep.subr.mxu0 0.0
    %2977 = vmatpush1.msra.mxu0 0.0
    %2978 = vmatprep.subr.mxu0 0.0
    %2979 = vmatpush1.msra.mxu0 0.0
    %2980 = vmatprep.subr.mxu0 0.0
    %2981 = vmatpush1.msra.mxu0 0.0
    %2982 = vmatprep.subr.mxu0 0.0
    %2983 = vmatpush1.msra.mxu0 0.0
    %2984 = vmatprep.subr.mxu0 0.0
    %2985 = vmatpush1.msra.mxu0 0.0
    %2986 = vmatprep.subr.mxu0 0.0
    %2987 = vmatpush1.msra.mxu0 0.0
    %2988 = vmatprep.subr.mxu0 0.0
    %2989 = vmatpush1.msra.mxu0 0.0
    %2990 = vmatprep.subr.mxu0 0.0
    %2991 = vmatpush1.msra.mxu0 0.0
    %2992 = vmatprep.subr.mxu0 0.0
    %2993 = vmatpush1.msra.mxu0 0.0
    %2994 = vmatprep.subr.mxu0 0.0
    %2995 = vmatpush1.msra.mxu0 0.0
    %2996 = vmatprep.subr.mxu0 0.0
    %2997 = vmatpush1.msra.mxu0 0.0
    %2998 = vmatprep.subr.mxu0 0.0
    %2999 = vmatpush1.msra.mxu0 0.0
    %3000 = vmatprep.subr.mxu0 0.0
    %3001 = vmatpush1.msra.mxu0 0.0
    %3002 = vmatprep.subr.mxu0 0.0
    %3003 = vmatpush1.msra.mxu0 0.0
    %3004 = vmatprep.subr.mxu0 0.0
    %3005 = vmatpush1.msra.mxu0 0.0
    %3006 = vmatprep.subr.mxu0 0.0
    %3007 = vmatpush1.msra.mxu0 0.0
    %3008 = vmatprep.subr.mxu0 0.0
    %3009 = vmatpush1.msra.mxu0 0.0
    %3010 = vmatprep.subr.mxu0 0.0
    %3011 = vmatpush1.msra.mxu0 0.0
    %3012 = vmatprep.subr.mxu0 0.0
    %3013 = vmatpush1.msra.mxu0 0.0
    %3014 = vmatprep.subr.mxu0 0.0
    %3015 = vmatpush1.msra.mxu0 0.0
    %3016 = vmatprep.subr.mxu0 0.0
    %3017 = vmatpush1.msra.mxu0 0.0
    %3018 = vmatprep.subr.mxu0 0.0
    %3019 = vmatpush1.msra.mxu0 0.0
    %3020 = vmatprep.subr.mxu0 0.0
    %3021 = vmatpush1.msra.mxu0 0.0
    %3022 = vmatprep.subr.mxu0 0.0
    %3023 = vmatpush1.msra.mxu0 0.0
    %3024 = vmatprep.mubr.f32.mxu0 0.0
    %3025 = vmatmul.mubr.f32.gmra.mrb[0].mxu0 %v2958
    %v3026 = vpop.f32.mrb[0].mxu0
    %v3027 = vadd.f32 %v2953, %v3026
    %v3028 = vpop.f32.mrb[0].mxu0
    %v3029 = vadd.f32 %v2954, %v3028
    %3030 = vdwg.mxu0
    %v3031 = vxor.u32 %v3027, 2147483648
    %v3032 = vmul.f32 %v3031, 1.442695
    %v3033 = vpow.pop %v3032
    %v3034 = vadd.f32 %v3033, 1.0
    %v3035 = vrcp.pop %v3034
    %v3036 = vmul.f32 1.0, %v3035
    %v3037 = vtanh.pop %v3029
    %v3038 = vxor.u32 %v3029, 2147483648
    %v3039 = vmul.f32 %v3038, 1.442695
    %v3040 = vpow.pop %v3039
    %v3041 = vadd.f32 %v3040, 1.0
    %v3042 = vrcp.pop %v3041
    %v3043 = vmul.f32 1.0, %v3042
    %v3044 = vmul.f32 %v3036, %v2949
    %v3045 = vmul.f32 %v3036, %v3037
    %3047 = vrot.lane.b32.xlu0 %v3045, 64
    %v3048 = vpop.permute.xlu0 %3047
    %v3050 = vadd.f32 %v3044, %v3048
    %v3051 = vtanh.pop %v3050
    %v3052 = vmul.f32 %v3043, %v3051
    %v3053 = vld [vmem:[%s1404] sm:$0xff]
    %3055 = vset.pattern.permute.xlu0 0
    %3056 = vperm.xlu0 %3055, %v3053
    %v3057 = vpop.permute.xlu0 %3056
    %vm3059 = vcmp.gt.f32.partialorder %v3057, 0.0
    %v3060 = vsel %vm3059, %v3052, %v2948
    %v3061 = vsel %vm3059, %v3050, %v2949
    %s3062 = smul.u32 5, 2
    %s3063 = smul.addr %s3062, 8
    %s3064 = scalar_lea.vmem [#allocation4], %s3063
    %v3065 = vld [vmem:[%s3064] sm:$0xff]
    %v3066 = vld [vmem:[%s3064 + $0x8] sm:$0xff]
    %3068 = vrot.lane.b32.xlu0 %v3060, 64
    %v3069 = vpop.permute.xlu0 %3068
    %v3070 = vsel %vm499, %v3069, 0
    %3072 = vmatprep.subr.mxu0 %v150
    %3073 = vmatpush1.msra.mxu0 %v149
    %3074 = vmatprep.subr.mxu0 %v152
    %3075 = vmatpush1.msra.mxu0 %v151
    %3076 = vmatprep.subr.mxu0 %v154
    %3077 = vmatpush1.msra.mxu0 %v153
    %3078 = vmatprep.subr.mxu0 %v156
    %3079 = vmatpush1.msra.mxu0 %v155
    %3080 = vmatprep.subr.mxu0 %v158
    %3081 = vmatpush1.msra.mxu0 %v157
    %3082 = vmatprep.subr.mxu0 %v160
    %3083 = vmatpush1.msra.mxu0 %v159
    %3084 = vmatprep.subr.mxu0 %v162
    %3085 = vmatpush1.msra.mxu0 %v161
    %3086 = vmatprep.subr.mxu0 %v164
    %3087 = vmatpush1.msra.mxu0 %v163
    %3088 = vmatprep.subr.mxu0 0.0
    %3089 = vmatpush1.msra.mxu0 0.0
    %3090 = vmatprep.subr.mxu0 0.0
    %3091 = vmatpush1.msra.mxu0 0.0
    %3092 = vmatprep.subr.mxu0 0.0
    %3093 = vmatpush1.msra.mxu0 0.0
    %3094 = vmatprep.subr.mxu0 0.0
    %3095 = vmatpush1.msra.mxu0 0.0
    %3096 = vmatprep.subr.mxu0 0.0
    %3097 = vmatpush1.msra.mxu0 0.0
    %3098 = vmatprep.subr.mxu0 0.0
    %3099 = vmatpush1.msra.mxu0 0.0
    %3100 = vmatprep.subr.mxu0 0.0
    %3101 = vmatpush1.msra.mxu0 0.0
    %3102 = vmatprep.subr.mxu0 0.0
    %3103 = vmatpush1.msra.mxu0 0.0
    %3104 = vmatprep.subr.mxu0 0.0
    %3105 = vmatpush1.msra.mxu0 0.0
    %3106 = vmatprep.subr.mxu0 0.0
    %3107 = vmatpush1.msra.mxu0 0.0
    %3108 = vmatprep.subr.mxu0 0.0
    %3109 = vmatpush1.msra.mxu0 0.0
    %3110 = vmatprep.subr.mxu0 0.0
    %3111 = vmatpush1.msra.mxu0 0.0
    %3112 = vmatprep.subr.mxu0 0.0
    %3113 = vmatpush1.msra.mxu0 0.0
    %3114 = vmatprep.subr.mxu0 0.0
    %3115 = vmatpush1.msra.mxu0 0.0
    %3116 = vmatprep.subr.mxu0 0.0
    %3117 = vmatpush1.msra.mxu0 0.0
    %3118 = vmatprep.subr.mxu0 0.0
    %3119 = vmatpush1.msra.mxu0 0.0
    %3120 = vmatprep.subr.mxu0 0.0
    %3121 = vmatpush1.msra.mxu0 0.0
    %3122 = vmatprep.subr.mxu0 0.0
    %3123 = vmatpush1.msra.mxu0 0.0
    %3124 = vmatprep.subr.mxu0 0.0
    %3125 = vmatpush1.msra.mxu0 0.0
    %3126 = vmatprep.subr.mxu0 0.0
    %3127 = vmatpush1.msra.mxu0 0.0
    %3128 = vmatprep.subr.mxu0 0.0
    %3129 = vmatpush1.msra.mxu0 0.0
    %3130 = vmatprep.subr.mxu0 0.0
    %3131 = vmatpush1.msra.mxu0 0.0
    %3132 = vmatprep.subr.mxu0 0.0
    %3133 = vmatpush1.msra.mxu0 0.0
    %3134 = vmatprep.subr.mxu0 0.0
    %3135 = vmatpush1.msra.mxu0 0.0
    %3136 = vmatprep.mubr.f32.mxu0 0.0
    %3137 = vmatmul.mubr.f32.gmra.mrb[0].mxu0 %v3070
    %v3138 = vpop.f32.mrb[0].mxu0
    %v3139 = vadd.f32 %v3065, %v3138
    %v3140 = vpop.f32.mrb[0].mxu0
    %v3141 = vadd.f32 %v3066, %v3140
    %3142 = vdwg.mxu0
    %v3143 = vxor.u32 %v3139, 2147483648
    %v3144 = vmul.f32 %v3143, 1.442695
    %v3145 = vpow.pop %v3144
    %v3146 = vadd.f32 %v3145, 1.0
    %v3147 = vrcp.pop %v3146
    %v3148 = vmul.f32 1.0, %v3147
    %v3149 = vtanh.pop %v3141
    %v3150 = vxor.u32 %v3141, 2147483648
    %v3151 = vmul.f32 %v3150, 1.442695
    %v3152 = vpow.pop %v3151
    %v3153 = vadd.f32 %v3152, 1.0
    %v3154 = vrcp.pop %v3153
    %v3155 = vmul.f32 1.0, %v3154
    %v3156 = vmul.f32 %v3148, %v3061
    %v3157 = vmul.f32 %v3148, %v3149
    %3159 = vrot.lane.b32.xlu0 %v3157, 64
    %v3160 = vpop.permute.xlu0 %3159
    %v3162 = vadd.f32 %v3156, %v3160
    %v3163 = vtanh.pop %v3162
    %v3164 = vmul.f32 %v3155, %v3163
    %v3165 = vld [vmem:[%s1168] sm:$0xff]
    %3167 = vset.pattern.permute.xlu0 0
    %3168 = vperm.xlu0 %3167, %v3165
    %v3169 = vpop.permute.xlu0 %3168
    %vm3171 = vcmp.gt.f32.partialorder %v3169, 0.0
    %v3172 = vsel %vm3171, %v3164, %v3060
    %v3173 = vsel %vm3171, %v3162, %v3061
    %s3174 = smul.u32 6, 2
    %s3175 = smul.addr %s3174, 8
    %s3176 = scalar_lea.vmem [#allocation4], %s3175
    %v3177 = vld [vmem:[%s3176] sm:$0xff]
    %v3178 = vld [vmem:[%s3176 + $0x8] sm:$0xff]
    %3180 = vrot.lane.b32.xlu0 %v3172, 64
    %v3181 = vpop.permute.xlu0 %3180
    %v3182 = vsel %vm499, %v3181, 0
    %3184 = vmatprep.subr.mxu0 %v150
    %3185 = vmatpush1.msra.mxu0 %v149
    %3186 = vmatprep.subr.mxu0 %v152
    %3187 = vmatpush1.msra.mxu0 %v151
    %3188 = vmatprep.subr.mxu0 %v154
    %3189 = vmatpush1.msra.mxu0 %v153
    %3190 = vmatprep.subr.mxu0 %v156
    %3191 = vmatpush1.msra.mxu0 %v155
    %3192 = vmatprep.subr.mxu0 %v158
    %3193 = vmatpush1.msra.mxu0 %v157
    %3194 = vmatprep.subr.mxu0 %v160
    %3195 = vmatpush1.msra.mxu0 %v159
    %3196 = vmatprep.subr.mxu0 %v162
    %3197 = vmatpush1.msra.mxu0 %v161
    %3198 = vmatprep.subr.mxu0 %v164
    %3199 = vmatpush1.msra.mxu0 %v163
    %3200 = vmatprep.subr.mxu0 0.0
    %3201 = vmatpush1.msra.mxu0 0.0
    %3202 = vmatprep.subr.mxu0 0.0
    %3203 = vmatpush1.msra.mxu0 0.0
    %3204 = vmatprep.subr.mxu0 0.0
    %3205 = vmatpush1.msra.mxu0 0.0
    %3206 = vmatprep.subr.mxu0 0.0
    %3207 = vmatpush1.msra.mxu0 0.0
    %3208 = vmatprep.subr.mxu0 0.0
    %3209 = vmatpush1.msra.mxu0 0.0
    %3210 = vmatprep.subr.mxu0 0.0
    %3211 = vmatpush1.msra.mxu0 0.0
    %3212 = vmatprep.subr.mxu0 0.0
    %3213 = vmatpush1.msra.mxu0 0.0
    %3214 = vmatprep.subr.mxu0 0.0
    %3215 = vmatpush1.msra.mxu0 0.0
    %3216 = vmatprep.subr.mxu0 0.0
    %3217 = vmatpush1.msra.mxu0 0.0
    %3218 = vmatprep.subr.mxu0 0.0
    %3219 = vmatpush1.msra.mxu0 0.0
    %3220 = vmatprep.subr.mxu0 0.0
    %3221 = vmatpush1.msra.mxu0 0.0
    %3222 = vmatprep.subr.mxu0 0.0
    %3223 = vmatpush1.msra.mxu0 0.0
    %3224 = vmatprep.subr.mxu0 0.0
    %3225 = vmatpush1.msra.mxu0 0.0
    %3226 = vmatprep.subr.mxu0 0.0
    %3227 = vmatpush1.msra.mxu0 0.0
    %3228 = vmatprep.subr.mxu0 0.0
    %3229 = vmatpush1.msra.mxu0 0.0
    %3230 = vmatprep.subr.mxu0 0.0
    %3231 = vmatpush1.msra.mxu0 0.0
    %3232 = vmatprep.subr.mxu0 0.0
    %3233 = vmatpush1.msra.mxu0 0.0
    %3234 = vmatprep.subr.mxu0 0.0
    %3235 = vmatpush1.msra.mxu0 0.0
    %3236 = vmatprep.subr.mxu0 0.0
    %3237 = vmatpush1.msra.mxu0 0.0
    %3238 = vmatprep.subr.mxu0 0.0
    %3239 = vmatpush1.msra.mxu0 0.0
    %3240 = vmatprep.subr.mxu0 0.0
    %3241 = vmatpush1.msra.mxu0 0.0
    %3242 = vmatprep.subr.mxu0 0.0
    %3243 = vmatpush1.msra.mxu0 0.0
    %3244 = vmatprep.subr.mxu0 0.0
    %3245 = vmatpush1.msra.mxu0 0.0
    %3246 = vmatprep.subr.mxu0 0.0
    %3247 = vmatpush1.msra.mxu0 0.0
    %3248 = vmatprep.mubr.f32.mxu0 0.0
    %3249 = vmatmul.mubr.f32.gmra.mrb[0].mxu0 %v3182
    %v3250 = vpop.f32.mrb[0].mxu0
    %v3251 = vadd.f32 %v3177, %v3250
    %v3252 = vpop.f32.mrb[0].mxu0
    %v3253 = vadd.f32 %v3178, %v3252
    %3254 = vdwg.mxu0
    %v3255 = vxor.u32 %v3251, 2147483648
    %v3256 = vmul.f32 %v3255, 1.442695
    %v3257 = vpow.pop %v3256
    %v3258 = vadd.f32 %v3257, 1.0
    %v3259 = vrcp.pop %v3258
    %v3260 = vmul.f32 1.0, %v3259
    %v3261 = vtanh.pop %v3253
    %v3262 = vxor.u32 %v3253, 2147483648
    %v3263 = vmul.f32 %v3262, 1.442695
    %v3264 = vpow.pop %v3263
    %v3265 = vadd.f32 %v3264, 1.0
    %v3266 = vrcp.pop %v3265
    %v3267 = vmul.f32 1.0, %v3266
    %v3268 = vmul.f32 %v3260, %v3173
    %v3269 = vmul.f32 %v3260, %v3261
    %3271 = vrot.lane.b32.xlu0 %v3269, 64
    %v3272 = vpop.permute.xlu0 %3271
    %v3274 = vadd.f32 %v3268, %v3272
    %v3275 = vtanh.pop %v3274
    %v3276 = vmul.f32 %v3267, %v3275
    %v3277 = vld [vmem:[%s932] sm:$0xff]
    %3279 = vset.pattern.permute.xlu0 0
    %3280 = vperm.xlu0 %3279, %v3277
    %v3281 = vpop.permute.xlu0 %3280
    %vm3283 = vcmp.gt.f32.partialorder %v3281, 0.0
    %v3284 = vsel %vm3283, %v3276, %v3172
    %v3285 = vsel %vm3283, %v3274, %v3173
    %s3286 = smul.u32 7, 2
    %s3287 = smul.addr %s3286, 8
    %s3288 = scalar_lea.vmem [#allocation4], %s3287
    %v3289 = vld [vmem:[%s3288] sm:$0xff]
    %v3290 = vld [vmem:[%s3288 + $0x8] sm:$0xff]
    %3292 = vrot.lane.b32.xlu0 %v3284, 64
    %v3293 = vpop.permute.xlu0 %3292
    %v3294 = vsel %vm499, %v3293, 0
    %3296 = vmatprep.subr.mxu0 %v150
    %3297 = vmatpush1.msra.mxu0 %v149
    %3298 = vmatprep.subr.mxu0 %v152
    %3299 = vmatpush1.msra.mxu0 %v151
    %3300 = vmatprep.subr.mxu0 %v154
    %3301 = vmatpush1.msra.mxu0 %v153
    %3302 = vmatprep.subr.mxu0 %v156
    %3303 = vmatpush1.msra.mxu0 %v155
    %3304 = vmatprep.subr.mxu0 %v158
    %3305 = vmatpush1.msra.mxu0 %v157
    %3306 = vmatprep.subr.mxu0 %v160
    %3307 = vmatpush1.msra.mxu0 %v159
    %3308 = vmatprep.subr.mxu0 %v162
    %3309 = vmatpush1.msra.mxu0 %v161
    %3310 = vmatprep.subr.mxu0 %v164
    %3311 = vmatpush1.msra.mxu0 %v163
    %3312 = vmatprep.subr.mxu0 0.0
    %3313 = vmatpush1.msra.mxu0 0.0
    %3314 = vmatprep.subr.mxu0 0.0
    %3315 = vmatpush1.msra.mxu0 0.0
    %3316 = vmatprep.subr.mxu0 0.0
    %3317 = vmatpush1.msra.mxu0 0.0
    %3318 = vmatprep.subr.mxu0 0.0
    %3319 = vmatpush1.msra.mxu0 0.0
    %3320 = vmatprep.subr.mxu0 0.0
    %3321 = vmatpush1.msra.mxu0 0.0
    %3322 = vmatprep.subr.mxu0 0.0
    %3323 = vmatpush1.msra.mxu0 0.0
    %3324 = vmatprep.subr.mxu0 0.0
    %3325 = vmatpush1.msra.mxu0 0.0
    %3326 = vmatprep.subr.mxu0 0.0
    %3327 = vmatpush1.msra.mxu0 0.0
    %3328 = vmatprep.subr.mxu0 0.0
    %3329 = vmatpush1.msra.mxu0 0.0
    %3330 = vmatprep.subr.mxu0 0.0
    %3331 = vmatpush1.msra.mxu0 0.0
    %3332 = vmatprep.subr.mxu0 0.0
    %3333 = vmatpush1.msra.mxu0 0.0
    %3334 = vmatprep.subr.mxu0 0.0
    %3335 = vmatpush1.msra.mxu0 0.0
    %3336 = vmatprep.subr.mxu0 0.0
    %3337 = vmatpush1.msra.mxu0 0.0
    %3338 = vmatprep.subr.mxu0 0.0
    %3339 = vmatpush1.msra.mxu0 0.0
    %3340 = vmatprep.subr.mxu0 0.0
    %3341 = vmatpush1.msra.mxu0 0.0
    %3342 = vmatprep.subr.mxu0 0.0
    %3343 = vmatpush1.msra.mxu0 0.0
    %3344 = vmatprep.subr.mxu0 0.0
    %3345 = vmatpush1.msra.mxu0 0.0
    %3346 = vmatprep.subr.mxu0 0.0
    %3347 = vmatpush1.msra.mxu0 0.0
    %3348 = vmatprep.subr.mxu0 0.0
    %3349 = vmatpush1.msra.mxu0 0.0
    %3350 = vmatprep.subr.mxu0 0.0
    %3351 = vmatpush1.msra.mxu0 0.0
    %3352 = vmatprep.subr.mxu0 0.0
    %3353 = vmatpush1.msra.mxu0 0.0
    %3354 = vmatprep.subr.mxu0 0.0
    %3355 = vmatpush1.msra.mxu0 0.0
    %3356 = vmatprep.subr.mxu0 0.0
    %3357 = vmatpush1.msra.mxu0 0.0
    %3358 = vmatprep.subr.mxu0 0.0
    %3359 = vmatpush1.msra.mxu0 0.0
    %3360 = vmatprep.mubr.f32.mxu0 0.0
    %3361 = vmatmul.mubr.f32.gmra.mrb[0].mxu0 %v3294
    %v3362 = vpop.f32.mrb[0].mxu0
    %v3363 = vadd.f32 %v3289, %v3362
    %v3364 = vpop.f32.mrb[0].mxu0
    %v3365 = vadd.f32 %v3290, %v3364
    %3366 = vdwg.mxu0
    %v3367 = vxor.u32 %v3363, 2147483648
    %v3368 = vmul.f32 %v3367, 1.442695
    %v3369 = vpow.pop %v3368
    %v3370 = vadd.f32 %v3369, 1.0
    %v3371 = vrcp.pop %v3370
    %v3372 = vmul.f32 1.0, %v3371
    %v3373 = vtanh.pop %v3365
    %v3374 = vxor.u32 %v3365, 2147483648
    %v3375 = vmul.f32 %v3374, 1.442695
    %v3376 = vpow.pop %v3375
    %v3377 = vadd.f32 %v3376, 1.0
    %v3378 = vrcp.pop %v3377
    %v3379 = vmul.f32 1.0, %v3378
    %v3380 = vmul.f32 %v3372, %v3285
    %v3381 = vmul.f32 %v3372, %v3373
    %3383 = vrot.lane.b32.xlu0 %v3381, 64
    %v3384 = vpop.permute.xlu0 %3383
    %v3386 = vadd.f32 %v3380, %v3384
    %v3387 = vtanh.pop %v3386
    %v3388 = vmul.f32 %v3379, %v3387
    %v3389 = vld [vmem:[%s701] sm:$0xff]
    %3391 = vset.pattern.permute.xlu0 0
    %3392 = vperm.xlu0 %3391, %v3389
    %v3393 = vpop.permute.xlu0 %3392
    %vm3395 = vcmp.gt.f32.partialorder %v3393, 0.0
    %v3396 = vsel %vm3395, %v3388, %v3284
    %v3397 = vld [vmem:[#allocation3 + $0x38] sm:$0xff]
    %v3398 = vld [vmem:[#allocation11] sm:$0xff]
    %v3399 = vld [vmem:[#allocation11 + $0x8] sm:$0xff]
    %v3400 = vld [vmem:[#allocation11 + $0x10] sm:$0xff]
    %v3401 = vld [vmem:[#allocation11 + $0x18] sm:$0xff]
    %v3402 = vld [vmem:[#allocation11 + $0x20] sm:$0xff]
    %v3403 = vld [vmem:[#allocation11 + $0x28] sm:$0xff]
    %v3404 = vld [vmem:[#allocation11 + $0x30] sm:$0xff]
    %v3405 = vld [vmem:[#allocation11 + $0x38] sm:$0xff]
    %v3406 = vld [vmem:[#allocation11 + $0x40] sm:$0xff]
    %v3407 = vld [vmem:[#allocation11 + $0x48] sm:$0xff]
    %v3408 = vld [vmem:[#allocation11 + $0x50] sm:$0xff]
    %v3409 = vld [vmem:[#allocation11 + $0x58] sm:$0xff]
    %v3410 = vld [vmem:[#allocation11 + $0x60] sm:$0xff]
    %v3411 = vld [vmem:[#allocation11 + $0x68] sm:$0xff]
    %v3412 = vld [vmem:[#allocation11 + $0x70] sm:$0xff]
    %v3413 = vld [vmem:[#allocation11 + $0x78] sm:$0xff]
    %v3414 = vld [vmem:[#allocation11 + $0x80] sm:$0xff]
    %v3415 = vld [vmem:[#allocation11 + $0x88] sm:$0xff]
    %v3416 = vld [vmem:[#allocation11 + $0x90] sm:$0xff]
    %v3417 = vld [vmem:[#allocation11 + $0x98] sm:$0xff]
    %v3418 = vld [vmem:[#allocation11 + $0xa0] sm:$0xff]
    %v3419 = vld [vmem:[#allocation11 + $0xa8] sm:$0xff]
    %v3420 = vld [vmem:[#allocation11 + $0xb0] sm:$0xff]
    %v3421 = vld [vmem:[#allocation11 + $0xb8] sm:$0xff]
    %v3422 = vld [vmem:[#allocation11 + $0xc0] sm:$0xff]
    %v3423 = vld [vmem:[#allocation11 + $0xc8] sm:$0xff]
    %v3424 = vld [vmem:[#allocation11 + $0xd0] sm:$0xff]
    %v3425 = vld [vmem:[#allocation11 + $0xd8] sm:$0xff]
    %v3426 = vld [vmem:[#allocation11 + $0xe0] sm:$0xff]
    %v3427 = vld [vmem:[#allocation11 + $0xe8] sm:$0xff]
    %v3428 = vld [vmem:[#allocation11 + $0xf0] sm:$0xff]
    %v3429 = vld [vmem:[#allocation11 + $0xf8] sm:$0xff]
    %v3430 = vld [vmem:[%s9] sm:$0x3]
    %v3432 = vlaneseq
    %v3433 = vshrl.u32 %v3432, 7
    %v3434 = vsub.s32 0, %v3433
    %v3435 = vrot.slane %v3430, %v3434
    %v3436 = vlaneseq
    %v3437 = vshrl.u32 %v3436, 7
    %v3438 = vsub.s32 1, %v3437
    %v3439 = vrot.slane %v3430, %v3438
    %3442 = vmatprep.subr.mxu0 %v3399
    %3443 = vmatpush1.msra.mxu0 %v3398
    %3444 = vmatprep.subr.mxu0 %v3401
    %3445 = vmatpush1.msra.mxu0 %v3400
    %3446 = vmatprep.subr.mxu0 %v3403
    %3447 = vmatpush1.msra.mxu0 %v3402
    %3448 = vmatprep.subr.mxu0 %v3405
    %3449 = vmatpush1.msra.mxu0 %v3404
    %3450 = vmatprep.subr.mxu0 %v3407
    %3451 = vmatpush1.msra.mxu0 %v3406
    %3452 = vmatprep.subr.mxu0 %v3409
    %3453 = vmatpush1.msra.mxu0 %v3408
    %3454 = vmatprep.subr.mxu0 %v3411
    %3455 = vmatpush1.msra.mxu0 %v3410
    %3456 = vmatprep.subr.mxu0 %v3413
    %3457 = vmatpush1.msra.mxu0 %v3412
    %3458 = vmatprep.subr.mxu0 %v3415
    %3459 = vmatpush1.msra.mxu0 %v3414
    %3460 = vmatprep.subr.mxu0 %v3417
    %3461 = vmatpush1.msra.mxu0 %v3416
    %3462 = vmatprep.subr.mxu0 %v3419
    %3463 = vmatpush1.msra.mxu0 %v3418
    %3464 = vmatprep.subr.mxu0 %v3421
    %3465 = vmatpush1.msra.mxu0 %v3420
    %3466 = vmatprep.subr.mxu0 %v3423
    %3467 = vmatpush1.msra.mxu0 %v3422
    %3468 = vmatprep.subr.mxu0 %v3425
    %3469 = vmatpush1.msra.mxu0 %v3424
    %3470 = vmatprep.subr.mxu0 %v3427
    %3471 = vmatpush1.msra.mxu0 %v3426
    %3472 = vmatprep.subr.mxu0 %v3429
    %3473 = vmatpush1.msra.mxu0 %v3428
    %3474 = vmatprep.subr.mxu0 0.0
    %3475 = vmatpush1.msra.mxu0 0.0
    %3476 = vmatprep.subr.mxu0 0.0
    %3477 = vmatpush1.msra.mxu0 0.0
    %3478 = vmatprep.subr.mxu0 0.0
    %3479 = vmatpush1.msra.mxu0 0.0
    %3480 = vmatprep.subr.mxu0 0.0
    %3481 = vmatpush1.msra.mxu0 0.0
    %3482 = vmatprep.subr.mxu0 0.0
    %3483 = vmatpush1.msra.mxu0 0.0
    %3484 = vmatprep.subr.mxu0 0.0
    %3485 = vmatpush1.msra.mxu0 0.0
    %3486 = vmatprep.subr.mxu0 0.0
    %3487 = vmatpush1.msra.mxu0 0.0
    %3488 = vmatprep.subr.mxu0 0.0
    %3489 = vmatpush1.msra.mxu0 0.0
    %3490 = vmatprep.subr.mxu0 0.0
    %3491 = vmatpush1.msra.mxu0 0.0
    %3492 = vmatprep.subr.mxu0 0.0
    %3493 = vmatpush1.msra.mxu0 0.0
    %3494 = vmatprep.subr.mxu0 0.0
    %3495 = vmatpush1.msra.mxu0 0.0
    %3496 = vmatprep.subr.mxu0 0.0
    %3497 = vmatpush1.msra.mxu0 0.0
    %3498 = vmatprep.subr.mxu0 0.0
    %3499 = vmatpush1.msra.mxu0 0.0
    %3500 = vmatprep.subr.mxu0 0.0
    %3501 = vmatpush1.msra.mxu0 0.0
    %3502 = vmatprep.subr.mxu0 0.0
    %3503 = vmatpush1.msra.mxu0 0.0
    %3504 = vmatprep.subr.mxu0 0.0
    %3505 = vmatpush1.msra.mxu0 0.0
    %3506 = vmatprep.mubr.f32.mxu0 0.0
    %3507 = vmatmul.mubr.f32.gmra.mrb[0].mxu0 %v3397
    %v3508 = vpop.f32.mrb[0].mxu0
    %v3509 = vadd.f32 %v3435, %v3508
    %v3510 = vpop.f32.mrb[0].mxu0
    %v3511 = vadd.f32 %v3439, %v3510
    %3512 = vdwg.mxu0
    %v3513 = vxor.u32 %v3509, 2147483648
    %v3514 = vmul.f32 %v3513, 1.442695
    %v3515 = vpow.pop %v3514
    %v3516 = vadd.f32 %v3515, 1.0
    %v3517 = vrcp.pop %v3516
    %v3518 = vmul.f32 1.0, %v3517
    %v3519 = vtanh.pop %v3511
    %v3520 = vxor.u32 %v3511, 2147483648
    %v3521 = vmul.f32 %v3520, 1.442695
    %v3522 = vpow.pop %v3521
    %v3523 = vadd.f32 %v3522, 1.0
    %v3524 = vrcp.pop %v3523
    %v3525 = vmul.f32 1.0, %v3524
    %v3526 = vmul.f32 %v3518, 0.0
    %v3527 = vmul.f32 %v3518, %v3519
    %3529 = vrot.lane.b32.xlu0 %v3527, 64
    %v3530 = vpop.permute.xlu0 %3529
    %v3532 = vadd.f32 %v3526, %v3530
    %v3533 = vtanh.pop %v3532
    %v3534 = vmul.f32 %v3525, %v3533
    %v3535 = vld [vmem:[%s1 + $0x38] sm:$0xff]
    %3537 = vset.pattern.permute.xlu0 0
    %3538 = vperm.xlu0 %3537, %v3535
    %v3539 = vpop.permute.xlu0 %3538
    %vm3541 = vcmp.gt.f32.partialorder %v3539, 0.0
    %v3542 = vsel %vm3541, %v3396, 0.0
    %v3543 = vsel %vm3541, %v3534, 0.0
    %v3544 = vld [vmem:[%s11] sm:$0xff]
    %v3545 = vld [vmem:[%s11 + $0x8] sm:$0xff]
    %v3546 = vld [vmem:[%s11 + $0x10] sm:$0xff]
    %v3547 = vld [vmem:[%s11 + $0x18] sm:$0xff]
    %v3548 = vld [vmem:[%s11 + $0x20] sm:$0xff]
    %v3549 = vld [vmem:[%s11 + $0x28] sm:$0xff]
    %v3550 = vld [vmem:[%s11 + $0x30] sm:$0xff]
    %v3551 = vld [vmem:[%s11 + $0x38] sm:$0xff]
    %v3552 = vld [vmem:[%s12] sm:$0xff]
    %v3553 = vld [vmem:[%s12 + $0x8] sm:$0xff]
    %v3554 = vld [vmem:[%s12 + $0x10] sm:$0xff]
    %v3555 = vld [vmem:[%s12 + $0x18] sm:$0xff]
    %v3556 = vld [vmem:[%s12 + $0x20] sm:$0xff]
    %v3557 = vld [vmem:[%s12 + $0x28] sm:$0xff]
    %v3558 = vld [vmem:[%s12 + $0x30] sm:$0xff]
    %v3559 = vld [vmem:[%s12 + $0x38] sm:$0xff]
    %3561 = vrot.lane.b32.xlu0 %v3543, 64
    %v3562 = vpop.permute.xlu0 %3561
    %v3563 = vsel %vm499, %v3562, 0
    %3565 = vmatprep.subr.mxu0 0.0
    %3566 = vmatpush1.msra.mxu0 %v3552
    %3567 = vmatprep.subr.mxu0 0.0
    %3568 = vmatpush1.msra.mxu0 %v3553
    %3569 = vmatprep.subr.mxu0 0.0
    %3570 = vmatpush1.msra.mxu0 %v3554
    %3571 = vmatprep.subr.mxu0 0.0
    %3572 = vmatpush1.msra.mxu0 %v3555
    %3573 = vmatprep.subr.mxu0 0.0
    %3574 = vmatpush1.msra.mxu0 %v3556
    %3575 = vmatprep.subr.mxu0 0.0
    %3576 = vmatpush1.msra.mxu0 %v3557
    %3577 = vmatprep.subr.mxu0 0.0
    %3578 = vmatpush1.msra.mxu0 %v3558
    %3579 = vmatprep.subr.mxu0 0.0
    %3580 = vmatpush1.msra.mxu0 %v3559
    %3581 = vmatprep.subr.mxu0 0.0
    %3582 = vmatpush1.msra.mxu0 0.0
    %3583 = vmatprep.subr.mxu0 0.0
    %3584 = vmatpush1.msra.mxu0 0.0
    %3585 = vmatprep.subr.mxu0 0.0
    %3586 = vmatpush1.msra.mxu0 0.0
    %3587 = vmatprep.subr.mxu0 0.0
    %3588 = vmatpush1.msra.mxu0 0.0
    %3589 = vmatprep.subr.mxu0 0.0
    %3590 = vmatpush1.msra.mxu0 0.0
    %3591 = vmatprep.subr.mxu0 0.0
    %3592 = vmatpush1.msra.mxu0 0.0
    %3593 = vmatprep.subr.mxu0 0.0
    %3594 = vmatpush1.msra.mxu0 0.0
    %3595 = vmatprep.subr.mxu0 0.0
    %3596 = vmatpush1.msra.mxu0 0.0
    %3597 = vmatprep.subr.mxu0 0.0
    %3598 = vmatpush1.msra.mxu0 0.0
    %3599 = vmatprep.subr.mxu0 0.0
    %3600 = vmatpush1.msra.mxu0 0.0
    %3601 = vmatprep.subr.mxu0 0.0
    %3602 = vmatpush1.msra.mxu0 0.0
    %3603 = vmatprep.subr.mxu0 0.0
    %3604 = vmatpush1.msra.mxu0 0.0
    %3605 = vmatprep.subr.mxu0 0.0
    %3606 = vmatpush1.msra.mxu0 0.0
    %3607 = vmatprep.subr.mxu0 0.0
    %3608 = vmatpush1.msra.mxu0 0.0
    %3609 = vmatprep.subr.mxu0 0.0
    %3610 = vmatpush1.msra.mxu0 0.0
    %3611 = vmatprep.subr.mxu0 0.0
    %3612 = vmatpush1.msra.mxu0 0.0
    %3613 = vmatprep.subr.mxu0 0.0
    %3614 = vmatpush1.msra.mxu0 0.0
    %3615 = vmatprep.subr.mxu0 0.0
    %3616 = vmatpush1.msra.mxu0 0.0
    %3617 = vmatprep.subr.mxu0 0.0
    %3618 = vmatpush1.msra.mxu0 0.0
    %3619 = vmatprep.subr.mxu0 0.0
    %3620 = vmatpush1.msra.mxu0 0.0
    %3621 = vmatprep.subr.mxu0 0.0
    %3622 = vmatpush1.msra.mxu0 0.0
    %3623 = vmatprep.subr.mxu0 0.0
    %3624 = vmatpush1.msra.mxu0 0.0
    %3625 = vmatprep.subr.mxu0 0.0
    %3626 = vmatpush1.msra.mxu0 0.0
    %3627 = vmatprep.subr.mxu0 0.0
    %3628 = vmatpush1.msra.mxu0 0.0
    %3629 = vmatprep.mubr.f32.mxu0 0.0
    %3630 = vmatmul.mubr.f32.gmra.mrb[0].mxu0 %v3563
    %v3631 = vpop.f32.mrb[0].mxu0
    %v3632 = vadd.f32 0.0, %v3631
    %v3633 = vpop.f32.mrb[0].mxu0
    %3634 = vdwg.mxu0
    %3636 = vrot.lane.b32.xlu0 %v3542, 64
    %v3637 = vpop.permute.xlu0 %3636
    %v3638 = vsel %vm499, %v3637, 0
    %3640 = vmatprep.subr.mxu0 0.0
    %3641 = vmatpush1.msra.mxu0 %v3544
    %3642 = vmatprep.subr.mxu0 0.0
    %3643 = vmatpush1.msra.mxu0 %v3545
    %3644 = vmatprep.subr.mxu0 0.0
    %3645 = vmatpush1.msra.mxu0 %v3546
    %3646 = vmatprep.subr.mxu0 0.0
    %3647 = vmatpush1.msra.mxu0 %v3547
    %3648 = vmatprep.subr.mxu0 0.0
    %3649 = vmatpush1.msra.mxu0 %v3548
    %3650 = vmatprep.subr.mxu0 0.0
    %3651 = vmatpush1.msra.mxu0 %v3549
    %3652 = vmatprep.subr.mxu0 0.0
    %3653 = vmatpush1.msra.mxu0 %v3550
    %3654 = vmatprep.subr.mxu0 0.0
    %3655 = vmatpush1.msra.mxu0 %v3551
    %3656 = vmatprep.subr.mxu0 0.0
    %3657 = vmatpush1.msra.mxu0 0.0
    %3658 = vmatprep.subr.mxu0 0.0
    %3659 = vmatpush1.msra.mxu0 0.0
    %3660 = vmatprep.subr.mxu0 0.0
    %3661 = vmatpush1.msra.mxu0 0.0
    %3662 = vmatprep.subr.mxu0 0.0
    %3663 = vmatpush1.msra.mxu0 0.0
    %3664 = vmatprep.subr.mxu0 0.0
    %3665 = vmatpush1.msra.mxu0 0.0
    %3666 = vmatprep.subr.mxu0 0.0
    %3667 = vmatpush1.msra.mxu0 0.0
    %3668 = vmatprep.subr.mxu0 0.0
    %3669 = vmatpush1.msra.mxu0 0.0
    %3670 = vmatprep.subr.mxu0 0.0
    %3671 = vmatpush1.msra.mxu0 0.0
    %3672 = vmatprep.subr.mxu0 0.0
    %3673 = vmatpush1.msra.mxu0 0.0
    %3674 = vmatprep.subr.mxu0 0.0
    %3675 = vmatpush1.msra.mxu0 0.0
    %3676 = vmatprep.subr.mxu0 0.0
    %3677 = vmatpush1.msra.mxu0 0.0
    %3678 = vmatprep.subr.mxu0 0.0
    %3679 = vmatpush1.msra.mxu0 0.0
    %3680 = vmatprep.subr.mxu0 0.0
    %3681 = vmatpush1.msra.mxu0 0.0
    %3682 = vmatprep.subr.mxu0 0.0
    %3683 = vmatpush1.msra.mxu0 0.0
    %3684 = vmatprep.subr.mxu0 0.0
    %3685 = vmatpush1.msra.mxu0 0.0
    %3686 = vmatprep.subr.mxu0 0.0
    %3687 = vmatpush1.msra.mxu0 0.0
    %3688 = vmatprep.subr.mxu0 0.0
    %3689 = vmatpush1.msra.mxu0 0.0
    %3690 = vmatprep.subr.mxu0 0.0
    %3691 = vmatpush1.msra.mxu0 0.0
    %3692 = vmatprep.subr.mxu0 0.0
    %3693 = vmatpush1.msra.mxu0 0.0
    %3694 = vmatprep.subr.mxu0 0.0
    %3695 = vmatpush1.msra.mxu0 0.0
    %3696 = vmatprep.subr.mxu0 0.0
    %3697 = vmatpush1.msra.mxu0 0.0
    %3698 = vmatprep.subr.mxu0 0.0
    %3699 = vmatpush1.msra.mxu0 0.0
    %3700 = vmatprep.subr.mxu0 0.0
    %3701 = vmatpush1.msra.mxu0 0.0
    %3702 = vmatprep.subr.mxu0 0.0
    %3703 = vmatpush1.msra.mxu0 0.0
    %3704 = vmatprep.mubr.f32.mxu0 0.0
    %3705 = vmatmul.mubr.f32.gmra.mrb[0].mxu0 %v3638
    %v3706 = vpop.f32.mrb[0].mxu0
    %v3707 = vadd.f32 %v3632, %v3706
    %v3708 = vpop.f32.mrb[0].mxu0
    %3709 = vdwg.mxu0
    %v3710 = vld [vmem:[#allocation5] sm:$0x1]
    %v3712 = vlaneseq
    %v3713 = vshrl.u32 %v3712, 7
    %v3714 = vsub.s32 0, %v3713
    %v3715 = vrot.slane %v3710, %v3714
    %v3717 = vadd.f32 %v3707, %v3715
    %v3718 = vxor.u32 %v3717, 2147483648
    %v3719 = vmul.f32 %v3718, 1.442695
    %v3720 = vpow.pop %v3719
    %v3721 = vadd.f32 %v3720, 1.0
    %v3722 = vrcp.pop %v3721
    %v3723 = vmul.f32 1.0, %v3722
    %vm3724 = vcmask 7168
    %3725 = vst.msk [vmem:[%s14] sm:$0xff] %vm3724, %v3723
    // Predicated region
    $region78: #{tpu_custom_call.1} parent=1 // pred_check
      _
    $region79: #{tpu_custom_call.1} parent=1 // pred_check_branch
      %3727 = sbr.rel (0) target = $region81
    $region80: #{tpu_custom_call.1} parent=1 // pred_region
      _
    $region81: #{tpu_custom_call.1} parent=1 // pred_fallthru
      _
    // Predicated region
    $region82: #{tpu_custom_call.1} parent=1 // pred_check
      _
    $region83: #{tpu_custom_call.1} parent=1 // pred_check_branch
      %3729 = sbr.rel (0) target = $region85
    $region84: #{tpu_custom_call.1} parent=1 // pred_region
      _
    $region85: #{tpu_custom_call.1} parent=1 // pred_fallthru
      _
    %3730 = vsyncpa [#allocation7], 1
    %3731 = vsyncpa [#allocation9], 1
    %3732 = vsyncpa [#allocation12], 1

</llo_original>
